<compile_context>
chip_gen: v7x
topology: tpu7x:2x2x1
jax: 0.10.0
libtpu: 0.0.40
codegen_flags: <defaults>
</compile_context>

<pallas_src>
import jax
import jax.numpy as jnp
from jax.experimental import pallas as pl
from jax.experimental.pallas import tpu as pltpu


def _mxu_prefers_bf16():
    """bf16 matmul inputs on bf16-native chips (v6e / v7x); keep f32 on v5e and older."""
    try:
        kind = jax.devices()[0].device_kind.lower()
    except Exception:
        return False
    return ("v6" in kind) or ("v7" in kind) or ("tpu7" in kind)


# ----------------------------------------------------------------------------
# Fused kernel: stacked LSTM (masked packed-seq) + fc1/bn1/fc2/bn2 + mixture.
# ----------------------------------------------------------------------------
def _make_fused_kernel(n_layers, T, B, D, H, use_bf16):
    """Builds the fused kernel for static (n_layers, T, B, D, H)."""
    d_list = [D] + [H] * (n_layers - 1)          # per-layer input width

    def cw(a):                                   # matmul-operand cast (f32 accumulate)
        return a.astype(jnp.bfloat16) if use_bf16 else a

    def kernel(*refs):
        # ---- unpack refs: inputs..., output, scratch ----
        x_ref = refs[0]                          # (T*B, D) time-major feature rows
        lens_ref = refs[1]                       # (B, 1) int32 sequence lengths
        slab_refs = refs[2:2 + n_layers]         # per-layer [W_ih.T; W_hh.T; bias] slab
        head1_ref = refs[2 + n_layers]           # (H+D+3, 20): w1a, w1b, b1, g1, be1
        head2_ref = refs[3 + n_layers]           # (23, 10):    w2, b2, g2, be2
        prob_ref = refs[4 + n_layers]            # (T*B, 1) output
        out_scr = refs[5 + n_layers]             # (T*B, H)  per-layer output slab
        zx_scr = refs[6 + n_layers]              # (T*B, 4H) batched input projection

        lens = lens_ref[...]                     # (B, 1) int32

        # ---- stacked LSTM, processed LAYER BY LAYER ----
        # Gate column order is [i, f, o, g] (reordered host-side).
        for l in range(n_layers):
            Dl = d_list[l]
            slab = slab_refs[l]
            wih = cw(slab[0:Dl, :])              # (Dl, 4H)
            whh = cw(slab[Dl:Dl + H, :])         # (H, 4H)  hoisted out of the t-loop
            bias = slab[Dl + H:Dl + H + 1, :]    # (1, 4H)

            # Batched input projection for the whole sequence: ONE matmul.
            inp_slab = x_ref[...] if l == 0 else out_scr[...]
            zx_scr[...] = (jnp.dot(cw(inp_slab), wih,
                                   preferred_element_type=jnp.float32) + bias)

            h = jnp.zeros((B, H), jnp.float32)
            c = jnp.zeros((B, H), jnp.float32)
            last = (l == n_layers - 1)
            for t in range(T):                   # T is small & static: fully unrolled
                valid = t < lens                 # (B, 1) bool
                z = (zx_scr[t * B:(t + 1) * B, :]
                     + jnp.dot(cw(h), whh, preferred_element_type=jnp.float32))
                sig = jax.nn.sigmoid(z[:, :3 * H])        # i, f, o in one EUP pass
                g_g = jnp.tanh(z[:, 3 * H:])              # g in one EUP pass
                i_g = sig[:, 0 * H:1 * H]
                f_g = sig[:, 1 * H:2 * H]
                o_g = sig[:, 2 * H:3 * H]
                c_new = f_g * c + i_g * g_g
                h_new = o_g * jnp.tanh(c_new)
                c = jnp.where(valid, c_new, c)            # freeze on padded steps
                h = jnp.where(valid, h_new, h)
                # pad_packed_sequence: padded rows of the TOP layer -> zeros.
                out_scr[t * B:(t + 1) * B, :] = (
                    jnp.where(valid, h, 0.0) if last else h)

        # ---- head: fc1 + relu + bn1 + fc2 + relu + bn2 + mixture ----
        eps = 1e-5
        out_flat = out_scr[...]                  # (N, H) top-layer LSTM output
        x_flat = x_ref[...]                      # (N, D) raw features

        w1a = head1_ref[0:H, :]                  # lstm-out part of fc1
        w1b = head1_ref[H:H + D, :]              # raw-feature part of fc1
        b1 = head1_ref[H + D:H + D + 1, :]
        g1 = head1_ref[H + D + 1:H + D + 2, :]
        be1 = head1_ref[H + D + 2:H + D + 3, :]
        w2 = head2_ref[0:20, :]                  # (20, 10) single matmul
        b2 = head2_ref[20:21, :]
        g2 = head2_ref[21:22, :]
        be2 = head2_ref[22:23, :]

        # fc1 on cat([lstm_out, raw_features]) expressed as two matmuls (no concat).
        h1 = jnp.maximum(
            jnp.dot(cw(out_flat), cw(w1a), preferred_element_type=jnp.float32)
            + jnp.dot(cw(x_flat), cw(w1b), preferred_element_type=jnp.float32)
            + b1, 0.0)
        mu1 = jnp.mean(h1, axis=0, keepdims=True)
        var1 = jnp.mean((h1 - mu1) ** 2, axis=0, keepdims=True)
        h1 = (h1 - mu1) * jax.lax.rsqrt(var1 + eps) * g1 + be1

        h2 = jnp.maximum(
            jnp.dot(cw(h1), cw(w2), preferred_element_type=jnp.float32) + b2, 0.0)
        mu2 = jnp.mean(h2, axis=0, keepdims=True)
        var2 = jnp.mean((h2 - mu2) ** 2, axis=0, keepdims=True)
        h2 = (h2 - mu2) * jax.lax.rsqrt(var2 + eps) * g2 + be2

        half = h2.shape[1] // 2
        mix = h2[:, :half]                       # in-register lane slices
        psb = h2[:, half:]
        mix = mix - jnp.min(mix, axis=1, keepdims=True)         # matches reference
        e = jnp.exp(mix - jnp.max(mix, axis=1, keepdims=True))  # stable softmax
        mc = e / jnp.sum(e, axis=1, keepdims=True)
        ps = jax.nn.sigmoid(psb)
        prob_ref[...] = jnp.sum(mc * ps, axis=1, keepdims=True)  # (N, 1)

    return kernel


def fused_lstm_head_pallas(x, lens_col, lstm_layers, p, use_bf16=None):
    """x: (T, B, D) f32 features, lens_col: (B,1) i32.  Returns (T*B, 1) probs."""
    T, B, D = x.shape
    H = lstm_layers[0]["w_hh"].shape[1]
    n_layers = len(lstm_layers)
    N = T * B
    if use_bf16 is None:
        use_bf16 = _mxu_prefers_bf16()

    x2d = x.reshape(N, D)                        # time-major rows

    def reorder(w):                              # columns [i|f|g|o] -> [i|f|o|g]
        return jnp.concatenate(
            [w[:, :2 * H], w[:, 3 * H:4 * H], w[:, 2 * H:3 * H]], axis=1)

    # One slab per LSTM layer: [W_ih.T ; W_hh.T ; combined bias]  -> (D_l+H+1, 4H)
    slabs = []
    for lp in lstm_layers:
        wih_t = reorder(lp["w_ih"].T)                            # (D_l, 4H)
        whh_t = reorder(lp["w_hh"].T)                            # (H, 4H)
        bias = reorder((lp["b_ih"] + lp["b_hh"]).reshape(1, 4 * H))
        slabs.append(jnp.concatenate([wih_t, whh_t, bias], axis=0))

    # Head packed into two slabs (lane widths 20 and 10, no padding needed).
    w1 = p["fc1_w"].T                                            # (H + D, 20)
    head1 = jnp.concatenate([w1[:H], w1[H:],                     # lstm-out / raw parts
                             p["fc1_b"].reshape(1, -1),
                             p["bn1_g"].reshape(1, -1),
                             p["bn1_b"].reshape(1, -1)], axis=0)  # (H+D+3, 20)
    head2 = jnp.concatenate([p["fc2_w"].T,                        # (20, 10)
                             p["fc2_b"].reshape(1, -1),
                             p["bn2_g"].reshape(1, -1),
                             p["bn2_b"].reshape(1, -1)], axis=0)  # (23, 10)

    args = [x2d, lens_col] + slabs + [head1, head2]               # 6 inputs total
    kernel = _make_fused_kernel(n_layers, T, B, D, H, use_bf16)

    def full(a):
        return pl.BlockSpec(a.shape, lambda i, _n=a.ndim: (0,) * _n)

    return pl.pallas_call(
        kernel,
        out_shape=jax.ShapeDtypeStruct((N, 1), jnp.float32),
        grid=(1,),
        in_specs=[full(a) for a in args],
        out_specs=pl.BlockSpec((N, 1), lambda i: (0, 0)),
        scratch_shapes=[pltpu.VMEM((N, H), jnp.float32),          # per-layer output slab
                        pltpu.VMEM((N, 4 * H), jnp.float32)],     # batched input proj.
        compiler_params=pltpu.CompilerParams(dimension_semantics=("arbitrary",)),
    )(*args)


# ----------------------------------------------------------------------------
# Parameter init (deterministic, synthetic) & full forward
# ----------------------------------------------------------------------------
def init_params(key, rnn_input_size, hidden_size, n_layers,
                n_department=23, n_aisle=135, n_product=49689):
    keys = iter(jax.random.split(key, 32))

    def u(shape, scale):
        return jax.random.uniform(next(keys), shape, jnp.float32, -scale, scale)

    p = {}
    p["department_emb"] = jax.random.normal(next(keys), (n_department, 3), jnp.float32)
    p["aisle_emb"] = jax.random.normal(next(keys), (n_aisle, 10), jnp.float32)
    p["product_emb"] = jax.random.normal(next(keys), (n_product, 20), jnp.float32)
    p["hod_emb"] = jax.random.normal(next(keys), (24, 3), jnp.float32)
    p["dow_emb"] = jax.random.normal(next(keys), (7, 2), jnp.float32)

    d_in = rnn_input_size + 3 + 2 + 3 + 10 + 20                # hod+dow+dept+aisle+prod
    s = 1.0 / (hidden_size ** 0.5)
    lstm = []
    for l in range(n_layers):
        d = d_in if l == 0 else hidden_size
        lstm.append(dict(w_ih=u((4 * hidden_size, d), s),
                         w_hh=u((4 * hidden_size, hidden_size), s),
                         b_ih=u((4 * hidden_size,), s),
                         b_hh=u((4 * hidden_size,), s)))
    p["lstm"] = lstm

    f1 = d_in + hidden_size
    s1 = 1.0 / (f1 ** 0.5)
    p["fc1_w"] = u((20, f1), s1)
    p["fc1_b"] = u((20,), s1)
    p["bn1_g"] = jnp.ones((20,), jnp.float32)
    p["bn1_b"] = jnp.zeros((20,), jnp.float32)
    s2 = 1.0 / (20 ** 0.5)
    p["fc2_w"] = u((10, 20), s2)
    p["fc2_b"] = u((10,), s2)
    p["bn2_g"] = jnp.ones((10,), jnp.float32)
    p["bn2_b"] = jnp.zeros((10,), jnp.float32)
    return p


def lstm_model_forward(p, rnn_input, hod_input, dow_input,
                       product, department, aisle, sequence_lengths):
    """sequence_lengths: Python list sorted descending (pack_padded_sequence)."""
    T, B, _ = rnn_input.shape

    # --- embedding lookups + concat (glue, plain JAX gathers) ---
    aisle_e = jnp.take(p["aisle_emb"], aisle[:, 0], axis=0)            # (B, 10)
    dept_e = jnp.take(p["department_emb"], department[:, 0], axis=0)   # (B, 3)
    prod_e = jnp.take(p["product_emb"], product[:, 0], axis=0)         # (B, 20)
    hod_e = jnp.take(p["hod_emb"], hod_input, axis=0)                  # (T, B, 3)
    dow_e = jnp.take(p["dow_emb"], dow_input, axis=0)                  # (T, B, 2)

    emb = jnp.concatenate([aisle_e, dept_e, prod_e], axis=1)           # (B, 33)
    emb = jnp.broadcast_to(emb[None], (T, B, emb.shape[1]))
    x = jnp.concatenate([rnn_input, hod_e, dow_e, emb], axis=2)        # (T, B, D_in)

    # --- pad_packed_sequence output length = max sequence length ---
    t_out = int(max(sequence_lengths))
    x = x[:t_out]
    lens_col = jnp.asarray(sequence_lengths, jnp.int32).reshape(B, 1)

    # --- single fused Pallas kernel: stacked LSTM + fc head ---
    prob = fused_lstm_head_pallas(x, lens_col, p["lstm"], p)           # (t_out*B, 1)
    return prob.reshape(t_out, B)


if __name__ == "__main__":
    rnn_input_size, hidden_size, n_layers = 6, 32, 2
    T, B = 8, 2

    root = jax.random.PRNGKey(0)
    k_par, k1, k2, k3, k4, k5, k6 = jax.random.split(root, 7)
    params = init_params(k_par, rnn_input_size, hidden_size, n_layers)

    rnn_input = jax.random.normal(k1, (T, B, rnn_input_size), jnp.float32)
    hod_input = jax.random.randint(k2, (T, B), 0, 24)
    dow_input = jax.random.randint(k3, (T, B), 0, 7)
    product = jax.random.randint(k4, (B, 1), 0, 49689)
    department = jax.random.randint(k5, (B, 1), 0, 23)
    aisle = jax.random.randint(k6, (B, 1), 0, 135)
    sequence_lengths = [8, 6]   # sorted descending, as pack_padded_sequence requires

    prob = lstm_model_forward(params, rnn_input, hod_input, dow_input,
                              product, department, aisle, sequence_lengths)
    jax.block_until_ready(prob)
    assert prob.shape == (max(sequence_lengths), B)
    assert bool(jnp.all(jnp.isfinite(prob)))
    print("KERNEL_OK")
</pallas_src>

<mosaic_0001>
module attributes {stable_mosaic.version = 11 : i64} {
  func.func @kernel(%arg0: i32, %arg1: memref<16x44xf32, #tpu.memory_space<vmem>>, %arg2: memref<2x1xi32, #tpu.memory_space<vmem>>, %arg3: memref<77x128xf32, #tpu.memory_space<vmem>>, %arg4: memref<65x128xf32, #tpu.memory_space<vmem>>, %arg5: memref<79x20xf32, #tpu.memory_space<vmem>>, %arg6: memref<23x10xf32, #tpu.memory_space<vmem>>, %arg7: memref<16x1xf32, #tpu.memory_space<vmem>>, %arg8: memref<16x32xf32, #tpu.memory_space<vmem>>, %arg9: memref<16x128xf32, #tpu.memory_space<vmem>>) attributes {dimension_semantics = [#tpu.dimension_semantics<arbitrary>], iteration_bounds = array<i64: 1>, scalar_prefetch = 0 : i64, scratch_operands = 2 : i64, tpu.core_type = #tpu.core_type<tc>, window_params = [{pipeline_mode = #tpu.pipeline_mode<synchronous>, transform_indices = @transform_0, window_bounds = array<i64: 16, 44>}, {pipeline_mode = #tpu.pipeline_mode<synchronous>, transform_indices = @transform_1, window_bounds = array<i64: 2, 1>}, {pipeline_mode = #tpu.pipeline_mode<synchronous>, transform_indices = @transform_2, window_bounds = array<i64: 77, 128>}, {pipeline_mode = #tpu.pipeline_mode<synchronous>, transform_indices = @transform_3, window_bounds = array<i64: 65, 128>}, {pipeline_mode = #tpu.pipeline_mode<synchronous>, transform_indices = @transform_4, window_bounds = array<i64: 79, 20>}, {pipeline_mode = #tpu.pipeline_mode<synchronous>, transform_indices = @transform_5, window_bounds = array<i64: 23, 10>}, {pipeline_mode = #tpu.pipeline_mode<synchronous>, transform_indices = @transform_6, window_bounds = array<i64: 16, 1>}]} {
    %c0 = arith.constant 0 : index
    %c0_0 = arith.constant 0 : index
    %0 = vector.load %arg2[%c0, %c0_0] : memref<2x1xi32, #tpu.memory_space<vmem>>, vector<2x1xi32>
    %c0_1 = arith.constant 0 : index
    %c0_2 = arith.constant 0 : index
    %1 = vector.load %arg3[%c0_1, %c0_2] : memref<77x128xf32, #tpu.memory_space<vmem>>, vector<44x128xf32>
    %c44 = arith.constant 44 : index
    %c0_3 = arith.constant 0 : index
    %2 = vector.load %arg3[%c44, %c0_3] : memref<77x128xf32, #tpu.memory_space<vmem>>, vector<32x128xf32>
    %c76 = arith.constant 76 : index
    %c0_4 = arith.constant 0 : index
    %3 = vector.load %arg3[%c76, %c0_4] : memref<77x128xf32, #tpu.memory_space<vmem>>, vector<1x128xf32>
    %c0_5 = arith.constant 0 : index
    %c0_6 = arith.constant 0 : index
    %4 = vector.load %arg1[%c0_5, %c0_6] : memref<16x44xf32, #tpu.memory_space<vmem>>, vector<16x44xf32>
    %cst = arith.constant dense<0.000000e+00> : vector<16x128xf32>
    %5 = tpu.matmul %4, %1, %cst {dimension_numbers = #tpu.dot_dimension_numbers<[1], [0], [0], [1], [0, 0, 1, 1], [], []>} : vector<16x44xf32>, vector<44x128xf32>, vector<16x128xf32> -> vector<16x128xf32>
    %6 = vector.broadcast %3 : vector<1x128xf32> to vector<16x128xf32>
    %7 = arith.addf %5, %6 : vector<16x128xf32>
    %c0_7 = arith.constant 0 : index
    %c0_8 = arith.constant 0 : index
    %8 = vector.load %arg9[%c0_7, %c0_8] : memref<16x128xf32, #tpu.memory_space<vmem>>, vector<16x128xf32>
    tpu.vector_store %arg9[%c0_7, %c0_8], %7 {strides = array<i32>} : memref<16x128xf32, #tpu.memory_space<vmem>>, vector<16x128xf32>,
    %cst_9 = arith.constant 0.000000e+00 : f32
    %9 = vector.broadcast %cst_9 : f32 to vector<2x32xf32>
    %cst_10 = arith.constant 0.000000e+00 : f32
    %10 = vector.broadcast %cst_10 : f32 to vector<2x32xf32>
    %c0_i32 = arith.constant 0 : i32
    %11 = vector.broadcast %c0_i32 : i32 to vector<2x1xi32>
    %12 = arith.cmpi sgt, %0, %11 : vector<2x1xi32>
    %c0_11 = arith.constant 0 : index
    %c0_12 = arith.constant 0 : index
    %13 = vector.load %arg9[%c0_11, %c0_12] : memref<16x128xf32, #tpu.memory_space<vmem>>, vector<2x128xf32>
    %cst_13 = arith.constant dense<0.000000e+00> : vector<2x128xf32>
    %14 = tpu.matmul %9, %2, %cst_13 {dimension_numbers = #tpu.dot_dimension_numbers<[1], [0], [0], [1], [0, 0, 1, 1], [], []>} : vector<2x32xf32>, vector<32x128xf32>, vector<2x128xf32> -> vector<2x128xf32>
    %15 = arith.addf %13, %14 : vector<2x128xf32>
    %16 = vector.extract_strided_slice %15 {offsets = [0, 0], sizes = [2, 96], strides = [1, 1]} : vector<2x128xf32> to vector<2x96xf32>
    %17 = arith.negf %16 : vector<2x96xf32>
    %18 = math.exp %17 : vector<2x96xf32>
    %cst_14 = arith.constant 1.000000e+00 : f32
    %19 = vector.broadcast %cst_14 : f32 to vector<2x96xf32>
    %20 = arith.addf %19, %18 : vector<2x96xf32>
    %21 = arith.divf %19, %20 : vector<2x96xf32>
    %22 = vector.extract_strided_slice %15 {offsets = [0, 96], sizes = [2, 32], strides = [1, 1]} : vector<2x128xf32> to vector<2x32xf32>
    %23 = math.tanh %22 : vector<2x32xf32>
    %24 = vector.extract_strided_slice %21 {offsets = [0, 0], sizes = [2, 32], strides = [1, 1]} : vector<2x96xf32> to vector<2x32xf32>
    %25 = vector.extract_strided_slice %21 {offsets = [0, 32], sizes = [2, 32], strides = [1, 1]} : vector<2x96xf32> to vector<2x32xf32>
    %26 = vector.extract_strided_slice %21 {offsets = [0, 64], sizes = [2, 32], strides = [1, 1]} : vector<2x96xf32> to vector<2x32xf32>
    %27 = arith.mulf %25, %10 : vector<2x32xf32>
    %28 = arith.mulf %24, %23 : vector<2x32xf32>
    %29 = arith.addf %27, %28 : vector<2x32xf32>
    %30 = math.tanh %29 : vector<2x32xf32>
    %31 = arith.mulf %26, %30 : vector<2x32xf32>
    %32 = vector.shape_cast %12 : vector<2x1xi1> to vector<2x1xi1>
    %33 = vector.broadcast %32 : vector<2x1xi1> to vector<2x32xi1>
    %34 = arith.select %33, %29, %10 : vector<2x32xi1>, vector<2x32xf32>
    %35 = vector.shape_cast %12 : vector<2x1xi1> to vector<2x1xi1>
    %36 = vector.broadcast %35 : vector<2x1xi1> to vector<2x32xi1>
    %37 = arith.select %36, %31, %9 : vector<2x32xi1>, vector<2x32xf32>
    %c0_15 = arith.constant 0 : index
    %c0_16 = arith.constant 0 : index
    %38 = vector.load %arg8[%c0_15, %c0_16] : memref<16x32xf32, #tpu.memory_space<vmem>>, vector<2x32xf32>
    tpu.vector_store %arg8[%c0_15, %c0_16], %37 {strides = array<i32>} : memref<16x32xf32, #tpu.memory_space<vmem>>, vector<2x32xf32>,
    %c1_i32 = arith.constant 1 : i32
    %39 = vector.broadcast %c1_i32 : i32 to vector<2x1xi32>
    %40 = arith.cmpi sgt, %0, %39 : vector<2x1xi32>
    %c2 = arith.constant 2 : index
    %c0_17 = arith.constant 0 : index
    %41 = vector.load %arg9[%c2, %c0_17] : memref<16x128xf32, #tpu.memory_space<vmem>>, vector<2x128xf32>
    %cst_18 = arith.constant dense<0.000000e+00> : vector<2x128xf32>
    %42 = tpu.matmul %37, %2, %cst_18 {dimension_numbers = #tpu.dot_dimension_numbers<[1], [0], [0], [1], [0, 0, 1, 1], [], []>} : vector<2x32xf32>, vector<32x128xf32>, vector<2x128xf32> -> vector<2x128xf32>
    %43 = arith.addf %41, %42 : vector<2x128xf32>
    %44 = vector.extract_strided_slice %43 {offsets = [0, 0], sizes = [2, 96], strides = [1, 1]} : vector<2x128xf32> to vector<2x96xf32>
    %45 = arith.negf %44 : vector<2x96xf32>
    %46 = math.exp %45 : vector<2x96xf32>
    %cst_19 = arith.constant 1.000000e+00 : f32
    %47 = vector.broadcast %cst_19 : f32 to vector<2x96xf32>
    %48 = arith.addf %47, %46 : vector<2x96xf32>
    %49 = arith.divf %47, %48 : vector<2x96xf32>
    %50 = vector.extract_strided_slice %43 {offsets = [0, 96], sizes = [2, 32], strides = [1, 1]} : vector<2x128xf32> to vector<2x32xf32>
    %51 = math.tanh %50 : vector<2x32xf32>
    %52 = vector.extract_strided_slice %49 {offsets = [0, 0], sizes = [2, 32], strides = [1, 1]} : vector<2x96xf32> to vector<2x32xf32>
    %53 = vector.extract_strided_slice %49 {offsets = [0, 32], sizes = [2, 32], strides = [1, 1]} : vector<2x96xf32> to vector<2x32xf32>
    %54 = vector.extract_strided_slice %49 {offsets = [0, 64], sizes = [2, 32], strides = [1, 1]} : vector<2x96xf32> to vector<2x32xf32>
    %55 = arith.mulf %53, %34 : vector<2x32xf32>
    %56 = arith.mulf %52, %51 : vector<2x32xf32>
    %57 = arith.addf %55, %56 : vector<2x32xf32>
    %58 = math.tanh %57 : vector<2x32xf32>
    %59 = arith.mulf %54, %58 : vector<2x32xf32>
    %60 = vector.shape_cast %40 : vector<2x1xi1> to vector<2x1xi1>
    %61 = vector.broadcast %60 : vector<2x1xi1> to vector<2x32xi1>
    %62 = arith.select %61, %57, %34 : vector<2x32xi1>, vector<2x32xf32>
    %63 = vector.shape_cast %40 : vector<2x1xi1> to vector<2x1xi1>
    %64 = vector.broadcast %63 : vector<2x1xi1> to vector<2x32xi1>
    %65 = arith.select %64, %59, %37 : vector<2x32xi1>, vector<2x32xf32>
    %c2_20 = arith.constant 2 : index
    %c0_21 = arith.constant 0 : index
    %66 = vector.load %arg8[%c2_20, %c0_21] : memref<16x32xf32, #tpu.memory_space<vmem>>, vector<2x32xf32>
    tpu.vector_store %arg8[%c2_20, %c0_21], %65 {strides = array<i32>} : memref<16x32xf32, #tpu.memory_space<vmem>>, vector<2x32xf32>,
    %c2_i32 = arith.constant 2 : i32
    %67 = vector.broadcast %c2_i32 : i32 to vector<2x1xi32>
    %68 = arith.cmpi sgt, %0, %67 : vector<2x1xi32>
    %c4 = arith.constant 4 : index
    %c0_22 = arith.constant 0 : index
    %69 = vector.load %arg9[%c4, %c0_22] : memref<16x128xf32, #tpu.memory_space<vmem>>, vector<2x128xf32>
    %cst_23 = arith.constant dense<0.000000e+00> : vector<2x128xf32>
    %70 = tpu.matmul %65, %2, %cst_23 {dimension_numbers = #tpu.dot_dimension_numbers<[1], [0], [0], [1], [0, 0, 1, 1], [], []>} : vector<2x32xf32>, vector<32x128xf32>, vector<2x128xf32> -> vector<2x128xf32>
    %71 = arith.addf %69, %70 : vector<2x128xf32>
    %72 = vector.extract_strided_slice %71 {offsets = [0, 0], sizes = [2, 96], strides = [1, 1]} : vector<2x128xf32> to vector<2x96xf32>
    %73 = arith.negf %72 : vector<2x96xf32>
    %74 = math.exp %73 : vector<2x96xf32>
    %cst_24 = arith.constant 1.000000e+00 : f32
    %75 = vector.broadcast %cst_24 : f32 to vector<2x96xf32>
    %76 = arith.addf %75, %74 : vector<2x96xf32>
    %77 = arith.divf %75, %76 : vector<2x96xf32>
    %78 = vector.extract_strided_slice %71 {offsets = [0, 96], sizes = [2, 32], strides = [1, 1]} : vector<2x128xf32> to vector<2x32xf32>
    %79 = math.tanh %78 : vector<2x32xf32>
    %80 = vector.extract_strided_slice %77 {offsets = [0, 0], sizes = [2, 32], strides = [1, 1]} : vector<2x96xf32> to vector<2x32xf32>
    %81 = vector.extract_strided_slice %77 {offsets = [0, 32], sizes = [2, 32], strides = [1, 1]} : vector<2x96xf32> to vector<2x32xf32>
    %82 = vector.extract_strided_slice %77 {offsets = [0, 64], sizes = [2, 32], strides = [1, 1]} : vector<2x96xf32> to vector<2x32xf32>
    %83 = arith.mulf %81, %62 : vector<2x32xf32>
    %84 = arith.mulf %80, %79 : vector<2x32xf32>
    %85 = arith.addf %83, %84 : vector<2x32xf32>
    %86 = math.tanh %85 : vector<2x32xf32>
    %87 = arith.mulf %82, %86 : vector<2x32xf32>
    %88 = vector.shape_cast %68 : vector<2x1xi1> to vector<2x1xi1>
    %89 = vector.broadcast %88 : vector<2x1xi1> to vector<2x32xi1>
    %90 = arith.select %89, %85, %62 : vector<2x32xi1>, vector<2x32xf32>
    %91 = vector.shape_cast %68 : vector<2x1xi1> to vector<2x1xi1>
    %92 = vector.broadcast %91 : vector<2x1xi1> to vector<2x32xi1>
    %93 = arith.select %92, %87, %65 : vector<2x32xi1>, vector<2x32xf32>
    %c4_25 = arith.constant 4 : index
    %c0_26 = arith.constant 0 : index
    %94 = vector.load %arg8[%c4_25, %c0_26] : memref<16x32xf32, #tpu.memory_space<vmem>>, vector<2x32xf32>
    tpu.vector_store %arg8[%c4_25, %c0_26], %93 {strides = array<i32>} : memref<16x32xf32, #tpu.memory_space<vmem>>, vector<2x32xf32>,
    %c3_i32 = arith.constant 3 : i32
    %95 = vector.broadcast %c3_i32 : i32 to vector<2x1xi32>
    %96 = arith.cmpi sgt, %0, %95 : vector<2x1xi32>
    %c6 = arith.constant 6 : index
    %c0_27 = arith.constant 0 : index
    %97 = vector.load %arg9[%c6, %c0_27] : memref<16x128xf32, #tpu.memory_space<vmem>>, vector<2x128xf32>
    %cst_28 = arith.constant dense<0.000000e+00> : vector<2x128xf32>
    %98 = tpu.matmul %93, %2, %cst_28 {dimension_numbers = #tpu.dot_dimension_numbers<[1], [0], [0], [1], [0, 0, 1, 1], [], []>} : vector<2x32xf32>, vector<32x128xf32>, vector<2x128xf32> -> vector<2x128xf32>
    %99 = arith.addf %97, %98 : vector<2x128xf32>
    %100 = vector.extract_strided_slice %99 {offsets = [0, 0], sizes = [2, 96], strides = [1, 1]} : vector<2x128xf32> to vector<2x96xf32>
    %101 = arith.negf %100 : vector<2x96xf32>
    %102 = math.exp %101 : vector<2x96xf32>
    %cst_29 = arith.constant 1.000000e+00 : f32
    %103 = vector.broadcast %cst_29 : f32 to vector<2x96xf32>
    %104 = arith.addf %103, %102 : vector<2x96xf32>
    %105 = arith.divf %103, %104 : vector<2x96xf32>
    %106 = vector.extract_strided_slice %99 {offsets = [0, 96], sizes = [2, 32], strides = [1, 1]} : vector<2x128xf32> to vector<2x32xf32>
    %107 = math.tanh %106 : vector<2x32xf32>
    %108 = vector.extract_strided_slice %105 {offsets = [0, 0], sizes = [2, 32], strides = [1, 1]} : vector<2x96xf32> to vector<2x32xf32>
    %109 = vector.extract_strided_slice %105 {offsets = [0, 32], sizes = [2, 32], strides = [1, 1]} : vector<2x96xf32> to vector<2x32xf32>
    %110 = vector.extract_strided_slice %105 {offsets = [0, 64], sizes = [2, 32], strides = [1, 1]} : vector<2x96xf32> to vector<2x32xf32>
    %111 = arith.mulf %109, %90 : vector<2x32xf32>
    %112 = arith.mulf %108, %107 : vector<2x32xf32>
    %113 = arith.addf %111, %112 : vector<2x32xf32>
    %114 = math.tanh %113 : vector<2x32xf32>
    %115 = arith.mulf %110, %114 : vector<2x32xf32>
    %116 = vector.shape_cast %96 : vector<2x1xi1> to vector<2x1xi1>
    %117 = vector.broadcast %116 : vector<2x1xi1> to vector<2x32xi1>
    %118 = arith.select %117, %113, %90 : vector<2x32xi1>, vector<2x32xf32>
    %119 = vector.shape_cast %96 : vector<2x1xi1> to vector<2x1xi1>
    %120 = vector.broadcast %119 : vector<2x1xi1> to vector<2x32xi1>
    %121 = arith.select %120, %115, %93 : vector<2x32xi1>, vector<2x32xf32>
    %c6_30 = arith.constant 6 : index
    %c0_31 = arith.constant 0 : index
    %122 = vector.load %arg8[%c6_30, %c0_31] : memref<16x32xf32, #tpu.memory_space<vmem>>, vector<2x32xf32>
    tpu.vector_store %arg8[%c6_30, %c0_31], %121 {strides = array<i32>} : memref<16x32xf32, #tpu.memory_space<vmem>>, vector<2x32xf32>,
    %c4_i32 = arith.constant 4 : i32
    %123 = vector.broadcast %c4_i32 : i32 to vector<2x1xi32>
    %124 = arith.cmpi sgt, %0, %123 : vector<2x1xi32>
    %c8 = arith.constant 8 : index
    %c0_32 = arith.constant 0 : index
    %125 = vector.load %arg9[%c8, %c0_32] : memref<16x128xf32, #tpu.memory_space<vmem>>, vector<2x128xf32>
    %cst_33 = arith.constant dense<0.000000e+00> : vector<2x128xf32>
    %126 = tpu.matmul %121, %2, %cst_33 {dimension_numbers = #tpu.dot_dimension_numbers<[1], [0], [0], [1], [0, 0, 1, 1], [], []>} : vector<2x32xf32>, vector<32x128xf32>, vector<2x128xf32> -> vector<2x128xf32>
    %127 = arith.addf %125, %126 : vector<2x128xf32>
    %128 = vector.extract_strided_slice %127 {offsets = [0, 0], sizes = [2, 96], strides = [1, 1]} : vector<2x128xf32> to vector<2x96xf32>
    %129 = arith.negf %128 : vector<2x96xf32>
    %130 = math.exp %129 : vector<2x96xf32>
    %cst_34 = arith.constant 1.000000e+00 : f32
    %131 = vector.broadcast %cst_34 : f32 to vector<2x96xf32>
    %132 = arith.addf %131, %130 : vector<2x96xf32>
    %133 = arith.divf %131, %132 : vector<2x96xf32>
    %134 = vector.extract_strided_slice %127 {offsets = [0, 96], sizes = [2, 32], strides = [1, 1]} : vector<2x128xf32> to vector<2x32xf32>
    %135 = math.tanh %134 : vector<2x32xf32>
    %136 = vector.extract_strided_slice %133 {offsets = [0, 0], sizes = [2, 32], strides = [1, 1]} : vector<2x96xf32> to vector<2x32xf32>
    %137 = vector.extract_strided_slice %133 {offsets = [0, 32], sizes = [2, 32], strides = [1, 1]} : vector<2x96xf32> to vector<2x32xf32>
    %138 = vector.extract_strided_slice %133 {offsets = [0, 64], sizes = [2, 32], strides = [1, 1]} : vector<2x96xf32> to vector<2x32xf32>
    %139 = arith.mulf %137, %118 : vector<2x32xf32>
    %140 = arith.mulf %136, %135 : vector<2x32xf32>
    %141 = arith.addf %139, %140 : vector<2x32xf32>
    %142 = math.tanh %141 : vector<2x32xf32>
    %143 = arith.mulf %138, %142 : vector<2x32xf32>
    %144 = vector.shape_cast %124 : vector<2x1xi1> to vector<2x1xi1>
    %145 = vector.broadcast %144 : vector<2x1xi1> to vector<2x32xi1>
    %146 = arith.select %145, %141, %118 : vector<2x32xi1>, vector<2x32xf32>
    %147 = vector.shape_cast %124 : vector<2x1xi1> to vector<2x1xi1>
    %148 = vector.broadcast %147 : vector<2x1xi1> to vector<2x32xi1>
    %149 = arith.select %148, %143, %121 : vector<2x32xi1>, vector<2x32xf32>
    %c8_35 = arith.constant 8 : index
    %c0_36 = arith.constant 0 : index
    %150 = vector.load %arg8[%c8_35, %c0_36] : memref<16x32xf32, #tpu.memory_space<vmem>>, vector<2x32xf32>
    tpu.vector_store %arg8[%c8_35, %c0_36], %149 {strides = array<i32>} : memref<16x32xf32, #tpu.memory_space<vmem>>, vector<2x32xf32>,
    %c5_i32 = arith.constant 5 : i32
    %151 = vector.broadcast %c5_i32 : i32 to vector<2x1xi32>
    %152 = arith.cmpi sgt, %0, %151 : vector<2x1xi32>
    %c10 = arith.constant 10 : index
    %c0_37 = arith.constant 0 : index
    %153 = vector.load %arg9[%c10, %c0_37] : memref<16x128xf32, #tpu.memory_space<vmem>>, vector<2x128xf32>
    %cst_38 = arith.constant dense<0.000000e+00> : vector<2x128xf32>
    %154 = tpu.matmul %149, %2, %cst_38 {dimension_numbers = #tpu.dot_dimension_numbers<[1], [0], [0], [1], [0, 0, 1, 1], [], []>} : vector<2x32xf32>, vector<32x128xf32>, vector<2x128xf32> -> vector<2x128xf32>
    %155 = arith.addf %153, %154 : vector<2x128xf32>
    %156 = vector.extract_strided_slice %155 {offsets = [0, 0], sizes = [2, 96], strides = [1, 1]} : vector<2x128xf32> to vector<2x96xf32>
    %157 = arith.negf %156 : vector<2x96xf32>
    %158 = math.exp %157 : vector<2x96xf32>
    %cst_39 = arith.constant 1.000000e+00 : f32
    %159 = vector.broadcast %cst_39 : f32 to vector<2x96xf32>
    %160 = arith.addf %159, %158 : vector<2x96xf32>
    %161 = arith.divf %159, %160 : vector<2x96xf32>
    %162 = vector.extract_strided_slice %155 {offsets = [0, 96], sizes = [2, 32], strides = [1, 1]} : vector<2x128xf32> to vector<2x32xf32>
    %163 = math.tanh %162 : vector<2x32xf32>
    %164 = vector.extract_strided_slice %161 {offsets = [0, 0], sizes = [2, 32], strides = [1, 1]} : vector<2x96xf32> to vector<2x32xf32>
    %165 = vector.extract_strided_slice %161 {offsets = [0, 32], sizes = [2, 32], strides = [1, 1]} : vector<2x96xf32> to vector<2x32xf32>
    %166 = vector.extract_strided_slice %161 {offsets = [0, 64], sizes = [2, 32], strides = [1, 1]} : vector<2x96xf32> to vector<2x32xf32>
    %167 = arith.mulf %165, %146 : vector<2x32xf32>
    %168 = arith.mulf %164, %163 : vector<2x32xf32>
    %169 = arith.addf %167, %168 : vector<2x32xf32>
    %170 = math.tanh %169 : vector<2x32xf32>
    %171 = arith.mulf %166, %170 : vector<2x32xf32>
    %172 = vector.shape_cast %152 : vector<2x1xi1> to vector<2x1xi1>
    %173 = vector.broadcast %172 : vector<2x1xi1> to vector<2x32xi1>
    %174 = arith.select %173, %169, %146 : vector<2x32xi1>, vector<2x32xf32>
    %175 = vector.shape_cast %152 : vector<2x1xi1> to vector<2x1xi1>
    %176 = vector.broadcast %175 : vector<2x1xi1> to vector<2x32xi1>
    %177 = arith.select %176, %171, %149 : vector<2x32xi1>, vector<2x32xf32>
    %c10_40 = arith.constant 10 : index
    %c0_41 = arith.constant 0 : index
    %178 = vector.load %arg8[%c10_40, %c0_41] : memref<16x32xf32, #tpu.memory_space<vmem>>, vector<2x32xf32>
    tpu.vector_store %arg8[%c10_40, %c0_41], %177 {strides = array<i32>} : memref<16x32xf32, #tpu.memory_space<vmem>>, vector<2x32xf32>,
    %c6_i32 = arith.constant 6 : i32
    %179 = vector.broadcast %c6_i32 : i32 to vector<2x1xi32>
    %180 = arith.cmpi sgt, %0, %179 : vector<2x1xi32>
    %c12 = arith.constant 12 : index
    %c0_42 = arith.constant 0 : index
    %181 = vector.load %arg9[%c12, %c0_42] : memref<16x128xf32, #tpu.memory_space<vmem>>, vector<2x128xf32>
    %cst_43 = arith.constant dense<0.000000e+00> : vector<2x128xf32>
    %182 = tpu.matmul %177, %2, %cst_43 {dimension_numbers = #tpu.dot_dimension_numbers<[1], [0], [0], [1], [0, 0, 1, 1], [], []>} : vector<2x32xf32>, vector<32x128xf32>, vector<2x128xf32> -> vector<2x128xf32>
    %183 = arith.addf %181, %182 : vector<2x128xf32>
    %184 = vector.extract_strided_slice %183 {offsets = [0, 0], sizes = [2, 96], strides = [1, 1]} : vector<2x128xf32> to vector<2x96xf32>
    %185 = arith.negf %184 : vector<2x96xf32>
    %186 = math.exp %185 : vector<2x96xf32>
    %cst_44 = arith.constant 1.000000e+00 : f32
    %187 = vector.broadcast %cst_44 : f32 to vector<2x96xf32>
    %188 = arith.addf %187, %186 : vector<2x96xf32>
    %189 = arith.divf %187, %188 : vector<2x96xf32>
    %190 = vector.extract_strided_slice %183 {offsets = [0, 96], sizes = [2, 32], strides = [1, 1]} : vector<2x128xf32> to vector<2x32xf32>
    %191 = math.tanh %190 : vector<2x32xf32>
    %192 = vector.extract_strided_slice %189 {offsets = [0, 0], sizes = [2, 32], strides = [1, 1]} : vector<2x96xf32> to vector<2x32xf32>
    %193 = vector.extract_strided_slice %189 {offsets = [0, 32], sizes = [2, 32], strides = [1, 1]} : vector<2x96xf32> to vector<2x32xf32>
    %194 = vector.extract_strided_slice %189 {offsets = [0, 64], sizes = [2, 32], strides = [1, 1]} : vector<2x96xf32> to vector<2x32xf32>
    %195 = arith.mulf %193, %174 : vector<2x32xf32>
    %196 = arith.mulf %192, %191 : vector<2x32xf32>
    %197 = arith.addf %195, %196 : vector<2x32xf32>
    %198 = math.tanh %197 : vector<2x32xf32>
    %199 = arith.mulf %194, %198 : vector<2x32xf32>
    %200 = vector.shape_cast %180 : vector<2x1xi1> to vector<2x1xi1>
    %201 = vector.broadcast %200 : vector<2x1xi1> to vector<2x32xi1>
    %202 = arith.select %201, %197, %174 : vector<2x32xi1>, vector<2x32xf32>
    %203 = vector.shape_cast %180 : vector<2x1xi1> to vector<2x1xi1>
    %204 = vector.broadcast %203 : vector<2x1xi1> to vector<2x32xi1>
    %205 = arith.select %204, %199, %177 : vector<2x32xi1>, vector<2x32xf32>
    %c12_45 = arith.constant 12 : index
    %c0_46 = arith.constant 0 : index
    %206 = vector.load %arg8[%c12_45, %c0_46] : memref<16x32xf32, #tpu.memory_space<vmem>>, vector<2x32xf32>
    tpu.vector_store %arg8[%c12_45, %c0_46], %205 {strides = array<i32>} : memref<16x32xf32, #tpu.memory_space<vmem>>, vector<2x32xf32>,
    %c7_i32 = arith.constant 7 : i32
    %207 = vector.broadcast %c7_i32 : i32 to vector<2x1xi32>
    %208 = arith.cmpi sgt, %0, %207 : vector<2x1xi32>
    %c14 = arith.constant 14 : index
    %c0_47 = arith.constant 0 : index
    %209 = vector.load %arg9[%c14, %c0_47] : memref<16x128xf32, #tpu.memory_space<vmem>>, vector<2x128xf32>
    %cst_48 = arith.constant dense<0.000000e+00> : vector<2x128xf32>
    %210 = tpu.matmul %205, %2, %cst_48 {dimension_numbers = #tpu.dot_dimension_numbers<[1], [0], [0], [1], [0, 0, 1, 1], [], []>} : vector<2x32xf32>, vector<32x128xf32>, vector<2x128xf32> -> vector<2x128xf32>
    %211 = arith.addf %209, %210 : vector<2x128xf32>
    %212 = vector.extract_strided_slice %211 {offsets = [0, 0], sizes = [2, 96], strides = [1, 1]} : vector<2x128xf32> to vector<2x96xf32>
    %213 = arith.negf %212 : vector<2x96xf32>
    %214 = math.exp %213 : vector<2x96xf32>
    %cst_49 = arith.constant 1.000000e+00 : f32
    %215 = vector.broadcast %cst_49 : f32 to vector<2x96xf32>
    %216 = arith.addf %215, %214 : vector<2x96xf32>
    %217 = arith.divf %215, %216 : vector<2x96xf32>
    %218 = vector.extract_strided_slice %211 {offsets = [0, 96], sizes = [2, 32], strides = [1, 1]} : vector<2x128xf32> to vector<2x32xf32>
    %219 = math.tanh %218 : vector<2x32xf32>
    %220 = vector.extract_strided_slice %217 {offsets = [0, 0], sizes = [2, 32], strides = [1, 1]} : vector<2x96xf32> to vector<2x32xf32>
    %221 = vector.extract_strided_slice %217 {offsets = [0, 32], sizes = [2, 32], strides = [1, 1]} : vector<2x96xf32> to vector<2x32xf32>
    %222 = vector.extract_strided_slice %217 {offsets = [0, 64], sizes = [2, 32], strides = [1, 1]} : vector<2x96xf32> to vector<2x32xf32>
    %223 = arith.mulf %221, %202 : vector<2x32xf32>
    %224 = arith.mulf %220, %219 : vector<2x32xf32>
    %225 = arith.addf %223, %224 : vector<2x32xf32>
    %226 = math.tanh %225 : vector<2x32xf32>
    %227 = arith.mulf %222, %226 : vector<2x32xf32>
    %228 = vector.shape_cast %208 : vector<2x1xi1> to vector<2x1xi1>
    %229 = vector.broadcast %228 : vector<2x1xi1> to vector<2x32xi1>
    %230 = arith.select %229, %227, %205 : vector<2x32xi1>, vector<2x32xf32>
    %c14_50 = arith.constant 14 : index
    %c0_51 = arith.constant 0 : index
    %231 = vector.load %arg8[%c14_50, %c0_51] : memref<16x32xf32, #tpu.memory_space<vmem>>, vector<2x32xf32>
    tpu.vector_store %arg8[%c14_50, %c0_51], %230 {strides = array<i32>} : memref<16x32xf32, #tpu.memory_space<vmem>>, vector<2x32xf32>,
    %c0_52 = arith.constant 0 : index
    %c0_53 = arith.constant 0 : index
    %232 = vector.load %arg4[%c0_52, %c0_53] : memref<65x128xf32, #tpu.memory_space<vmem>>, vector<32x128xf32>
    %c32 = arith.constant 32 : index
    %c0_54 = arith.constant 0 : index
    %233 = vector.load %arg4[%c32, %c0_54] : memref<65x128xf32, #tpu.memory_space<vmem>>, vector<32x128xf32>
    %c64 = arith.constant 64 : index
    %c0_55 = arith.constant 0 : index
    %234 = vector.load %arg4[%c64, %c0_55] : memref<65x128xf32, #tpu.memory_space<vmem>>, vector<1x128xf32>
    %c0_56 = arith.constant 0 : index
    %c0_57 = arith.constant 0 : index
    %235 = vector.load %arg8[%c0_56, %c0_57] : memref<16x32xf32, #tpu.memory_space<vmem>>, vector<16x32xf32>
    %cst_58 = arith.constant dense<0.000000e+00> : vector<16x128xf32>
    %236 = tpu.matmul %235, %232, %cst_58 {dimension_numbers = #tpu.dot_dimension_numbers<[1], [0], [0], [1], [0, 0, 1, 1], [], []>} : vector<16x32xf32>, vector<32x128xf32>, vector<16x128xf32> -> vector<16x128xf32>
    %237 = vector.broadcast %234 : vector<1x128xf32> to vector<16x128xf32>
    %238 = arith.addf %236, %237 : vector<16x128xf32>
    %c0_59 = arith.constant 0 : index
    %c0_60 = arith.constant 0 : index
    %239 = vector.load %arg9[%c0_59, %c0_60] : memref<16x128xf32, #tpu.memory_space<vmem>>, vector<16x128xf32>
    tpu.vector_store %arg9[%c0_59, %c0_60], %238 {strides = array<i32>} : memref<16x128xf32, #tpu.memory_space<vmem>>, vector<16x128xf32>,
    %cst_61 = arith.constant 0.000000e+00 : f32
    %240 = vector.broadcast %cst_61 : f32 to vector<2x32xf32>
    %cst_62 = arith.constant 0.000000e+00 : f32
    %241 = vector.broadcast %cst_62 : f32 to vector<2x32xf32>
    %c0_i32_63 = arith.constant 0 : i32
    %242 = vector.broadcast %c0_i32_63 : i32 to vector<2x1xi32>
    %243 = arith.cmpi sgt, %0, %242 : vector<2x1xi32>
    %c0_64 = arith.constant 0 : index
    %c0_65 = arith.constant 0 : index
    %244 = vector.load %arg9[%c0_64, %c0_65] : memref<16x128xf32, #tpu.memory_space<vmem>>, vector<2x128xf32>
    %cst_66 = arith.constant dense<0.000000e+00> : vector<2x128xf32>
    %245 = tpu.matmul %240, %233, %cst_66 {dimension_numbers = #tpu.dot_dimension_numbers<[1], [0], [0], [1], [0, 0, 1, 1], [], []>} : vector<2x32xf32>, vector<32x128xf32>, vector<2x128xf32> -> vector<2x128xf32>
    %246 = arith.addf %244, %245 : vector<2x128xf32>
    %247 = vector.extract_strided_slice %246 {offsets = [0, 0], sizes = [2, 96], strides = [1, 1]} : vector<2x128xf32> to vector<2x96xf32>
    %248 = arith.negf %247 : vector<2x96xf32>
    %249 = math.exp %248 : vector<2x96xf32>
    %cst_67 = arith.constant 1.000000e+00 : f32
    %250 = vector.broadcast %cst_67 : f32 to vector<2x96xf32>
    %251 = arith.addf %250, %249 : vector<2x96xf32>
    %252 = arith.divf %250, %251 : vector<2x96xf32>
    %253 = vector.extract_strided_slice %246 {offsets = [0, 96], sizes = [2, 32], strides = [1, 1]} : vector<2x128xf32> to vector<2x32xf32>
    %254 = math.tanh %253 : vector<2x32xf32>
    %255 = vector.extract_strided_slice %252 {offsets = [0, 0], sizes = [2, 32], strides = [1, 1]} : vector<2x96xf32> to vector<2x32xf32>
    %256 = vector.extract_strided_slice %252 {offsets = [0, 32], sizes = [2, 32], strides = [1, 1]} : vector<2x96xf32> to vector<2x32xf32>
    %257 = vector.extract_strided_slice %252 {offsets = [0, 64], sizes = [2, 32], strides = [1, 1]} : vector<2x96xf32> to vector<2x32xf32>
    %258 = arith.mulf %256, %241 : vector<2x32xf32>
    %259 = arith.mulf %255, %254 : vector<2x32xf32>
    %260 = arith.addf %258, %259 : vector<2x32xf32>
    %261 = math.tanh %260 : vector<2x32xf32>
    %262 = arith.mulf %257, %261 : vector<2x32xf32>
    %263 = vector.shape_cast %243 : vector<2x1xi1> to vector<2x1xi1>
    %264 = vector.broadcast %263 : vector<2x1xi1> to vector<2x32xi1>
    %265 = arith.select %264, %260, %241 : vector<2x32xi1>, vector<2x32xf32>
    %266 = vector.shape_cast %243 : vector<2x1xi1> to vector<2x1xi1>
    %267 = vector.broadcast %266 : vector<2x1xi1> to vector<2x32xi1>
    %268 = arith.select %267, %262, %240 : vector<2x32xi1>, vector<2x32xf32>
    %cst_68 = arith.constant 0.000000e+00 : f32
    %269 = vector.shape_cast %243 : vector<2x1xi1> to vector<2x1xi1>
    %270 = vector.broadcast %269 : vector<2x1xi1> to vector<2x32xi1>
    %271 = vector.broadcast %cst_68 : f32 to vector<2x32xf32>
    %272 = arith.select %270, %268, %271 : vector<2x32xi1>, vector<2x32xf32>
    %c0_69 = arith.constant 0 : index
    %c0_70 = arith.constant 0 : index
    %273 = vector.load %arg8[%c0_69, %c0_70] : memref<16x32xf32, #tpu.memory_space<vmem>>, vector<2x32xf32>
    tpu.vector_store %arg8[%c0_69, %c0_70], %272 {strides = array<i32>} : memref<16x32xf32, #tpu.memory_space<vmem>>, vector<2x32xf32>,
    %c1_i32_71 = arith.constant 1 : i32
    %274 = vector.broadcast %c1_i32_71 : i32 to vector<2x1xi32>
    %275 = arith.cmpi sgt, %0, %274 : vector<2x1xi32>
    %c2_72 = arith.constant 2 : index
    %c0_73 = arith.constant 0 : index
    %276 = vector.load %arg9[%c2_72, %c0_73] : memref<16x128xf32, #tpu.memory_space<vmem>>, vector<2x128xf32>
    %cst_74 = arith.constant dense<0.000000e+00> : vector<2x128xf32>
    %277 = tpu.matmul %268, %233, %cst_74 {dimension_numbers = #tpu.dot_dimension_numbers<[1], [0], [0], [1], [0, 0, 1, 1], [], []>} : vector<2x32xf32>, vector<32x128xf32>, vector<2x128xf32> -> vector<2x128xf32>
    %278 = arith.addf %276, %277 : vector<2x128xf32>
    %279 = vector.extract_strided_slice %278 {offsets = [0, 0], sizes = [2, 96], strides = [1, 1]} : vector<2x128xf32> to vector<2x96xf32>
    %280 = arith.negf %279 : vector<2x96xf32>
    %281 = math.exp %280 : vector<2x96xf32>
    %cst_75 = arith.constant 1.000000e+00 : f32
    %282 = vector.broadcast %cst_75 : f32 to vector<2x96xf32>
    %283 = arith.addf %282, %281 : vector<2x96xf32>
    %284 = arith.divf %282, %283 : vector<2x96xf32>
    %285 = vector.extract_strided_slice %278 {offsets = [0, 96], sizes = [2, 32], strides = [1, 1]} : vector<2x128xf32> to vector<2x32xf32>
    %286 = math.tanh %285 : vector<2x32xf32>
    %287 = vector.extract_strided_slice %284 {offsets = [0, 0], sizes = [2, 32], strides = [1, 1]} : vector<2x96xf32> to vector<2x32xf32>
    %288 = vector.extract_strided_slice %284 {offsets = [0, 32], sizes = [2, 32], strides = [1, 1]} : vector<2x96xf32> to vector<2x32xf32>
    %289 = vector.extract_strided_slice %284 {offsets = [0, 64], sizes = [2, 32], strides = [1, 1]} : vector<2x96xf32> to vector<2x32xf32>
    %290 = arith.mulf %288, %265 : vector<2x32xf32>
    %291 = arith.mulf %287, %286 : vector<2x32xf32>
    %292 = arith.addf %290, %291 : vector<2x32xf32>
    %293 = math.tanh %292 : vector<2x32xf32>
    %294 = arith.mulf %289, %293 : vector<2x32xf32>
    %295 = vector.shape_cast %275 : vector<2x1xi1> to vector<2x1xi1>
    %296 = vector.broadcast %295 : vector<2x1xi1> to vector<2x32xi1>
    %297 = arith.select %296, %292, %265 : vector<2x32xi1>, vector<2x32xf32>
    %298 = vector.shape_cast %275 : vector<2x1xi1> to vector<2x1xi1>
    %299 = vector.broadcast %298 : vector<2x1xi1> to vector<2x32xi1>
    %300 = arith.select %299, %294, %268 : vector<2x32xi1>, vector<2x32xf32>
    %cst_76 = arith.constant 0.000000e+00 : f32
    %301 = vector.shape_cast %275 : vector<2x1xi1> to vector<2x1xi1>
    %302 = vector.broadcast %301 : vector<2x1xi1> to vector<2x32xi1>
    %303 = vector.broadcast %cst_76 : f32 to vector<2x32xf32>
    %304 = arith.select %302, %300, %303 : vector<2x32xi1>, vector<2x32xf32>
    %c2_77 = arith.constant 2 : index
    %c0_78 = arith.constant 0 : index
    %305 = vector.load %arg8[%c2_77, %c0_78] : memref<16x32xf32, #tpu.memory_space<vmem>>, vector<2x32xf32>
    tpu.vector_store %arg8[%c2_77, %c0_78], %304 {strides = array<i32>} : memref<16x32xf32, #tpu.memory_space<vmem>>, vector<2x32xf32>,
    %c2_i32_79 = arith.constant 2 : i32
    %306 = vector.broadcast %c2_i32_79 : i32 to vector<2x1xi32>
    %307 = arith.cmpi sgt, %0, %306 : vector<2x1xi32>
    %c4_80 = arith.constant 4 : index
    %c0_81 = arith.constant 0 : index
    %308 = vector.load %arg9[%c4_80, %c0_81] : memref<16x128xf32, #tpu.memory_space<vmem>>, vector<2x128xf32>
    %cst_82 = arith.constant dense<0.000000e+00> : vector<2x128xf32>
    %309 = tpu.matmul %300, %233, %cst_82 {dimension_numbers = #tpu.dot_dimension_numbers<[1], [0], [0], [1], [0, 0, 1, 1], [], []>} : vector<2x32xf32>, vector<32x128xf32>, vector<2x128xf32> -> vector<2x128xf32>
    %310 = arith.addf %308, %309 : vector<2x128xf32>
    %311 = vector.extract_strided_slice %310 {offsets = [0, 0], sizes = [2, 96], strides = [1, 1]} : vector<2x128xf32> to vector<2x96xf32>
    %312 = arith.negf %311 : vector<2x96xf32>
    %313 = math.exp %312 : vector<2x96xf32>
    %cst_83 = arith.constant 1.000000e+00 : f32
    %314 = vector.broadcast %cst_83 : f32 to vector<2x96xf32>
    %315 = arith.addf %314, %313 : vector<2x96xf32>
    %316 = arith.divf %314, %315 : vector<2x96xf32>
    %317 = vector.extract_strided_slice %310 {offsets = [0, 96], sizes = [2, 32], strides = [1, 1]} : vector<2x128xf32> to vector<2x32xf32>
    %318 = math.tanh %317 : vector<2x32xf32>
    %319 = vector.extract_strided_slice %316 {offsets = [0, 0], sizes = [2, 32], strides = [1, 1]} : vector<2x96xf32> to vector<2x32xf32>
    %320 = vector.extract_strided_slice %316 {offsets = [0, 32], sizes = [2, 32], strides = [1, 1]} : vector<2x96xf32> to vector<2x32xf32>
    %321 = vector.extract_strided_slice %316 {offsets = [0, 64], sizes = [2, 32], strides = [1, 1]} : vector<2x96xf32> to vector<2x32xf32>
    %322 = arith.mulf %320, %297 : vector<2x32xf32>
    %323 = arith.mulf %319, %318 : vector<2x32xf32>
    %324 = arith.addf %322, %323 : vector<2x32xf32>
    %325 = math.tanh %324 : vector<2x32xf32>
    %326 = arith.mulf %321, %325 : vector<2x32xf32>
    %327 = vector.shape_cast %307 : vector<2x1xi1> to vector<2x1xi1>
    %328 = vector.broadcast %327 : vector<2x1xi1> to vector<2x32xi1>
    %329 = arith.select %328, %324, %297 : vector<2x32xi1>, vector<2x32xf32>
    %330 = vector.shape_cast %307 : vector<2x1xi1> to vector<2x1xi1>
    %331 = vector.broadcast %330 : vector<2x1xi1> to vector<2x32xi1>
    %332 = arith.select %331, %326, %300 : vector<2x32xi1>, vector<2x32xf32>
    %cst_84 = arith.constant 0.000000e+00 : f32
    %333 = vector.shape_cast %307 : vector<2x1xi1> to vector<2x1xi1>
    %334 = vector.broadcast %333 : vector<2x1xi1> to vector<2x32xi1>
    %335 = vector.broadcast %cst_84 : f32 to vector<2x32xf32>
    %336 = arith.select %334, %332, %335 : vector<2x32xi1>, vector<2x32xf32>
    %c4_85 = arith.constant 4 : index
    %c0_86 = arith.constant 0 : index
    %337 = vector.load %arg8[%c4_85, %c0_86] : memref<16x32xf32, #tpu.memory_space<vmem>>, vector<2x32xf32>
    tpu.vector_store %arg8[%c4_85, %c0_86], %336 {strides = array<i32>} : memref<16x32xf32, #tpu.memory_space<vmem>>, vector<2x32xf32>,
    %c3_i32_87 = arith.constant 3 : i32
    %338 = vector.broadcast %c3_i32_87 : i32 to vector<2x1xi32>
    %339 = arith.cmpi sgt, %0, %338 : vector<2x1xi32>
    %c6_88 = arith.constant 6 : index
    %c0_89 = arith.constant 0 : index
    %340 = vector.load %arg9[%c6_88, %c0_89] : memref<16x128xf32, #tpu.memory_space<vmem>>, vector<2x128xf32>
    %cst_90 = arith.constant dense<0.000000e+00> : vector<2x128xf32>
    %341 = tpu.matmul %332, %233, %cst_90 {dimension_numbers = #tpu.dot_dimension_numbers<[1], [0], [0], [1], [0, 0, 1, 1], [], []>} : vector<2x32xf32>, vector<32x128xf32>, vector<2x128xf32> -> vector<2x128xf32>
    %342 = arith.addf %340, %341 : vector<2x128xf32>
    %343 = vector.extract_strided_slice %342 {offsets = [0, 0], sizes = [2, 96], strides = [1, 1]} : vector<2x128xf32> to vector<2x96xf32>
    %344 = arith.negf %343 : vector<2x96xf32>
    %345 = math.exp %344 : vector<2x96xf32>
    %cst_91 = arith.constant 1.000000e+00 : f32
    %346 = vector.broadcast %cst_91 : f32 to vector<2x96xf32>
    %347 = arith.addf %346, %345 : vector<2x96xf32>
    %348 = arith.divf %346, %347 : vector<2x96xf32>
    %349 = vector.extract_strided_slice %342 {offsets = [0, 96], sizes = [2, 32], strides = [1, 1]} : vector<2x128xf32> to vector<2x32xf32>
    %350 = math.tanh %349 : vector<2x32xf32>
    %351 = vector.extract_strided_slice %348 {offsets = [0, 0], sizes = [2, 32], strides = [1, 1]} : vector<2x96xf32> to vector<2x32xf32>
    %352 = vector.extract_strided_slice %348 {offsets = [0, 32], sizes = [2, 32], strides = [1, 1]} : vector<2x96xf32> to vector<2x32xf32>
    %353 = vector.extract_strided_slice %348 {offsets = [0, 64], sizes = [2, 32], strides = [1, 1]} : vector<2x96xf32> to vector<2x32xf32>
    %354 = arith.mulf %352, %329 : vector<2x32xf32>
    %355 = arith.mulf %351, %350 : vector<2x32xf32>
    %356 = arith.addf %354, %355 : vector<2x32xf32>
    %357 = math.tanh %356 : vector<2x32xf32>
    %358 = arith.mulf %353, %357 : vector<2x32xf32>
    %359 = vector.shape_cast %339 : vector<2x1xi1> to vector<2x1xi1>
    %360 = vector.broadcast %359 : vector<2x1xi1> to vector<2x32xi1>
    %361 = arith.select %360, %356, %329 : vector<2x32xi1>, vector<2x32xf32>
    %362 = vector.shape_cast %339 : vector<2x1xi1> to vector<2x1xi1>
    %363 = vector.broadcast %362 : vector<2x1xi1> to vector<2x32xi1>
    %364 = arith.select %363, %358, %332 : vector<2x32xi1>, vector<2x32xf32>
    %cst_92 = arith.constant 0.000000e+00 : f32
    %365 = vector.shape_cast %339 : vector<2x1xi1> to vector<2x1xi1>
    %366 = vector.broadcast %365 : vector<2x1xi1> to vector<2x32xi1>
    %367 = vector.broadcast %cst_92 : f32 to vector<2x32xf32>
    %368 = arith.select %366, %364, %367 : vector<2x32xi1>, vector<2x32xf32>
    %c6_93 = arith.constant 6 : index
    %c0_94 = arith.constant 0 : index
    %369 = vector.load %arg8[%c6_93, %c0_94] : memref<16x32xf32, #tpu.memory_space<vmem>>, vector<2x32xf32>
    tpu.vector_store %arg8[%c6_93, %c0_94], %368 {strides = array<i32>} : memref<16x32xf32, #tpu.memory_space<vmem>>, vector<2x32xf32>,
    %c4_i32_95 = arith.constant 4 : i32
    %370 = vector.broadcast %c4_i32_95 : i32 to vector<2x1xi32>
    %371 = arith.cmpi sgt, %0, %370 : vector<2x1xi32>
    %c8_96 = arith.constant 8 : index
    %c0_97 = arith.constant 0 : index
    %372 = vector.load %arg9[%c8_96, %c0_97] : memref<16x128xf32, #tpu.memory_space<vmem>>, vector<2x128xf32>
    %cst_98 = arith.constant dense<0.000000e+00> : vector<2x128xf32>
    %373 = tpu.matmul %364, %233, %cst_98 {dimension_numbers = #tpu.dot_dimension_numbers<[1], [0], [0], [1], [0, 0, 1, 1], [], []>} : vector<2x32xf32>, vector<32x128xf32>, vector<2x128xf32> -> vector<2x128xf32>
    %374 = arith.addf %372, %373 : vector<2x128xf32>
    %375 = vector.extract_strided_slice %374 {offsets = [0, 0], sizes = [2, 96], strides = [1, 1]} : vector<2x128xf32> to vector<2x96xf32>
    %376 = arith.negf %375 : vector<2x96xf32>
    %377 = math.exp %376 : vector<2x96xf32>
    %cst_99 = arith.constant 1.000000e+00 : f32
    %378 = vector.broadcast %cst_99 : f32 to vector<2x96xf32>
    %379 = arith.addf %378, %377 : vector<2x96xf32>
    %380 = arith.divf %378, %379 : vector<2x96xf32>
    %381 = vector.extract_strided_slice %374 {offsets = [0, 96], sizes = [2, 32], strides = [1, 1]} : vector<2x128xf32> to vector<2x32xf32>
    %382 = math.tanh %381 : vector<2x32xf32>
    %383 = vector.extract_strided_slice %380 {offsets = [0, 0], sizes = [2, 32], strides = [1, 1]} : vector<2x96xf32> to vector<2x32xf32>
    %384 = vector.extract_strided_slice %380 {offsets = [0, 32], sizes = [2, 32], strides = [1, 1]} : vector<2x96xf32> to vector<2x32xf32>
    %385 = vector.extract_strided_slice %380 {offsets = [0, 64], sizes = [2, 32], strides = [1, 1]} : vector<2x96xf32> to vector<2x32xf32>
    %386 = arith.mulf %384, %361 : vector<2x32xf32>
    %387 = arith.mulf %383, %382 : vector<2x32xf32>
    %388 = arith.addf %386, %387 : vector<2x32xf32>
    %389 = math.tanh %388 : vector<2x32xf32>
    %390 = arith.mulf %385, %389 : vector<2x32xf32>
    %391 = vector.shape_cast %371 : vector<2x1xi1> to vector<2x1xi1>
    %392 = vector.broadcast %391 : vector<2x1xi1> to vector<2x32xi1>
    %393 = arith.select %392, %388, %361 : vector<2x32xi1>, vector<2x32xf32>
    %394 = vector.shape_cast %371 : vector<2x1xi1> to vector<2x1xi1>
    %395 = vector.broadcast %394 : vector<2x1xi1> to vector<2x32xi1>
    %396 = arith.select %395, %390, %364 : vector<2x32xi1>, vector<2x32xf32>
    %cst_100 = arith.constant 0.000000e+00 : f32
    %397 = vector.shape_cast %371 : vector<2x1xi1> to vector<2x1xi1>
    %398 = vector.broadcast %397 : vector<2x1xi1> to vector<2x32xi1>
    %399 = vector.broadcast %cst_100 : f32 to vector<2x32xf32>
    %400 = arith.select %398, %396, %399 : vector<2x32xi1>, vector<2x32xf32>
    %c8_101 = arith.constant 8 : index
    %c0_102 = arith.constant 0 : index
    %401 = vector.load %arg8[%c8_101, %c0_102] : memref<16x32xf32, #tpu.memory_space<vmem>>, vector<2x32xf32>
    tpu.vector_store %arg8[%c8_101, %c0_102], %400 {strides = array<i32>} : memref<16x32xf32, #tpu.memory_space<vmem>>, vector<2x32xf32>,
    %c5_i32_103 = arith.constant 5 : i32
    %402 = vector.broadcast %c5_i32_103 : i32 to vector<2x1xi32>
    %403 = arith.cmpi sgt, %0, %402 : vector<2x1xi32>
    %c10_104 = arith.constant 10 : index
    %c0_105 = arith.constant 0 : index
    %404 = vector.load %arg9[%c10_104, %c0_105] : memref<16x128xf32, #tpu.memory_space<vmem>>, vector<2x128xf32>
    %cst_106 = arith.constant dense<0.000000e+00> : vector<2x128xf32>
    %405 = tpu.matmul %396, %233, %cst_106 {dimension_numbers = #tpu.dot_dimension_numbers<[1], [0], [0], [1], [0, 0, 1, 1], [], []>} : vector<2x32xf32>, vector<32x128xf32>, vector<2x128xf32> -> vector<2x128xf32>
    %406 = arith.addf %404, %405 : vector<2x128xf32>
    %407 = vector.extract_strided_slice %406 {offsets = [0, 0], sizes = [2, 96], strides = [1, 1]} : vector<2x128xf32> to vector<2x96xf32>
    %408 = arith.negf %407 : vector<2x96xf32>
    %409 = math.exp %408 : vector<2x96xf32>
    %cst_107 = arith.constant 1.000000e+00 : f32
    %410 = vector.broadcast %cst_107 : f32 to vector<2x96xf32>
    %411 = arith.addf %410, %409 : vector<2x96xf32>
    %412 = arith.divf %410, %411 : vector<2x96xf32>
    %413 = vector.extract_strided_slice %406 {offsets = [0, 96], sizes = [2, 32], strides = [1, 1]} : vector<2x128xf32> to vector<2x32xf32>
    %414 = math.tanh %413 : vector<2x32xf32>
    %415 = vector.extract_strided_slice %412 {offsets = [0, 0], sizes = [2, 32], strides = [1, 1]} : vector<2x96xf32> to vector<2x32xf32>
    %416 = vector.extract_strided_slice %412 {offsets = [0, 32], sizes = [2, 32], strides = [1, 1]} : vector<2x96xf32> to vector<2x32xf32>
    %417 = vector.extract_strided_slice %412 {offsets = [0, 64], sizes = [2, 32], strides = [1, 1]} : vector<2x96xf32> to vector<2x32xf32>
    %418 = arith.mulf %416, %393 : vector<2x32xf32>
    %419 = arith.mulf %415, %414 : vector<2x32xf32>
    %420 = arith.addf %418, %419 : vector<2x32xf32>
    %421 = math.tanh %420 : vector<2x32xf32>
    %422 = arith.mulf %417, %421 : vector<2x32xf32>
    %423 = vector.shape_cast %403 : vector<2x1xi1> to vector<2x1xi1>
    %424 = vector.broadcast %423 : vector<2x1xi1> to vector<2x32xi1>
    %425 = arith.select %424, %420, %393 : vector<2x32xi1>, vector<2x32xf32>
    %426 = vector.shape_cast %403 : vector<2x1xi1> to vector<2x1xi1>
    %427 = vector.broadcast %426 : vector<2x1xi1> to vector<2x32xi1>
    %428 = arith.select %427, %422, %396 : vector<2x32xi1>, vector<2x32xf32>
    %cst_108 = arith.constant 0.000000e+00 : f32
    %429 = vector.shape_cast %403 : vector<2x1xi1> to vector<2x1xi1>
    %430 = vector.broadcast %429 : vector<2x1xi1> to vector<2x32xi1>
    %431 = vector.broadcast %cst_108 : f32 to vector<2x32xf32>
    %432 = arith.select %430, %428, %431 : vector<2x32xi1>, vector<2x32xf32>
    %c10_109 = arith.constant 10 : index
    %c0_110 = arith.constant 0 : index
    %433 = vector.load %arg8[%c10_109, %c0_110] : memref<16x32xf32, #tpu.memory_space<vmem>>, vector<2x32xf32>
    tpu.vector_store %arg8[%c10_109, %c0_110], %432 {strides = array<i32>} : memref<16x32xf32, #tpu.memory_space<vmem>>, vector<2x32xf32>,
    %c6_i32_111 = arith.constant 6 : i32
    %434 = vector.broadcast %c6_i32_111 : i32 to vector<2x1xi32>
    %435 = arith.cmpi sgt, %0, %434 : vector<2x1xi32>
    %c12_112 = arith.constant 12 : index
    %c0_113 = arith.constant 0 : index
    %436 = vector.load %arg9[%c12_112, %c0_113] : memref<16x128xf32, #tpu.memory_space<vmem>>, vector<2x128xf32>
    %cst_114 = arith.constant dense<0.000000e+00> : vector<2x128xf32>
    %437 = tpu.matmul %428, %233, %cst_114 {dimension_numbers = #tpu.dot_dimension_numbers<[1], [0], [0], [1], [0, 0, 1, 1], [], []>} : vector<2x32xf32>, vector<32x128xf32>, vector<2x128xf32> -> vector<2x128xf32>
    %438 = arith.addf %436, %437 : vector<2x128xf32>
    %439 = vector.extract_strided_slice %438 {offsets = [0, 0], sizes = [2, 96], strides = [1, 1]} : vector<2x128xf32> to vector<2x96xf32>
    %440 = arith.negf %439 : vector<2x96xf32>
    %441 = math.exp %440 : vector<2x96xf32>
    %cst_115 = arith.constant 1.000000e+00 : f32
    %442 = vector.broadcast %cst_115 : f32 to vector<2x96xf32>
    %443 = arith.addf %442, %441 : vector<2x96xf32>
    %444 = arith.divf %442, %443 : vector<2x96xf32>
    %445 = vector.extract_strided_slice %438 {offsets = [0, 96], sizes = [2, 32], strides = [1, 1]} : vector<2x128xf32> to vector<2x32xf32>
    %446 = math.tanh %445 : vector<2x32xf32>
    %447 = vector.extract_strided_slice %444 {offsets = [0, 0], sizes = [2, 32], strides = [1, 1]} : vector<2x96xf32> to vector<2x32xf32>
    %448 = vector.extract_strided_slice %444 {offsets = [0, 32], sizes = [2, 32], strides = [1, 1]} : vector<2x96xf32> to vector<2x32xf32>
    %449 = vector.extract_strided_slice %444 {offsets = [0, 64], sizes = [2, 32], strides = [1, 1]} : vector<2x96xf32> to vector<2x32xf32>
    %450 = arith.mulf %448, %425 : vector<2x32xf32>
    %451 = arith.mulf %447, %446 : vector<2x32xf32>
    %452 = arith.addf %450, %451 : vector<2x32xf32>
    %453 = math.tanh %452 : vector<2x32xf32>
    %454 = arith.mulf %449, %453 : vector<2x32xf32>
    %455 = vector.shape_cast %435 : vector<2x1xi1> to vector<2x1xi1>
    %456 = vector.broadcast %455 : vector<2x1xi1> to vector<2x32xi1>
    %457 = arith.select %456, %452, %425 : vector<2x32xi1>, vector<2x32xf32>
    %458 = vector.shape_cast %435 : vector<2x1xi1> to vector<2x1xi1>
    %459 = vector.broadcast %458 : vector<2x1xi1> to vector<2x32xi1>
    %460 = arith.select %459, %454, %428 : vector<2x32xi1>, vector<2x32xf32>
    %cst_116 = arith.constant 0.000000e+00 : f32
    %461 = vector.shape_cast %435 : vector<2x1xi1> to vector<2x1xi1>
    %462 = vector.broadcast %461 : vector<2x1xi1> to vector<2x32xi1>
    %463 = vector.broadcast %cst_116 : f32 to vector<2x32xf32>
    %464 = arith.select %462, %460, %463 : vector<2x32xi1>, vector<2x32xf32>
    %c12_117 = arith.constant 12 : index
    %c0_118 = arith.constant 0 : index
    %465 = vector.load %arg8[%c12_117, %c0_118] : memref<16x32xf32, #tpu.memory_space<vmem>>, vector<2x32xf32>
    tpu.vector_store %arg8[%c12_117, %c0_118], %464 {strides = array<i32>} : memref<16x32xf32, #tpu.memory_space<vmem>>, vector<2x32xf32>,
    %c7_i32_119 = arith.constant 7 : i32
    %466 = vector.broadcast %c7_i32_119 : i32 to vector<2x1xi32>
    %467 = arith.cmpi sgt, %0, %466 : vector<2x1xi32>
    %c14_120 = arith.constant 14 : index
    %c0_121 = arith.constant 0 : index
    %468 = vector.load %arg9[%c14_120, %c0_121] : memref<16x128xf32, #tpu.memory_space<vmem>>, vector<2x128xf32>
    %cst_122 = arith.constant dense<0.000000e+00> : vector<2x128xf32>
    %469 = tpu.matmul %460, %233, %cst_122 {dimension_numbers = #tpu.dot_dimension_numbers<[1], [0], [0], [1], [0, 0, 1, 1], [], []>} : vector<2x32xf32>, vector<32x128xf32>, vector<2x128xf32> -> vector<2x128xf32>
    %470 = arith.addf %468, %469 : vector<2x128xf32>
    %471 = vector.extract_strided_slice %470 {offsets = [0, 0], sizes = [2, 96], strides = [1, 1]} : vector<2x128xf32> to vector<2x96xf32>
    %472 = arith.negf %471 : vector<2x96xf32>
    %473 = math.exp %472 : vector<2x96xf32>
    %cst_123 = arith.constant 1.000000e+00 : f32
    %474 = vector.broadcast %cst_123 : f32 to vector<2x96xf32>
    %475 = arith.addf %474, %473 : vector<2x96xf32>
    %476 = arith.divf %474, %475 : vector<2x96xf32>
    %477 = vector.extract_strided_slice %470 {offsets = [0, 96], sizes = [2, 32], strides = [1, 1]} : vector<2x128xf32> to vector<2x32xf32>
    %478 = math.tanh %477 : vector<2x32xf32>
    %479 = vector.extract_strided_slice %476 {offsets = [0, 0], sizes = [2, 32], strides = [1, 1]} : vector<2x96xf32> to vector<2x32xf32>
    %480 = vector.extract_strided_slice %476 {offsets = [0, 32], sizes = [2, 32], strides = [1, 1]} : vector<2x96xf32> to vector<2x32xf32>
    %481 = vector.extract_strided_slice %476 {offsets = [0, 64], sizes = [2, 32], strides = [1, 1]} : vector<2x96xf32> to vector<2x32xf32>
    %482 = arith.mulf %480, %457 : vector<2x32xf32>
    %483 = arith.mulf %479, %478 : vector<2x32xf32>
    %484 = arith.addf %482, %483 : vector<2x32xf32>
    %485 = math.tanh %484 : vector<2x32xf32>
    %486 = arith.mulf %481, %485 : vector<2x32xf32>
    %487 = vector.shape_cast %467 : vector<2x1xi1> to vector<2x1xi1>
    %488 = vector.broadcast %487 : vector<2x1xi1> to vector<2x32xi1>
    %489 = arith.select %488, %486, %460 : vector<2x32xi1>, vector<2x32xf32>
    %cst_124 = arith.constant 0.000000e+00 : f32
    %490 = vector.shape_cast %467 : vector<2x1xi1> to vector<2x1xi1>
    %491 = vector.broadcast %490 : vector<2x1xi1> to vector<2x32xi1>
    %492 = vector.broadcast %cst_124 : f32 to vector<2x32xf32>
    %493 = arith.select %491, %489, %492 : vector<2x32xi1>, vector<2x32xf32>
    %c14_125 = arith.constant 14 : index
    %c0_126 = arith.constant 0 : index
    %494 = vector.load %arg8[%c14_125, %c0_126] : memref<16x32xf32, #tpu.memory_space<vmem>>, vector<2x32xf32>
    tpu.vector_store %arg8[%c14_125, %c0_126], %493 {strides = array<i32>} : memref<16x32xf32, #tpu.memory_space<vmem>>, vector<2x32xf32>,
    %c0_127 = arith.constant 0 : index
    %c0_128 = arith.constant 0 : index
    %495 = vector.load %arg8[%c0_127, %c0_128] : memref<16x32xf32, #tpu.memory_space<vmem>>, vector<16x32xf32>
    %c0_129 = arith.constant 0 : index
    %c0_130 = arith.constant 0 : index
    %496 = vector.load %arg1[%c0_129, %c0_130] : memref<16x44xf32, #tpu.memory_space<vmem>>, vector<16x44xf32>
    %c0_131 = arith.constant 0 : index
    %c0_132 = arith.constant 0 : index
    %497 = vector.load %arg5[%c0_131, %c0_132] : memref<79x20xf32, #tpu.memory_space<vmem>>, vector<32x20xf32>
    %c32_133 = arith.constant 32 : index
    %c0_134 = arith.constant 0 : index
    %498 = vector.load %arg5[%c32_133, %c0_134] : memref<79x20xf32, #tpu.memory_space<vmem>>, vector<44x20xf32>
    %c76_135 = arith.constant 76 : index
    %c0_136 = arith.constant 0 : index
    %499 = vector.load %arg5[%c76_135, %c0_136] : memref<79x20xf32, #tpu.memory_space<vmem>>, vector<1x20xf32>
    %c77 = arith.constant 77 : index
    %c0_137 = arith.constant 0 : index
    %500 = vector.load %arg5[%c77, %c0_137] : memref<79x20xf32, #tpu.memory_space<vmem>>, vector<1x20xf32>
    %c78 = arith.constant 78 : index
    %c0_138 = arith.constant 0 : index
    %501 = vector.load %arg5[%c78, %c0_138] : memref<79x20xf32, #tpu.memory_space<vmem>>, vector<1x20xf32>
    %c0_139 = arith.constant 0 : index
    %c0_140 = arith.constant 0 : index
    %502 = vector.load %arg6[%c0_139, %c0_140] : memref<23x10xf32, #tpu.memory_space<vmem>>, vector<20x10xf32>
    %c20 = arith.constant 20 : index
    %c0_141 = arith.constant 0 : index
    %503 = vector.load %arg6[%c20, %c0_141] : memref<23x10xf32, #tpu.memory_space<vmem>>, vector<1x10xf32>
    %c21 = arith.constant 21 : index
    %c0_142 = arith.constant 0 : index
    %504 = vector.load %arg6[%c21, %c0_142] : memref<23x10xf32, #tpu.memory_space<vmem>>, vector<1x10xf32>
    %c22 = arith.constant 22 : index
    %c0_143 = arith.constant 0 : index
    %505 = vector.load %arg6[%c22, %c0_143] : memref<23x10xf32, #tpu.memory_space<vmem>>, vector<1x10xf32>
    %cst_144 = arith.constant dense<0.000000e+00> : vector<16x20xf32>
    %506 = tpu.matmul %495, %497, %cst_144 {dimension_numbers = #tpu.dot_dimension_numbers<[1], [0], [0], [1], [0, 0, 1, 1], [], []>} : vector<16x32xf32>, vector<32x20xf32>, vector<16x20xf32> -> vector<16x20xf32>
    %cst_145 = arith.constant dense<0.000000e+00> : vector<16x20xf32>
    %507 = tpu.matmul %496, %498, %cst_145 {dimension_numbers = #tpu.dot_dimension_numbers<[1], [0], [0], [1], [0, 0, 1, 1], [], []>} : vector<16x44xf32>, vector<44x20xf32>, vector<16x20xf32> -> vector<16x20xf32>
    %508 = arith.addf %506, %507 : vector<16x20xf32>
    %509 = vector.broadcast %499 : vector<1x20xf32> to vector<16x20xf32>
    %510 = arith.addf %508, %509 : vector<16x20xf32>
    %cst_146 = arith.constant 0.000000e+00 : f32
    %511 = vector.broadcast %cst_146 : f32 to vector<16x20xf32>
    %512 = arith.maximumf %510, %511 : vector<16x20xf32>
    %cst_147 = arith.constant dense<0.000000e+00> : vector<20xf32>
    %513 = vector.multi_reduction <add>, %512, %cst_147 [0] : vector<16x20xf32> to vector<20xf32>
    %514 = vector.shape_cast %513 : vector<20xf32> to vector<1x20xf32>
    %cst_148 = arith.constant 1.600000e+01 : f32
    %515 = vector.broadcast %cst_148 : f32 to vector<1x20xf32>
    %516 = arith.divf %514, %515 : vector<1x20xf32>
    %517 = vector.broadcast %516 : vector<1x20xf32> to vector<16x20xf32>
    %518 = arith.subf %512, %517 : vector<16x20xf32>
    %519 = arith.mulf %518, %518 : vector<16x20xf32>
    %cst_149 = arith.constant dense<0.000000e+00> : vector<20xf32>
    %520 = vector.multi_reduction <add>, %519, %cst_149 [0] : vector<16x20xf32> to vector<20xf32>
    %521 = vector.shape_cast %520 : vector<20xf32> to vector<1x20xf32>
    %cst_150 = arith.constant 1.600000e+01 : f32
    %522 = vector.broadcast %cst_150 : f32 to vector<1x20xf32>
    %523 = arith.divf %521, %522 : vector<1x20xf32>
    %524 = vector.broadcast %516 : vector<1x20xf32> to vector<16x20xf32>
    %525 = arith.subf %512, %524 : vector<16x20xf32>
    %cst_151 = arith.constant 9.99999974E-6 : f32
    %526 = vector.broadcast %cst_151 : f32 to vector<1x20xf32>
    %527 = arith.addf %523, %526 : vector<1x20xf32>
    %528 = math.rsqrt %527 : vector<1x20xf32>
    %529 = vector.broadcast %528 : vector<1x20xf32> to vector<16x20xf32>
    %530 = arith.mulf %525, %529 : vector<16x20xf32>
    %531 = vector.broadcast %500 : vector<1x20xf32> to vector<16x20xf32>
    %532 = arith.mulf %530, %531 : vector<16x20xf32>
    %533 = vector.broadcast %501 : vector<1x20xf32> to vector<16x20xf32>
    %534 = arith.addf %532, %533 : vector<16x20xf32>
    %cst_152 = arith.constant dense<0.000000e+00> : vector<16x10xf32>
    %535 = tpu.matmul %534, %502, %cst_152 {dimension_numbers = #tpu.dot_dimension_numbers<[1], [0], [0], [1], [0, 0, 1, 1], [], []>} : vector<16x20xf32>, vector<20x10xf32>, vector<16x10xf32> -> vector<16x10xf32>
    %536 = vector.broadcast %503 : vector<1x10xf32> to vector<16x10xf32>
    %537 = arith.addf %535, %536 : vector<16x10xf32>
    %cst_153 = arith.constant 0.000000e+00 : f32
    %538 = vector.broadcast %cst_153 : f32 to vector<16x10xf32>
    %539 = arith.maximumf %537, %538 : vector<16x10xf32>
    %cst_154 = arith.constant dense<0.000000e+00> : vector<10xf32>
    %540 = vector.multi_reduction <add>, %539, %cst_154 [0] : vector<16x10xf32> to vector<10xf32>
    %541 = vector.shape_cast %540 : vector<10xf32> to vector<1x10xf32>
    %cst_155 = arith.constant 1.600000e+01 : f32
    %542 = vector.broadcast %cst_155 : f32 to vector<1x10xf32>
    %543 = arith.divf %541, %542 : vector<1x10xf32>
    %544 = vector.broadcast %543 : vector<1x10xf32> to vector<16x10xf32>
    %545 = arith.subf %539, %544 : vector<16x10xf32>
    %546 = arith.mulf %545, %545 : vector<16x10xf32>
    %cst_156 = arith.constant dense<0.000000e+00> : vector<10xf32>
    %547 = vector.multi_reduction <add>, %546, %cst_156 [0] : vector<16x10xf32> to vector<10xf32>
    %548 = vector.shape_cast %547 : vector<10xf32> to vector<1x10xf32>
    %cst_157 = arith.constant 1.600000e+01 : f32
    %549 = vector.broadcast %cst_157 : f32 to vector<1x10xf32>
    %550 = arith.divf %548, %549 : vector<1x10xf32>
    %551 = vector.broadcast %543 : vector<1x10xf32> to vector<16x10xf32>
    %552 = arith.subf %539, %551 : vector<16x10xf32>
    %cst_158 = arith.constant 9.99999974E-6 : f32
    %553 = vector.broadcast %cst_158 : f32 to vector<1x10xf32>
    %554 = arith.addf %550, %553 : vector<1x10xf32>
    %555 = math.rsqrt %554 : vector<1x10xf32>
    %556 = vector.broadcast %555 : vector<1x10xf32> to vector<16x10xf32>
    %557 = arith.mulf %552, %556 : vector<16x10xf32>
    %558 = vector.broadcast %504 : vector<1x10xf32> to vector<16x10xf32>
    %559 = arith.mulf %557, %558 : vector<16x10xf32>
    %560 = vector.broadcast %505 : vector<1x10xf32> to vector<16x10xf32>
    %561 = arith.addf %559, %560 : vector<16x10xf32>
    %562 = vector.extract_strided_slice %561 {offsets = [0, 0], sizes = [16, 5], strides = [1, 1]} : vector<16x10xf32> to vector<16x5xf32>
    %563 = vector.extract_strided_slice %561 {offsets = [0, 5], sizes = [16, 5], strides = [1, 1]} : vector<16x10xf32> to vector<16x5xf32>
    %cst_159 = arith.constant dense<0x7F800000> : vector<16xf32>
    %564 = vector.multi_reduction <minimumf>, %562, %cst_159 [1] : vector<16x5xf32> to vector<16xf32>
    %565 = vector.shape_cast %564 : vector<16xf32> to vector<16x1xf32>
    %566 = vector.broadcast %565 : vector<16x1xf32> to vector<16x5xf32>
    %567 = arith.subf %562, %566 : vector<16x5xf32>
    %cst_160 = arith.constant dense<0xFF800000> : vector<16xf32>
    %568 = vector.multi_reduction <maximumf>, %567, %cst_160 [1] : vector<16x5xf32> to vector<16xf32>
    %569 = vector.shape_cast %568 : vector<16xf32> to vector<16x1xf32>
    %570 = vector.broadcast %569 : vector<16x1xf32> to vector<16x5xf32>
    %571 = arith.subf %567, %570 : vector<16x5xf32>
    %572 = math.exp %571 : vector<16x5xf32>
    %cst_161 = arith.constant dense<0.000000e+00> : vector<16xf32>
    %573 = vector.multi_reduction <add>, %572, %cst_161 [1] : vector<16x5xf32> to vector<16xf32>
    %574 = vector.shape_cast %573 : vector<16xf32> to vector<16x1xf32>
    %575 = vector.broadcast %574 : vector<16x1xf32> to vector<16x5xf32>
    %576 = arith.divf %572, %575 : vector<16x5xf32>
    %577 = arith.negf %563 : vector<16x5xf32>
    %578 = math.exp %577 : vector<16x5xf32>
    %cst_162 = arith.constant 1.000000e+00 : f32
    %579 = vector.broadcast %cst_162 : f32 to vector<16x5xf32>
    %580 = arith.addf %579, %578 : vector<16x5xf32>
    %581 = arith.divf %579, %580 : vector<16x5xf32>
    %582 = arith.mulf %576, %581 : vector<16x5xf32>
    %cst_163 = arith.constant dense<0.000000e+00> : vector<16xf32>
    %583 = vector.multi_reduction <add>, %582, %cst_163 [1] : vector<16x5xf32> to vector<16xf32>
    %584 = vector.shape_cast %583 : vector<16xf32> to vector<16x1xf32>
    %c0_164 = arith.constant 0 : index
    %c0_165 = arith.constant 0 : index
    %585 = vector.load %arg7[%c0_164, %c0_165] : memref<16x1xf32, #tpu.memory_space<vmem>>, vector<16x1xf32>
    tpu.vector_store %arg7[%c0_164, %c0_165], %584 {strides = array<i32>} : memref<16x1xf32, #tpu.memory_space<vmem>>, vector<16x1xf32>,
    return
  }
  func.func @transform_0(%arg0: i32) -> (i32, i32) {
    %c0_i32 = arith.constant 0 : i32
    %c0_i32_0 = arith.constant 0 : i32
    %c0_i32_1 = arith.constant 0 : i32
    return %c0_i32, %c0_i32_0 : i32, i32
  }
  func.func @transform_1(%arg0: i32) -> (i32, i32) {
    %c0_i32 = arith.constant 0 : i32
    %c0_i32_0 = arith.constant 0 : i32
    %c0_i32_1 = arith.constant 0 : i32
    return %c0_i32, %c0_i32_0 : i32, i32
  }
  func.func @transform_2(%arg0: i32) -> (i32, i32) {
    %c0_i32 = arith.constant 0 : i32
    %c0_i32_0 = arith.constant 0 : i32
    %c0_i32_1 = arith.constant 0 : i32
    return %c0_i32, %c0_i32_0 : i32, i32
  }
  func.func @transform_3(%arg0: i32) -> (i32, i32) {
    %c0_i32 = arith.constant 0 : i32
    %c0_i32_0 = arith.constant 0 : i32
    %c0_i32_1 = arith.constant 0 : i32
    return %c0_i32, %c0_i32_0 : i32, i32
  }
  func.func @transform_4(%arg0: i32) -> (i32, i32) {
    %c0_i32 = arith.constant 0 : i32
    %c0_i32_0 = arith.constant 0 : i32
    %c0_i32_1 = arith.constant 0 : i32
    return %c0_i32, %c0_i32_0 : i32, i32
  }
  func.func @transform_5(%arg0: i32) -> (i32, i32) {
    %c0_i32 = arith.constant 0 : i32
    %c0_i32_0 = arith.constant 0 : i32
    %c0_i32_1 = arith.constant 0 : i32
    return %c0_i32, %c0_i32_0 : i32, i32
  }
  func.func @transform_6(%arg0: i32) -> (i32, i32) {
    %c0_i32 = arith.constant 0 : i32
    %c0_i32_0 = arith.constant 0 : i32
    %c0_i32_1 = arith.constant 0 : i32
    return %c0_i32, %c0_i32_0 : i32, i32
  }
}

</mosaic_0001>

<llo_original>
// kernel: tpu_custom_call.1
$region0: #{tpu_custom_call.1}
  #allocation0 [shape = 'u32[]', space=smem, size = 0x4, offset = 0x4, fixed_abs, tag = 'smem constant byte address 0x4 - core index']
  #allocation1 [shape = 'u32[144,128]{1,0:T(1,128)}', space=vmem, size = 0x12000, scoped, tag = 'internal scratch']
  #allocation2 [shape = 'f32[16,32]{1,0:T(8,128)}', space=vmem, size = 0x2000, scoped, tag = 'scratch operand']
  #allocation3 [shape = 'f32[16,128]{1,0:T(8,128)}', space=vmem, size = 0x2000, scoped, tag = 'scratch operand']
  %s0 = inlined_call_operand.hbm [shape: f32[16,44], index: 0, kind: input, shape index: {}]
  %s1 = inlined_call_operand.vmem [shape: s32[2,1], index: 1, kind: input, shape index: {}]
  %s2 = inlined_call_operand.vmem [shape: f32[77,128], index: 2, kind: input, shape index: {}]
  %s3 = inlined_call_operand.vmem [shape: f32[65,128], index: 3, kind: input, shape index: {}]
  %s4 = inlined_call_operand.vmem [shape: f32[79,20], index: 4, kind: input, shape index: {}]
  %s5 = inlined_call_operand.vmem [shape: f32[23,10], index: 5, kind: input, shape index: {}]
  %s6 = inlined_call_operand.vmem [shape: f32[16,1], index: 6, kind: output, shape index: {}]
  %s7 = sld [smem:[#allocation0]]
  $region38: #{tpu_custom_call.1} parent=0
    _
  %s9 = ssub.s32 1, %s7
  %s10 = scalar_select 0, %s9, %s7
  $region1: #{tpu_custom_call.1} parent=0
    #allocation4 [shape = 'u8[8192]{0}', space=vmem, size = 0x2000, scoped, tag = 'input window, operand 0, single buffered']
    #allocation5 [shape = 's32[1]{0}', space=sflag, size = 0x4, scoped, tag = 'scoped memory for tpu_custom_call.1']
    %11 = vsyncpa [#allocation5], 0
    // Predicated region
    $region2: #{tpu_custom_call.1} parent=1 // pred_check
      _
    $region3: #{tpu_custom_call.1} parent=1 // pred_check_branch
      %13 = sbr.rel (0) target = $region5
    $region4: #{tpu_custom_call.1} parent=1 // pred_region
      %s15 = ssub.s32 256, 256
      %16 = vsyncadd [#allocation5], %s15
      %s17 = sshll.u32 [#allocation4], 4
      %s18 = int_to_ptr.vmem [resolvable:$true] %s17
      %23 = dma.hbm_to_vmem [thread:$0]  %s0, 256, %s18, [#allocation5], 128, 128, 8
    $region5: #{tpu_custom_call.1} parent=1 // pred_fallthru
      _
    // Predicated region
    $region6: #{tpu_custom_call.1} parent=1 // pred_check
      _
    $region7: #{tpu_custom_call.1} parent=1 // pred_check_branch
      %25 = sbr.rel (0) target = $region9
    $region8: #{tpu_custom_call.1} parent=1 // pred_region
      _
    $region9: #{tpu_custom_call.1} parent=1 // pred_fallthru
      _
    // Predicated region
    $region10: #{tpu_custom_call.1} parent=1 // pred_check
      _
    $region11: #{tpu_custom_call.1} parent=1 // pred_check_branch
      %27 = sbr.rel (0) target = $region13
    $region12: #{tpu_custom_call.1} parent=1 // pred_region
      _
    $region13: #{tpu_custom_call.1} parent=1 // pred_fallthru
      _
    // Predicated region
    $region14: #{tpu_custom_call.1} parent=1 // pred_check
      _
    $region15: #{tpu_custom_call.1} parent=1 // pred_check_branch
      %29 = sbr.rel (0) target = $region17
    $region16: #{tpu_custom_call.1} parent=1 // pred_region
      _
    $region17: #{tpu_custom_call.1} parent=1 // pred_fallthru
      _
    // Predicated region
    $region18: #{tpu_custom_call.1} parent=1 // pred_check
      _
    $region19: #{tpu_custom_call.1} parent=1 // pred_check_branch
      %31 = sbr.rel (0) target = $region21
    $region20: #{tpu_custom_call.1} parent=1 // pred_region
      _
    $region21: #{tpu_custom_call.1} parent=1 // pred_fallthru
      _
    // Predicated region
    $region22: #{tpu_custom_call.1} parent=1 // pred_check
      _
    $region23: #{tpu_custom_call.1} parent=1 // pred_check_branch
      %33 = sbr.rel (0) target = $region25
    $region24: #{tpu_custom_call.1} parent=1 // pred_region
      _
    $region25: #{tpu_custom_call.1} parent=1 // pred_fallthru
      _
    // Predicated region
    $region26: #{tpu_custom_call.1} parent=1 // pred_check
      _
    $region27: #{tpu_custom_call.1} parent=1 // pred_check_branch
      %35 = sbr.rel (0) target = $region29
    $region28: #{tpu_custom_call.1} parent=1 // pred_region
      %36 = dma.done [#allocation5], 256
    $region29: #{tpu_custom_call.1} parent=1 // pred_fallthru
      _
    %v37 = vld [vmem:[%s1] sm:$0x3]
    %v38 = vld [vmem:[%s2] sm:$0xff]
    %v39 = vld [vmem:[%s2 + $0x8] sm:$0xff]
    %v40 = vld [vmem:[%s2 + $0x10] sm:$0xff]
    %v41 = vld [vmem:[%s2 + $0x18] sm:$0xff]
    %v42 = vld [vmem:[%s2 + $0x20] sm:$0xff]
    %v43 = vld [vmem:[%s2 + $0x28] sm:$0xf]
    %v44 = vld [vmem:[%s2 + $0x2c] sm:$0xff]
    %v45 = vld [vmem:[%s2 + $0x34] sm:$0xff]
    %v46 = vld [vmem:[%s2 + $0x3c] sm:$0xff]
    %v47 = vld [vmem:[%s2 + $0x44] sm:$0xff]
    %v48 = vld [vmem:[%s2 + $0x4c] sm:$0x1]
    %v49 = vld [vmem:[#allocation4] sm:$0xff]
    %v50 = vld [vmem:[#allocation4 + $0x8] sm:$0xff]
    %v51 = vlaneseq
    %v52 = vshrl.u32 %v51, 7
    %v53 = vsub.s32 0, %v52
    %v54 = vrot.slane %v48, %v53
    %vm55 = vcmask 359424
    %v57 = vsel %vm55, %v49, 0
    %v60 = vsel %vm55, %v50, 0
    %vm62 = vcmask 1043456
    %v64 = vsel %vm62, %v43, 0
    %66 = vmatprep.subr.mxu0 0.0
    %67 = vmatpush1.msra.mxu0 %v38
    %68 = vmatprep.subr.mxu0 0.0
    %69 = vmatpush1.msra.mxu0 %v39
    %70 = vmatprep.subr.mxu0 0.0
    %71 = vmatpush1.msra.mxu0 %v40
    %72 = vmatprep.subr.mxu0 0.0
    %73 = vmatpush1.msra.mxu0 %v41
    %74 = vmatprep.subr.mxu0 0.0
    %75 = vmatpush1.msra.mxu0 %v42
    %76 = vmatprep.subr.mxu0 0.0
    %77 = vmatpush1.msra.mxu0 %v64
    %78 = vmatprep.subr.mxu0 0.0
    %79 = vmatpush1.msra.mxu0 0.0
    %80 = vmatprep.subr.mxu0 0.0
    %81 = vmatpush1.msra.mxu0 0.0
    %82 = vmatprep.subr.mxu0 0.0
    %83 = vmatpush1.msra.mxu0 0.0
    %84 = vmatprep.subr.mxu0 0.0
    %85 = vmatpush1.msra.mxu0 0.0
    %86 = vmatprep.subr.mxu0 0.0
    %87 = vmatpush1.msra.mxu0 0.0
    %88 = vmatprep.subr.mxu0 0.0
    %89 = vmatpush1.msra.mxu0 0.0
    %90 = vmatprep.subr.mxu0 0.0
    %91 = vmatpush1.msra.mxu0 0.0
    %92 = vmatprep.subr.mxu0 0.0
    %93 = vmatpush1.msra.mxu0 0.0
    %94 = vmatprep.subr.mxu0 0.0
    %95 = vmatpush1.msra.mxu0 0.0
    %96 = vmatprep.subr.mxu0 0.0
    %97 = vmatpush1.msra.mxu0 0.0
    %98 = vmatprep.subr.mxu0 0.0
    %99 = vmatpush1.msra.mxu0 0.0
    %100 = vmatprep.subr.mxu0 0.0
    %101 = vmatpush1.msra.mxu0 0.0
    %102 = vmatprep.subr.mxu0 0.0
    %103 = vmatpush1.msra.mxu0 0.0
    %104 = vmatprep.subr.mxu0 0.0
    %105 = vmatpush1.msra.mxu0 0.0
    %106 = vmatprep.subr.mxu0 0.0
    %107 = vmatpush1.msra.mxu0 0.0
    %108 = vmatprep.subr.mxu0 0.0
    %109 = vmatpush1.msra.mxu0 0.0
    %110 = vmatprep.subr.mxu0 0.0
    %111 = vmatpush1.msra.mxu0 0.0
    %112 = vmatprep.subr.mxu0 0.0
    %113 = vmatpush1.msra.mxu0 0.0
    %114 = vmatprep.subr.mxu0 0.0
    %115 = vmatpush1.msra.mxu0 0.0
    %116 = vmatprep.subr.mxu0 0.0
    %117 = vmatpush1.msra.mxu0 0.0
    %118 = vmatprep.subr.mxu0 0.0
    %119 = vmatpush1.msra.mxu0 0.0
    %120 = vmatprep.subr.mxu0 0.0
    %121 = vmatpush1.msra.mxu0 0.0
    %122 = vmatprep.subr.mxu0 0.0
    %123 = vmatpush1.msra.mxu0 0.0
    %124 = vmatprep.subr.mxu0 0.0
    %125 = vmatpush1.msra.mxu0 0.0
    %126 = vmatprep.subr.mxu0 0.0
    %127 = vmatpush1.msra.mxu0 0.0
    %128 = vmatprep.subr.mxu0 0.0
    %129 = vmatpush1.msra.mxu0 0.0
    %130 = vmatprep.mubr.f32.mxu0 0.0
    %131 = vmatmul.mubr.f32.gmra.mrb[0].mxu0 %v57
    %v132 = vpop.f32.mrb[0].mxu0
    %v133 = vadd.f32 %v54, %v132
    %v134 = vpop.f32.mrb[0].mxu0
    %135 = vmatprep.mubr.f32.mxu0 0.0
    %136 = vmatmul.mubr.f32.gmra.mrb[0].mxu0 %v60
    %v137 = vpop.f32.mrb[0].mxu0
    %v138 = vadd.f32 %v54, %v137
    %v139 = vpop.f32.mrb[0].mxu0
    %140 = vdwg.mxu0
    %141 = vst [vmem:[#allocation3] sm:$0xff] %v133
    %142 = vst [vmem:[#allocation3 + $0x8] sm:$0xff] %v138
    %vm143 = vcmp.gt.s32.totalorder %v37, 0
    %v144 = vld [vmem:[#allocation3] sm:$0x3]
    %vm145 = vcmask 261120
    %v147 = vsel %vm145, 0.0, 0
    %149 = vmatprep.subr.mxu0 0.0
    %150 = vmatpush1.msra.mxu0 %v44
    %151 = vmatprep.subr.mxu0 0.0
    %152 = vmatpush1.msra.mxu0 %v45
    %153 = vmatprep.subr.mxu0 0.0
    %154 = vmatpush1.msra.mxu0 %v46
    %155 = vmatprep.subr.mxu0 0.0
    %156 = vmatpush1.msra.mxu0 %v47
    %157 = vmatprep.subr.mxu0 0.0
    %158 = vmatpush1.msra.mxu0 0.0
    %159 = vmatprep.subr.mxu0 0.0
    %160 = vmatpush1.msra.mxu0 0.0
    %161 = vmatprep.subr.mxu0 0.0
    %162 = vmatpush1.msra.mxu0 0.0
    %163 = vmatprep.subr.mxu0 0.0
    %164 = vmatpush1.msra.mxu0 0.0
    %165 = vmatprep.subr.mxu0 0.0
    %166 = vmatpush1.msra.mxu0 0.0
    %167 = vmatprep.subr.mxu0 0.0
    %168 = vmatpush1.msra.mxu0 0.0
    %169 = vmatprep.subr.mxu0 0.0
    %170 = vmatpush1.msra.mxu0 0.0
    %171 = vmatprep.subr.mxu0 0.0
    %172 = vmatpush1.msra.mxu0 0.0
    %173 = vmatprep.subr.mxu0 0.0
    %174 = vmatpush1.msra.mxu0 0.0
    %175 = vmatprep.subr.mxu0 0.0
    %176 = vmatpush1.msra.mxu0 0.0
    %177 = vmatprep.subr.mxu0 0.0
    %178 = vmatpush1.msra.mxu0 0.0
    %179 = vmatprep.subr.mxu0 0.0
    %180 = vmatpush1.msra.mxu0 0.0
    %181 = vmatprep.subr.mxu0 0.0
    %182 = vmatpush1.msra.mxu0 0.0
    %183 = vmatprep.subr.mxu0 0.0
    %184 = vmatpush1.msra.mxu0 0.0
    %185 = vmatprep.subr.mxu0 0.0
    %186 = vmatpush1.msra.mxu0 0.0
    %187 = vmatprep.subr.mxu0 0.0
    %188 = vmatpush1.msra.mxu0 0.0
    %189 = vmatprep.subr.mxu0 0.0
    %190 = vmatpush1.msra.mxu0 0.0
    %191 = vmatprep.subr.mxu0 0.0
    %192 = vmatpush1.msra.mxu0 0.0
    %193 = vmatprep.subr.mxu0 0.0
    %194 = vmatpush1.msra.mxu0 0.0
    %195 = vmatprep.subr.mxu0 0.0
    %196 = vmatpush1.msra.mxu0 0.0
    %197 = vmatprep.subr.mxu0 0.0
    %198 = vmatpush1.msra.mxu0 0.0
    %199 = vmatprep.subr.mxu0 0.0
    %200 = vmatpush1.msra.mxu0 0.0
    %201 = vmatprep.subr.mxu0 0.0
    %202 = vmatpush1.msra.mxu0 0.0
    %203 = vmatprep.subr.mxu0 0.0
    %204 = vmatpush1.msra.mxu0 0.0
    %205 = vmatprep.subr.mxu0 0.0
    %206 = vmatpush1.msra.mxu0 0.0
    %207 = vmatprep.subr.mxu0 0.0
    %208 = vmatpush1.msra.mxu0 0.0
    %209 = vmatprep.subr.mxu0 0.0
    %210 = vmatpush1.msra.mxu0 0.0
    %211 = vmatprep.subr.mxu0 0.0
    %212 = vmatpush1.msra.mxu0 0.0
    %213 = vmatprep.mubr.f32.mxu0 0.0
    %214 = vmatmul.mubr.f32.gmra.mrb[0].mxu0 %v147
    %v215 = vpop.f32.mrb[0].mxu0
    %v216 = vadd.f32 0.0, %v215
    %v217 = vpop.f32.mrb[0].mxu0
    %218 = vdwg.mxu0
    %v219 = vadd.f32 %v144, %v216
    %v220 = vxor.u32 %v219, 2147483648
    %v221 = vmul.f32 %v220, 1.442695
    %v222 = vpow.pop %v221
    %v223 = vadd.f32 %v222, 1.0
    %v224 = vrcp.pop %v223
    %v225 = vmul.f32 1.0, %v224
    %v226 = vtanh.pop %v219
    %v227 = vmul.f32 %v225, 0.0
    %229 = vrot.lane.b32.xlu0 %v226, 32
    %v230 = vpop.permute.xlu0 %229
    %v232 = vmul.f32 %v225, %v230
    %234 = vrot.lane.b32.xlu0 %v232, 32
    %v235 = vpop.permute.xlu0 %234
    %v237 = vadd.f32 %v227, %v235
    %v238 = vtanh.pop %v237
    %240 = vrot.lane.b32.xlu0 %v238, 32
    %v241 = vpop.permute.xlu0 %240
    %v243 = vmul.f32 %v225, %v241
    %v244 = vsel %vm143, 1, 0
    %245 = vset.pattern.permute.xlu0 0
    %246 = vperm.xlu0 %245, %v244
    %v247 = vpop.permute.xlu0 %246
    %vm248 = vcmp.eq.s32.totalorder %v247, 1
    %v249 = vsel %vm248, %v237, 0.0
    %v250 = vsel %vm248, %v243, 0.0
    %252 = vrot.lane.b32.xlu0 %v250, 64
    %v253 = vpop.permute.xlu0 %252
    %vm255 = vcmask 254976
    %256 = vst.msk [vmem:[#allocation2] sm:$0x3] %vm255, %v253
    %vm257 = vcmp.gt.s32.totalorder %v37, 1
    %v258 = vld [vmem:[#allocation3 + $0x2] sm:$0x3]
    %v259 = vsel %vm145, %v253, 0
    %261 = vmatprep.subr.mxu0 0.0
    %262 = vmatpush1.msra.mxu0 %v44
    %263 = vmatprep.subr.mxu0 0.0
    %264 = vmatpush1.msra.mxu0 %v45
    %265 = vmatprep.subr.mxu0 0.0
    %266 = vmatpush1.msra.mxu0 %v46
    %267 = vmatprep.subr.mxu0 0.0
    %268 = vmatpush1.msra.mxu0 %v47
    %269 = vmatprep.subr.mxu0 0.0
    %270 = vmatpush1.msra.mxu0 0.0
    %271 = vmatprep.subr.mxu0 0.0
    %272 = vmatpush1.msra.mxu0 0.0
    %273 = vmatprep.subr.mxu0 0.0
    %274 = vmatpush1.msra.mxu0 0.0
    %275 = vmatprep.subr.mxu0 0.0
    %276 = vmatpush1.msra.mxu0 0.0
    %277 = vmatprep.subr.mxu0 0.0
    %278 = vmatpush1.msra.mxu0 0.0
    %279 = vmatprep.subr.mxu0 0.0
    %280 = vmatpush1.msra.mxu0 0.0
    %281 = vmatprep.subr.mxu0 0.0
    %282 = vmatpush1.msra.mxu0 0.0
    %283 = vmatprep.subr.mxu0 0.0
    %284 = vmatpush1.msra.mxu0 0.0
    %285 = vmatprep.subr.mxu0 0.0
    %286 = vmatpush1.msra.mxu0 0.0
    %287 = vmatprep.subr.mxu0 0.0
    %288 = vmatpush1.msra.mxu0 0.0
    %289 = vmatprep.subr.mxu0 0.0
    %290 = vmatpush1.msra.mxu0 0.0
    %291 = vmatprep.subr.mxu0 0.0
    %292 = vmatpush1.msra.mxu0 0.0
    %293 = vmatprep.subr.mxu0 0.0
    %294 = vmatpush1.msra.mxu0 0.0
    %295 = vmatprep.subr.mxu0 0.0
    %296 = vmatpush1.msra.mxu0 0.0
    %297 = vmatprep.subr.mxu0 0.0
    %298 = vmatpush1.msra.mxu0 0.0
    %299 = vmatprep.subr.mxu0 0.0
    %300 = vmatpush1.msra.mxu0 0.0
    %301 = vmatprep.subr.mxu0 0.0
    %302 = vmatpush1.msra.mxu0 0.0
    %303 = vmatprep.subr.mxu0 0.0
    %304 = vmatpush1.msra.mxu0 0.0
    %305 = vmatprep.subr.mxu0 0.0
    %306 = vmatpush1.msra.mxu0 0.0
    %307 = vmatprep.subr.mxu0 0.0
    %308 = vmatpush1.msra.mxu0 0.0
    %309 = vmatprep.subr.mxu0 0.0
    %310 = vmatpush1.msra.mxu0 0.0
    %311 = vmatprep.subr.mxu0 0.0
    %312 = vmatpush1.msra.mxu0 0.0
    %313 = vmatprep.subr.mxu0 0.0
    %314 = vmatpush1.msra.mxu0 0.0
    %315 = vmatprep.subr.mxu0 0.0
    %316 = vmatpush1.msra.mxu0 0.0
    %317 = vmatprep.subr.mxu0 0.0
    %318 = vmatpush1.msra.mxu0 0.0
    %319 = vmatprep.subr.mxu0 0.0
    %320 = vmatpush1.msra.mxu0 0.0
    %321 = vmatprep.subr.mxu0 0.0
    %322 = vmatpush1.msra.mxu0 0.0
    %323 = vmatprep.subr.mxu0 0.0
    %324 = vmatpush1.msra.mxu0 0.0
    %325 = vmatprep.mubr.f32.mxu0 0.0
    %326 = vmatmul.mubr.f32.gmra.mrb[0].mxu0 %v259
    %v327 = vpop.f32.mrb[0].mxu0
    %v328 = vadd.f32 0.0, %v327
    %v329 = vpop.f32.mrb[0].mxu0
    %330 = vdwg.mxu0
    %v331 = vadd.f32 %v258, %v328
    %v332 = vxor.u32 %v331, 2147483648
    %v333 = vmul.f32 %v332, 1.442695
    %v334 = vpow.pop %v333
    %v335 = vadd.f32 %v334, 1.0
    %v336 = vrcp.pop %v335
    %v337 = vmul.f32 1.0, %v336
    %v338 = vtanh.pop %v331
    %v339 = vmul.f32 %v337, %v249
    %341 = vrot.lane.b32.xlu0 %v338, 32
    %v342 = vpop.permute.xlu0 %341
    %v344 = vmul.f32 %v337, %v342
    %346 = vrot.lane.b32.xlu0 %v344, 32
    %v347 = vpop.permute.xlu0 %346
    %v349 = vadd.f32 %v339, %v347
    %v350 = vtanh.pop %v349
    %352 = vrot.lane.b32.xlu0 %v350, 32
    %v353 = vpop.permute.xlu0 %352
    %v355 = vmul.f32 %v337, %v353
    %v356 = vsel %vm257, 1, 0
    %357 = vset.pattern.permute.xlu0 0
    %358 = vperm.xlu0 %357, %v356
    %v359 = vpop.permute.xlu0 %358
    %vm360 = vcmp.eq.s32.totalorder %v359, 1
    %v361 = vsel %vm360, %v349, %v249
    %v362 = vsel %vm360, %v355, %v250
    %364 = vrot.lane.b32.xlu0 %v362, 64
    %v365 = vpop.permute.xlu0 %364
    %367 = vst.msk [vmem:[#allocation2 + $0x2] sm:$0x3] %vm255, %v365
    %vm368 = vcmp.gt.s32.totalorder %v37, 2
    %v369 = vld [vmem:[#allocation3 + $0x4] sm:$0x3]
    %v370 = vsel %vm145, %v365, 0
    %372 = vmatprep.subr.mxu0 0.0
    %373 = vmatpush1.msra.mxu0 %v44
    %374 = vmatprep.subr.mxu0 0.0
    %375 = vmatpush1.msra.mxu0 %v45
    %376 = vmatprep.subr.mxu0 0.0
    %377 = vmatpush1.msra.mxu0 %v46
    %378 = vmatprep.subr.mxu0 0.0
    %379 = vmatpush1.msra.mxu0 %v47
    %380 = vmatprep.subr.mxu0 0.0
    %381 = vmatpush1.msra.mxu0 0.0
    %382 = vmatprep.subr.mxu0 0.0
    %383 = vmatpush1.msra.mxu0 0.0
    %384 = vmatprep.subr.mxu0 0.0
    %385 = vmatpush1.msra.mxu0 0.0
    %386 = vmatprep.subr.mxu0 0.0
    %387 = vmatpush1.msra.mxu0 0.0
    %388 = vmatprep.subr.mxu0 0.0
    %389 = vmatpush1.msra.mxu0 0.0
    %390 = vmatprep.subr.mxu0 0.0
    %391 = vmatpush1.msra.mxu0 0.0
    %392 = vmatprep.subr.mxu0 0.0
    %393 = vmatpush1.msra.mxu0 0.0
    %394 = vmatprep.subr.mxu0 0.0
    %395 = vmatpush1.msra.mxu0 0.0
    %396 = vmatprep.subr.mxu0 0.0
    %397 = vmatpush1.msra.mxu0 0.0
    %398 = vmatprep.subr.mxu0 0.0
    %399 = vmatpush1.msra.mxu0 0.0
    %400 = vmatprep.subr.mxu0 0.0
    %401 = vmatpush1.msra.mxu0 0.0
    %402 = vmatprep.subr.mxu0 0.0
    %403 = vmatpush1.msra.mxu0 0.0
    %404 = vmatprep.subr.mxu0 0.0
    %405 = vmatpush1.msra.mxu0 0.0
    %406 = vmatprep.subr.mxu0 0.0
    %407 = vmatpush1.msra.mxu0 0.0
    %408 = vmatprep.subr.mxu0 0.0
    %409 = vmatpush1.msra.mxu0 0.0
    %410 = vmatprep.subr.mxu0 0.0
    %411 = vmatpush1.msra.mxu0 0.0
    %412 = vmatprep.subr.mxu0 0.0
    %413 = vmatpush1.msra.mxu0 0.0
    %414 = vmatprep.subr.mxu0 0.0
    %415 = vmatpush1.msra.mxu0 0.0
    %416 = vmatprep.subr.mxu0 0.0
    %417 = vmatpush1.msra.mxu0 0.0
    %418 = vmatprep.subr.mxu0 0.0
    %419 = vmatpush1.msra.mxu0 0.0
    %420 = vmatprep.subr.mxu0 0.0
    %421 = vmatpush1.msra.mxu0 0.0
    %422 = vmatprep.subr.mxu0 0.0
    %423 = vmatpush1.msra.mxu0 0.0
    %424 = vmatprep.subr.mxu0 0.0
    %425 = vmatpush1.msra.mxu0 0.0
    %426 = vmatprep.subr.mxu0 0.0
    %427 = vmatpush1.msra.mxu0 0.0
    %428 = vmatprep.subr.mxu0 0.0
    %429 = vmatpush1.msra.mxu0 0.0
    %430 = vmatprep.subr.mxu0 0.0
    %431 = vmatpush1.msra.mxu0 0.0
    %432 = vmatprep.subr.mxu0 0.0
    %433 = vmatpush1.msra.mxu0 0.0
    %434 = vmatprep.subr.mxu0 0.0
    %435 = vmatpush1.msra.mxu0 0.0
    %436 = vmatprep.mubr.f32.mxu0 0.0
    %437 = vmatmul.mubr.f32.gmra.mrb[0].mxu0 %v370
    %v438 = vpop.f32.mrb[0].mxu0
    %v439 = vadd.f32 0.0, %v438
    %v440 = vpop.f32.mrb[0].mxu0
    %441 = vdwg.mxu0
    %v442 = vadd.f32 %v369, %v439
    %v443 = vxor.u32 %v442, 2147483648
    %v444 = vmul.f32 %v443, 1.442695
    %v445 = vpow.pop %v444
    %v446 = vadd.f32 %v445, 1.0
    %v447 = vrcp.pop %v446
    %v448 = vmul.f32 1.0, %v447
    %v449 = vtanh.pop %v442
    %v450 = vmul.f32 %v448, %v361
    %452 = vrot.lane.b32.xlu0 %v449, 32
    %v453 = vpop.permute.xlu0 %452
    %v455 = vmul.f32 %v448, %v453
    %457 = vrot.lane.b32.xlu0 %v455, 32
    %v458 = vpop.permute.xlu0 %457
    %v460 = vadd.f32 %v450, %v458
    %v461 = vtanh.pop %v460
    %463 = vrot.lane.b32.xlu0 %v461, 32
    %v464 = vpop.permute.xlu0 %463
    %v466 = vmul.f32 %v448, %v464
    %v467 = vsel %vm368, 1, 0
    %468 = vset.pattern.permute.xlu0 0
    %469 = vperm.xlu0 %468, %v467
    %v470 = vpop.permute.xlu0 %469
    %vm471 = vcmp.eq.s32.totalorder %v470, 1
    %v472 = vsel %vm471, %v460, %v361
    %v473 = vsel %vm471, %v466, %v362
    %475 = vrot.lane.b32.xlu0 %v473, 64
    %v476 = vpop.permute.xlu0 %475
    %478 = vst.msk [vmem:[#allocation2 + $0x4] sm:$0x3] %vm255, %v476
    %vm479 = vcmp.gt.s32.totalorder %v37, 3
    %v480 = vld [vmem:[#allocation3 + $0x6] sm:$0x3]
    %v481 = vsel %vm145, %v476, 0
    %483 = vmatprep.subr.mxu0 0.0
    %484 = vmatpush1.msra.mxu0 %v44
    %485 = vmatprep.subr.mxu0 0.0
    %486 = vmatpush1.msra.mxu0 %v45
    %487 = vmatprep.subr.mxu0 0.0
    %488 = vmatpush1.msra.mxu0 %v46
    %489 = vmatprep.subr.mxu0 0.0
    %490 = vmatpush1.msra.mxu0 %v47
    %491 = vmatprep.subr.mxu0 0.0
    %492 = vmatpush1.msra.mxu0 0.0
    %493 = vmatprep.subr.mxu0 0.0
    %494 = vmatpush1.msra.mxu0 0.0
    %495 = vmatprep.subr.mxu0 0.0
    %496 = vmatpush1.msra.mxu0 0.0
    %497 = vmatprep.subr.mxu0 0.0
    %498 = vmatpush1.msra.mxu0 0.0
    %499 = vmatprep.subr.mxu0 0.0
    %500 = vmatpush1.msra.mxu0 0.0
    %501 = vmatprep.subr.mxu0 0.0
    %502 = vmatpush1.msra.mxu0 0.0
    %503 = vmatprep.subr.mxu0 0.0
    %504 = vmatpush1.msra.mxu0 0.0
    %505 = vmatprep.subr.mxu0 0.0
    %506 = vmatpush1.msra.mxu0 0.0
    %507 = vmatprep.subr.mxu0 0.0
    %508 = vmatpush1.msra.mxu0 0.0
    %509 = vmatprep.subr.mxu0 0.0
    %510 = vmatpush1.msra.mxu0 0.0
    %511 = vmatprep.subr.mxu0 0.0
    %512 = vmatpush1.msra.mxu0 0.0
    %513 = vmatprep.subr.mxu0 0.0
    %514 = vmatpush1.msra.mxu0 0.0
    %515 = vmatprep.subr.mxu0 0.0
    %516 = vmatpush1.msra.mxu0 0.0
    %517 = vmatprep.subr.mxu0 0.0
    %518 = vmatpush1.msra.mxu0 0.0
    %519 = vmatprep.subr.mxu0 0.0
    %520 = vmatpush1.msra.mxu0 0.0
    %521 = vmatprep.subr.mxu0 0.0
    %522 = vmatpush1.msra.mxu0 0.0
    %523 = vmatprep.subr.mxu0 0.0
    %524 = vmatpush1.msra.mxu0 0.0
    %525 = vmatprep.subr.mxu0 0.0
    %526 = vmatpush1.msra.mxu0 0.0
    %527 = vmatprep.subr.mxu0 0.0
    %528 = vmatpush1.msra.mxu0 0.0
    %529 = vmatprep.subr.mxu0 0.0
    %530 = vmatpush1.msra.mxu0 0.0
    %531 = vmatprep.subr.mxu0 0.0
    %532 = vmatpush1.msra.mxu0 0.0
    %533 = vmatprep.subr.mxu0 0.0
    %534 = vmatpush1.msra.mxu0 0.0
    %535 = vmatprep.subr.mxu0 0.0
    %536 = vmatpush1.msra.mxu0 0.0
    %537 = vmatprep.subr.mxu0 0.0
    %538 = vmatpush1.msra.mxu0 0.0
    %539 = vmatprep.subr.mxu0 0.0
    %540 = vmatpush1.msra.mxu0 0.0
    %541 = vmatprep.subr.mxu0 0.0
    %542 = vmatpush1.msra.mxu0 0.0
    %543 = vmatprep.subr.mxu0 0.0
    %544 = vmatpush1.msra.mxu0 0.0
    %545 = vmatprep.subr.mxu0 0.0
    %546 = vmatpush1.msra.mxu0 0.0
    %547 = vmatprep.mubr.f32.mxu0 0.0
    %548 = vmatmul.mubr.f32.gmra.mrb[0].mxu0 %v481
    %v549 = vpop.f32.mrb[0].mxu0
    %v550 = vadd.f32 0.0, %v549
    %v551 = vpop.f32.mrb[0].mxu0
    %552 = vdwg.mxu0
    %v553 = vadd.f32 %v480, %v550
    %v554 = vxor.u32 %v553, 2147483648
    %v555 = vmul.f32 %v554, 1.442695
    %v556 = vpow.pop %v555
    %v557 = vadd.f32 %v556, 1.0
    %v558 = vrcp.pop %v557
    %v559 = vmul.f32 1.0, %v558
    %v560 = vtanh.pop %v553
    %v561 = vmul.f32 %v559, %v472
    %563 = vrot.lane.b32.xlu0 %v560, 32
    %v564 = vpop.permute.xlu0 %563
    %v566 = vmul.f32 %v559, %v564
    %568 = vrot.lane.b32.xlu0 %v566, 32
    %v569 = vpop.permute.xlu0 %568
    %v571 = vadd.f32 %v561, %v569
    %v572 = vtanh.pop %v571
    %574 = vrot.lane.b32.xlu0 %v572, 32
    %v575 = vpop.permute.xlu0 %574
    %v577 = vmul.f32 %v559, %v575
    %v578 = vsel %vm479, 1, 0
    %579 = vset.pattern.permute.xlu0 0
    %580 = vperm.xlu0 %579, %v578
    %v581 = vpop.permute.xlu0 %580
    %vm582 = vcmp.eq.s32.totalorder %v581, 1
    %v583 = vsel %vm582, %v571, %v472
    %v584 = vsel %vm582, %v577, %v473
    %586 = vrot.lane.b32.xlu0 %v584, 64
    %v587 = vpop.permute.xlu0 %586
    %589 = vst.msk [vmem:[#allocation2 + $0x6] sm:$0x3] %vm255, %v587
    %vm590 = vcmp.gt.s32.totalorder %v37, 4
    %v591 = vld [vmem:[#allocation3 + $0x8] sm:$0x3]
    %v592 = vsel %vm145, %v587, 0
    %594 = vmatprep.subr.mxu0 0.0
    %595 = vmatpush1.msra.mxu0 %v44
    %596 = vmatprep.subr.mxu0 0.0
    %597 = vmatpush1.msra.mxu0 %v45
    %598 = vmatprep.subr.mxu0 0.0
    %599 = vmatpush1.msra.mxu0 %v46
    %600 = vmatprep.subr.mxu0 0.0
    %601 = vmatpush1.msra.mxu0 %v47
    %602 = vmatprep.subr.mxu0 0.0
    %603 = vmatpush1.msra.mxu0 0.0
    %604 = vmatprep.subr.mxu0 0.0
    %605 = vmatpush1.msra.mxu0 0.0
    %606 = vmatprep.subr.mxu0 0.0
    %607 = vmatpush1.msra.mxu0 0.0
    %608 = vmatprep.subr.mxu0 0.0
    %609 = vmatpush1.msra.mxu0 0.0
    %610 = vmatprep.subr.mxu0 0.0
    %611 = vmatpush1.msra.mxu0 0.0
    %612 = vmatprep.subr.mxu0 0.0
    %613 = vmatpush1.msra.mxu0 0.0
    %614 = vmatprep.subr.mxu0 0.0
    %615 = vmatpush1.msra.mxu0 0.0
    %616 = vmatprep.subr.mxu0 0.0
    %617 = vmatpush1.msra.mxu0 0.0
    %618 = vmatprep.subr.mxu0 0.0
    %619 = vmatpush1.msra.mxu0 0.0
    %620 = vmatprep.subr.mxu0 0.0
    %621 = vmatpush1.msra.mxu0 0.0
    %622 = vmatprep.subr.mxu0 0.0
    %623 = vmatpush1.msra.mxu0 0.0
    %624 = vmatprep.subr.mxu0 0.0
    %625 = vmatpush1.msra.mxu0 0.0
    %626 = vmatprep.subr.mxu0 0.0
    %627 = vmatpush1.msra.mxu0 0.0
    %628 = vmatprep.subr.mxu0 0.0
    %629 = vmatpush1.msra.mxu0 0.0
    %630 = vmatprep.subr.mxu0 0.0
    %631 = vmatpush1.msra.mxu0 0.0
    %632 = vmatprep.subr.mxu0 0.0
    %633 = vmatpush1.msra.mxu0 0.0
    %634 = vmatprep.subr.mxu0 0.0
    %635 = vmatpush1.msra.mxu0 0.0
    %636 = vmatprep.subr.mxu0 0.0
    %637 = vmatpush1.msra.mxu0 0.0
    %638 = vmatprep.subr.mxu0 0.0
    %639 = vmatpush1.msra.mxu0 0.0
    %640 = vmatprep.subr.mxu0 0.0
    %641 = vmatpush1.msra.mxu0 0.0
    %642 = vmatprep.subr.mxu0 0.0
    %643 = vmatpush1.msra.mxu0 0.0
    %644 = vmatprep.subr.mxu0 0.0
    %645 = vmatpush1.msra.mxu0 0.0
    %646 = vmatprep.subr.mxu0 0.0
    %647 = vmatpush1.msra.mxu0 0.0
    %648 = vmatprep.subr.mxu0 0.0
    %649 = vmatpush1.msra.mxu0 0.0
    %650 = vmatprep.subr.mxu0 0.0
    %651 = vmatpush1.msra.mxu0 0.0
    %652 = vmatprep.subr.mxu0 0.0
    %653 = vmatpush1.msra.mxu0 0.0
    %654 = vmatprep.subr.mxu0 0.0
    %655 = vmatpush1.msra.mxu0 0.0
    %656 = vmatprep.subr.mxu0 0.0
    %657 = vmatpush1.msra.mxu0 0.0
    %658 = vmatprep.mubr.f32.mxu0 0.0
    %659 = vmatmul.mubr.f32.gmra.mrb[0].mxu0 %v592
    %v660 = vpop.f32.mrb[0].mxu0
    %v661 = vadd.f32 0.0, %v660
    %v662 = vpop.f32.mrb[0].mxu0
    %663 = vdwg.mxu0
    %v664 = vadd.f32 %v591, %v661
    %v665 = vxor.u32 %v664, 2147483648
    %v666 = vmul.f32 %v665, 1.442695
    %v667 = vpow.pop %v666
    %v668 = vadd.f32 %v667, 1.0
    %v669 = vrcp.pop %v668
    %v670 = vmul.f32 1.0, %v669
    %v671 = vtanh.pop %v664
    %v672 = vmul.f32 %v670, %v583
    %674 = vrot.lane.b32.xlu0 %v671, 32
    %v675 = vpop.permute.xlu0 %674
    %v677 = vmul.f32 %v670, %v675
    %679 = vrot.lane.b32.xlu0 %v677, 32
    %v680 = vpop.permute.xlu0 %679
    %v682 = vadd.f32 %v672, %v680
    %v683 = vtanh.pop %v682
    %685 = vrot.lane.b32.xlu0 %v683, 32
    %v686 = vpop.permute.xlu0 %685
    %v688 = vmul.f32 %v670, %v686
    %v689 = vsel %vm590, 1, 0
    %690 = vset.pattern.permute.xlu0 0
    %691 = vperm.xlu0 %690, %v689
    %v692 = vpop.permute.xlu0 %691
    %vm693 = vcmp.eq.s32.totalorder %v692, 1
    %v694 = vsel %vm693, %v682, %v583
    %v695 = vsel %vm693, %v688, %v584
    %697 = vrot.lane.b32.xlu0 %v695, 64
    %v698 = vpop.permute.xlu0 %697
    %700 = vst.msk [vmem:[#allocation2 + $0x8] sm:$0x3] %vm255, %v698
    %vm701 = vcmp.gt.s32.totalorder %v37, 5
    %v702 = vld [vmem:[#allocation3 + $0xa] sm:$0x3]
    %v703 = vsel %vm145, %v698, 0
    %705 = vmatprep.subr.mxu0 0.0
    %706 = vmatpush1.msra.mxu0 %v44
    %707 = vmatprep.subr.mxu0 0.0
    %708 = vmatpush1.msra.mxu0 %v45
    %709 = vmatprep.subr.mxu0 0.0
    %710 = vmatpush1.msra.mxu0 %v46
    %711 = vmatprep.subr.mxu0 0.0
    %712 = vmatpush1.msra.mxu0 %v47
    %713 = vmatprep.subr.mxu0 0.0
    %714 = vmatpush1.msra.mxu0 0.0
    %715 = vmatprep.subr.mxu0 0.0
    %716 = vmatpush1.msra.mxu0 0.0
    %717 = vmatprep.subr.mxu0 0.0
    %718 = vmatpush1.msra.mxu0 0.0
    %719 = vmatprep.subr.mxu0 0.0
    %720 = vmatpush1.msra.mxu0 0.0
    %721 = vmatprep.subr.mxu0 0.0
    %722 = vmatpush1.msra.mxu0 0.0
    %723 = vmatprep.subr.mxu0 0.0
    %724 = vmatpush1.msra.mxu0 0.0
    %725 = vmatprep.subr.mxu0 0.0
    %726 = vmatpush1.msra.mxu0 0.0
    %727 = vmatprep.subr.mxu0 0.0
    %728 = vmatpush1.msra.mxu0 0.0
    %729 = vmatprep.subr.mxu0 0.0
    %730 = vmatpush1.msra.mxu0 0.0
    %731 = vmatprep.subr.mxu0 0.0
    %732 = vmatpush1.msra.mxu0 0.0
    %733 = vmatprep.subr.mxu0 0.0
    %734 = vmatpush1.msra.mxu0 0.0
    %735 = vmatprep.subr.mxu0 0.0
    %736 = vmatpush1.msra.mxu0 0.0
    %737 = vmatprep.subr.mxu0 0.0
    %738 = vmatpush1.msra.mxu0 0.0
    %739 = vmatprep.subr.mxu0 0.0
    %740 = vmatpush1.msra.mxu0 0.0
    %741 = vmatprep.subr.mxu0 0.0
    %742 = vmatpush1.msra.mxu0 0.0
    %743 = vmatprep.subr.mxu0 0.0
    %744 = vmatpush1.msra.mxu0 0.0
    %745 = vmatprep.subr.mxu0 0.0
    %746 = vmatpush1.msra.mxu0 0.0
    %747 = vmatprep.subr.mxu0 0.0
    %748 = vmatpush1.msra.mxu0 0.0
    %749 = vmatprep.subr.mxu0 0.0
    %750 = vmatpush1.msra.mxu0 0.0
    %751 = vmatprep.subr.mxu0 0.0
    %752 = vmatpush1.msra.mxu0 0.0
    %753 = vmatprep.subr.mxu0 0.0
    %754 = vmatpush1.msra.mxu0 0.0
    %755 = vmatprep.subr.mxu0 0.0
    %756 = vmatpush1.msra.mxu0 0.0
    %757 = vmatprep.subr.mxu0 0.0
    %758 = vmatpush1.msra.mxu0 0.0
    %759 = vmatprep.subr.mxu0 0.0
    %760 = vmatpush1.msra.mxu0 0.0
    %761 = vmatprep.subr.mxu0 0.0
    %762 = vmatpush1.msra.mxu0 0.0
    %763 = vmatprep.subr.mxu0 0.0
    %764 = vmatpush1.msra.mxu0 0.0
    %765 = vmatprep.subr.mxu0 0.0
    %766 = vmatpush1.msra.mxu0 0.0
    %767 = vmatprep.subr.mxu0 0.0
    %768 = vmatpush1.msra.mxu0 0.0
    %769 = vmatprep.mubr.f32.mxu0 0.0
    %770 = vmatmul.mubr.f32.gmra.mrb[0].mxu0 %v703
    %v771 = vpop.f32.mrb[0].mxu0
    %v772 = vadd.f32 0.0, %v771
    %v773 = vpop.f32.mrb[0].mxu0
    %774 = vdwg.mxu0
    %v775 = vadd.f32 %v702, %v772
    %v776 = vxor.u32 %v775, 2147483648
    %v777 = vmul.f32 %v776, 1.442695
    %v778 = vpow.pop %v777
    %v779 = vadd.f32 %v778, 1.0
    %v780 = vrcp.pop %v779
    %v781 = vmul.f32 1.0, %v780
    %v782 = vtanh.pop %v775
    %v783 = vmul.f32 %v781, %v694
    %785 = vrot.lane.b32.xlu0 %v782, 32
    %v786 = vpop.permute.xlu0 %785
    %v788 = vmul.f32 %v781, %v786
    %790 = vrot.lane.b32.xlu0 %v788, 32
    %v791 = vpop.permute.xlu0 %790
    %v793 = vadd.f32 %v783, %v791
    %v794 = vtanh.pop %v793
    %796 = vrot.lane.b32.xlu0 %v794, 32
    %v797 = vpop.permute.xlu0 %796
    %v799 = vmul.f32 %v781, %v797
    %v800 = vsel %vm701, 1, 0
    %801 = vset.pattern.permute.xlu0 0
    %802 = vperm.xlu0 %801, %v800
    %v803 = vpop.permute.xlu0 %802
    %vm804 = vcmp.eq.s32.totalorder %v803, 1
    %v805 = vsel %vm804, %v793, %v694
    %v806 = vsel %vm804, %v799, %v695
    %808 = vrot.lane.b32.xlu0 %v806, 64
    %v809 = vpop.permute.xlu0 %808
    %811 = vst.msk [vmem:[#allocation2 + $0xa] sm:$0x3] %vm255, %v809
    %vm812 = vcmp.gt.s32.totalorder %v37, 6
    %v813 = vld [vmem:[#allocation3 + $0xc] sm:$0x3]
    %v814 = vsel %vm145, %v809, 0
    %816 = vmatprep.subr.mxu0 0.0
    %817 = vmatpush1.msra.mxu0 %v44
    %818 = vmatprep.subr.mxu0 0.0
    %819 = vmatpush1.msra.mxu0 %v45
    %820 = vmatprep.subr.mxu0 0.0
    %821 = vmatpush1.msra.mxu0 %v46
    %822 = vmatprep.subr.mxu0 0.0
    %823 = vmatpush1.msra.mxu0 %v47
    %824 = vmatprep.subr.mxu0 0.0
    %825 = vmatpush1.msra.mxu0 0.0
    %826 = vmatprep.subr.mxu0 0.0
    %827 = vmatpush1.msra.mxu0 0.0
    %828 = vmatprep.subr.mxu0 0.0
    %829 = vmatpush1.msra.mxu0 0.0
    %830 = vmatprep.subr.mxu0 0.0
    %831 = vmatpush1.msra.mxu0 0.0
    %832 = vmatprep.subr.mxu0 0.0
    %833 = vmatpush1.msra.mxu0 0.0
    %834 = vmatprep.subr.mxu0 0.0
    %835 = vmatpush1.msra.mxu0 0.0
    %836 = vmatprep.subr.mxu0 0.0
    %837 = vmatpush1.msra.mxu0 0.0
    %838 = vmatprep.subr.mxu0 0.0
    %839 = vmatpush1.msra.mxu0 0.0
    %840 = vmatprep.subr.mxu0 0.0
    %841 = vmatpush1.msra.mxu0 0.0
    %842 = vmatprep.subr.mxu0 0.0
    %843 = vmatpush1.msra.mxu0 0.0
    %844 = vmatprep.subr.mxu0 0.0
    %845 = vmatpush1.msra.mxu0 0.0
    %846 = vmatprep.subr.mxu0 0.0
    %847 = vmatpush1.msra.mxu0 0.0
    %848 = vmatprep.subr.mxu0 0.0
    %849 = vmatpush1.msra.mxu0 0.0
    %850 = vmatprep.subr.mxu0 0.0
    %851 = vmatpush1.msra.mxu0 0.0
    %852 = vmatprep.subr.mxu0 0.0
    %853 = vmatpush1.msra.mxu0 0.0
    %854 = vmatprep.subr.mxu0 0.0
    %855 = vmatpush1.msra.mxu0 0.0
    %856 = vmatprep.subr.mxu0 0.0
    %857 = vmatpush1.msra.mxu0 0.0
    %858 = vmatprep.subr.mxu0 0.0
    %859 = vmatpush1.msra.mxu0 0.0
    %860 = vmatprep.subr.mxu0 0.0
    %861 = vmatpush1.msra.mxu0 0.0
    %862 = vmatprep.subr.mxu0 0.0
    %863 = vmatpush1.msra.mxu0 0.0
    %864 = vmatprep.subr.mxu0 0.0
    %865 = vmatpush1.msra.mxu0 0.0
    %866 = vmatprep.subr.mxu0 0.0
    %867 = vmatpush1.msra.mxu0 0.0
    %868 = vmatprep.subr.mxu0 0.0
    %869 = vmatpush1.msra.mxu0 0.0
    %870 = vmatprep.subr.mxu0 0.0
    %871 = vmatpush1.msra.mxu0 0.0
    %872 = vmatprep.subr.mxu0 0.0
    %873 = vmatpush1.msra.mxu0 0.0
    %874 = vmatprep.subr.mxu0 0.0
    %875 = vmatpush1.msra.mxu0 0.0
    %876 = vmatprep.subr.mxu0 0.0
    %877 = vmatpush1.msra.mxu0 0.0
    %878 = vmatprep.subr.mxu0 0.0
    %879 = vmatpush1.msra.mxu0 0.0
    %880 = vmatprep.mubr.f32.mxu0 0.0
    %881 = vmatmul.mubr.f32.gmra.mrb[0].mxu0 %v814
    %v882 = vpop.f32.mrb[0].mxu0
    %v883 = vadd.f32 0.0, %v882
    %v884 = vpop.f32.mrb[0].mxu0
    %885 = vdwg.mxu0
    %v886 = vadd.f32 %v813, %v883
    %v887 = vxor.u32 %v886, 2147483648
    %v888 = vmul.f32 %v887, 1.442695
    %v889 = vpow.pop %v888
    %v890 = vadd.f32 %v889, 1.0
    %v891 = vrcp.pop %v890
    %v892 = vmul.f32 1.0, %v891
    %v893 = vtanh.pop %v886
    %v894 = vmul.f32 %v892, %v805
    %896 = vrot.lane.b32.xlu0 %v893, 32
    %v897 = vpop.permute.xlu0 %896
    %v899 = vmul.f32 %v892, %v897
    %901 = vrot.lane.b32.xlu0 %v899, 32
    %v902 = vpop.permute.xlu0 %901
    %v904 = vadd.f32 %v894, %v902
    %v905 = vtanh.pop %v904
    %907 = vrot.lane.b32.xlu0 %v905, 32
    %v908 = vpop.permute.xlu0 %907
    %v910 = vmul.f32 %v892, %v908
    %v911 = vsel %vm812, 1, 0
    %912 = vset.pattern.permute.xlu0 0
    %913 = vperm.xlu0 %912, %v911
    %v914 = vpop.permute.xlu0 %913
    %vm915 = vcmp.eq.s32.totalorder %v914, 1
    %v916 = vsel %vm915, %v904, %v805
    %v917 = vsel %vm915, %v910, %v806
    %919 = vrot.lane.b32.xlu0 %v917, 64
    %v920 = vpop.permute.xlu0 %919
    %922 = vst.msk [vmem:[#allocation2 + $0xc] sm:$0x3] %vm255, %v920
    %vm923 = vcmp.gt.s32.totalorder %v37, 7
    %v924 = vld [vmem:[#allocation3 + $0xe] sm:$0x3]
    %v925 = vsel %vm145, %v920, 0
    %927 = vmatprep.subr.mxu0 0.0
    %928 = vmatpush1.msra.mxu0 %v44
    %929 = vmatprep.subr.mxu0 0.0
    %930 = vmatpush1.msra.mxu0 %v45
    %931 = vmatprep.subr.mxu0 0.0
    %932 = vmatpush1.msra.mxu0 %v46
    %933 = vmatprep.subr.mxu0 0.0
    %934 = vmatpush1.msra.mxu0 %v47
    %935 = vmatprep.subr.mxu0 0.0
    %936 = vmatpush1.msra.mxu0 0.0
    %937 = vmatprep.subr.mxu0 0.0
    %938 = vmatpush1.msra.mxu0 0.0
    %939 = vmatprep.subr.mxu0 0.0
    %940 = vmatpush1.msra.mxu0 0.0
    %941 = vmatprep.subr.mxu0 0.0
    %942 = vmatpush1.msra.mxu0 0.0
    %943 = vmatprep.subr.mxu0 0.0
    %944 = vmatpush1.msra.mxu0 0.0
    %945 = vmatprep.subr.mxu0 0.0
    %946 = vmatpush1.msra.mxu0 0.0
    %947 = vmatprep.subr.mxu0 0.0
    %948 = vmatpush1.msra.mxu0 0.0
    %949 = vmatprep.subr.mxu0 0.0
    %950 = vmatpush1.msra.mxu0 0.0
    %951 = vmatprep.subr.mxu0 0.0
    %952 = vmatpush1.msra.mxu0 0.0
    %953 = vmatprep.subr.mxu0 0.0
    %954 = vmatpush1.msra.mxu0 0.0
    %955 = vmatprep.subr.mxu0 0.0
    %956 = vmatpush1.msra.mxu0 0.0
    %957 = vmatprep.subr.mxu0 0.0
    %958 = vmatpush1.msra.mxu0 0.0
    %959 = vmatprep.subr.mxu0 0.0
    %960 = vmatpush1.msra.mxu0 0.0
    %961 = vmatprep.subr.mxu0 0.0
    %962 = vmatpush1.msra.mxu0 0.0
    %963 = vmatprep.subr.mxu0 0.0
    %964 = vmatpush1.msra.mxu0 0.0
    %965 = vmatprep.subr.mxu0 0.0
    %966 = vmatpush1.msra.mxu0 0.0
    %967 = vmatprep.subr.mxu0 0.0
    %968 = vmatpush1.msra.mxu0 0.0
    %969 = vmatprep.subr.mxu0 0.0
    %970 = vmatpush1.msra.mxu0 0.0
    %971 = vmatprep.subr.mxu0 0.0
    %972 = vmatpush1.msra.mxu0 0.0
    %973 = vmatprep.subr.mxu0 0.0
    %974 = vmatpush1.msra.mxu0 0.0
    %975 = vmatprep.subr.mxu0 0.0
    %976 = vmatpush1.msra.mxu0 0.0
    %977 = vmatprep.subr.mxu0 0.0
    %978 = vmatpush1.msra.mxu0 0.0
    %979 = vmatprep.subr.mxu0 0.0
    %980 = vmatpush1.msra.mxu0 0.0
    %981 = vmatprep.subr.mxu0 0.0
    %982 = vmatpush1.msra.mxu0 0.0
    %983 = vmatprep.subr.mxu0 0.0
    %984 = vmatpush1.msra.mxu0 0.0
    %985 = vmatprep.subr.mxu0 0.0
    %986 = vmatpush1.msra.mxu0 0.0
    %987 = vmatprep.subr.mxu0 0.0
    %988 = vmatpush1.msra.mxu0 0.0
    %989 = vmatprep.subr.mxu0 0.0
    %990 = vmatpush1.msra.mxu0 0.0
    %991 = vmatprep.mubr.f32.mxu0 0.0
    %992 = vmatmul.mubr.f32.gmra.mrb[0].mxu0 %v925
    %v993 = vpop.f32.mrb[0].mxu0
    %v994 = vadd.f32 0.0, %v993
    %v995 = vpop.f32.mrb[0].mxu0
    %996 = vdwg.mxu0
    %v997 = vadd.f32 %v924, %v994
    %v998 = vxor.u32 %v997, 2147483648
    %v999 = vmul.f32 %v998, 1.442695
    %v1000 = vpow.pop %v999
    %v1001 = vadd.f32 %v1000, 1.0
    %v1002 = vrcp.pop %v1001
    %v1003 = vmul.f32 1.0, %v1002
    %v1004 = vtanh.pop %v997
    %v1005 = vmul.f32 %v1003, %v916
    %1007 = vrot.lane.b32.xlu0 %v1004, 32
    %v1008 = vpop.permute.xlu0 %1007
    %v1010 = vmul.f32 %v1003, %v1008
    %1012 = vrot.lane.b32.xlu0 %v1010, 32
    %v1013 = vpop.permute.xlu0 %1012
    %v1015 = vadd.f32 %v1005, %v1013
    %v1016 = vtanh.pop %v1015
    %1018 = vrot.lane.b32.xlu0 %v1016, 32
    %v1019 = vpop.permute.xlu0 %1018
    %v1021 = vmul.f32 %v1003, %v1019
    %v1022 = vsel %vm923, 1, 0
    %1023 = vset.pattern.permute.xlu0 0
    %1024 = vperm.xlu0 %1023, %v1022
    %v1025 = vpop.permute.xlu0 %1024
    %vm1026 = vcmp.eq.s32.totalorder %v1025, 1
    %v1027 = vsel %vm1026, %v1021, %v917
    %1029 = vrot.lane.b32.xlu0 %v1027, 64
    %v1030 = vpop.permute.xlu0 %1029
    %1032 = vst.msk [vmem:[#allocation2 + $0xe] sm:$0x3] %vm255, %v1030
    %v1033 = vld [vmem:[%s3] sm:$0xff]
    %v1034 = vld [vmem:[%s3 + $0x8] sm:$0xff]
    %v1035 = vld [vmem:[%s3 + $0x10] sm:$0xff]
    %v1036 = vld [vmem:[%s3 + $0x18] sm:$0xff]
    %v1037 = vld [vmem:[%s3 + $0x20] sm:$0xff]
    %v1038 = vld [vmem:[%s3 + $0x28] sm:$0xff]
    %v1039 = vld [vmem:[%s3 + $0x30] sm:$0xff]
    %v1040 = vld [vmem:[%s3 + $0x38] sm:$0xff]
    %v1041 = vld [vmem:[%s3 + $0x40] sm:$0x1]
    %v1042 = vld [vmem:[#allocation2] sm:$0xff]
    %v1043 = vld [vmem:[#allocation2 + $0x8] sm:$0xff]
    %v1044 = vlaneseq
    %v1045 = vshrl.u32 %v1044, 7
    %v1046 = vsub.s32 0, %v1045
    %v1047 = vrot.slane %v1041, %v1046
    %v1049 = vsel %vm145, %v1042, 0
    %v1052 = vsel %vm145, %v1043, 0
    %1054 = vmatprep.subr.mxu0 0.0
    %1055 = vmatpush1.msra.mxu0 %v1033
    %1056 = vmatprep.subr.mxu0 0.0
    %1057 = vmatpush1.msra.mxu0 %v1034
    %1058 = vmatprep.subr.mxu0 0.0
    %1059 = vmatpush1.msra.mxu0 %v1035
    %1060 = vmatprep.subr.mxu0 0.0
    %1061 = vmatpush1.msra.mxu0 %v1036
    %1062 = vmatprep.subr.mxu0 0.0
    %1063 = vmatpush1.msra.mxu0 0.0
    %1064 = vmatprep.subr.mxu0 0.0
    %1065 = vmatpush1.msra.mxu0 0.0
    %1066 = vmatprep.subr.mxu0 0.0
    %1067 = vmatpush1.msra.mxu0 0.0
    %1068 = vmatprep.subr.mxu0 0.0
    %1069 = vmatpush1.msra.mxu0 0.0
    %1070 = vmatprep.subr.mxu0 0.0
    %1071 = vmatpush1.msra.mxu0 0.0
    %1072 = vmatprep.subr.mxu0 0.0
    %1073 = vmatpush1.msra.mxu0 0.0
    %1074 = vmatprep.subr.mxu0 0.0
    %1075 = vmatpush1.msra.mxu0 0.0
    %1076 = vmatprep.subr.mxu0 0.0
    %1077 = vmatpush1.msra.mxu0 0.0
    %1078 = vmatprep.subr.mxu0 0.0
    %1079 = vmatpush1.msra.mxu0 0.0
    %1080 = vmatprep.subr.mxu0 0.0
    %1081 = vmatpush1.msra.mxu0 0.0
    %1082 = vmatprep.subr.mxu0 0.0
    %1083 = vmatpush1.msra.mxu0 0.0
    %1084 = vmatprep.subr.mxu0 0.0
    %1085 = vmatpush1.msra.mxu0 0.0
    %1086 = vmatprep.subr.mxu0 0.0
    %1087 = vmatpush1.msra.mxu0 0.0
    %1088 = vmatprep.subr.mxu0 0.0
    %1089 = vmatpush1.msra.mxu0 0.0
    %1090 = vmatprep.subr.mxu0 0.0
    %1091 = vmatpush1.msra.mxu0 0.0
    %1092 = vmatprep.subr.mxu0 0.0
    %1093 = vmatpush1.msra.mxu0 0.0
    %1094 = vmatprep.subr.mxu0 0.0
    %1095 = vmatpush1.msra.mxu0 0.0
    %1096 = vmatprep.subr.mxu0 0.0
    %1097 = vmatpush1.msra.mxu0 0.0
    %1098 = vmatprep.subr.mxu0 0.0
    %1099 = vmatpush1.msra.mxu0 0.0
    %1100 = vmatprep.subr.mxu0 0.0
    %1101 = vmatpush1.msra.mxu0 0.0
    %1102 = vmatprep.subr.mxu0 0.0
    %1103 = vmatpush1.msra.mxu0 0.0
    %1104 = vmatprep.subr.mxu0 0.0
    %1105 = vmatpush1.msra.mxu0 0.0
    %1106 = vmatprep.subr.mxu0 0.0
    %1107 = vmatpush1.msra.mxu0 0.0
    %1108 = vmatprep.subr.mxu0 0.0
    %1109 = vmatpush1.msra.mxu0 0.0
    %1110 = vmatprep.subr.mxu0 0.0
    %1111 = vmatpush1.msra.mxu0 0.0
    %1112 = vmatprep.subr.mxu0 0.0
    %1113 = vmatpush1.msra.mxu0 0.0
    %1114 = vmatprep.subr.mxu0 0.0
    %1115 = vmatpush1.msra.mxu0 0.0
    %1116 = vmatprep.subr.mxu0 0.0
    %1117 = vmatpush1.msra.mxu0 0.0
    %1118 = vmatprep.mubr.f32.mxu0 0.0
    %1119 = vmatmul.mubr.f32.gmra.mrb[0].mxu0 %v1049
    %v1120 = vpop.f32.mrb[0].mxu0
    %v1121 = vadd.f32 %v1047, %v1120
    %v1122 = vpop.f32.mrb[0].mxu0
    %1123 = vmatprep.mubr.f32.mxu0 0.0
    %1124 = vmatmul.mubr.f32.gmra.mrb[0].mxu0 %v1052
    %v1125 = vpop.f32.mrb[0].mxu0
    %v1126 = vadd.f32 %v1047, %v1125
    %v1127 = vpop.f32.mrb[0].mxu0
    %1128 = vdwg.mxu0
    %1129 = vst [vmem:[#allocation3] sm:$0xff] %v1121
    %1130 = vst [vmem:[#allocation3 + $0x8] sm:$0xff] %v1126
    %v1131 = vld [vmem:[#allocation3] sm:$0x3]
    %1132 = vmatprep.subr.mxu0 0.0
    %1133 = vmatpush1.msra.mxu0 %v1037
    %1134 = vmatprep.subr.mxu0 0.0
    %1135 = vmatpush1.msra.mxu0 %v1038
    %1136 = vmatprep.subr.mxu0 0.0
    %1137 = vmatpush1.msra.mxu0 %v1039
    %1138 = vmatprep.subr.mxu0 0.0
    %1139 = vmatpush1.msra.mxu0 %v1040
    %1140 = vmatprep.subr.mxu0 0.0
    %1141 = vmatpush1.msra.mxu0 0.0
    %1142 = vmatprep.subr.mxu0 0.0
    %1143 = vmatpush1.msra.mxu0 0.0
    %1144 = vmatprep.subr.mxu0 0.0
    %1145 = vmatpush1.msra.mxu0 0.0
    %1146 = vmatprep.subr.mxu0 0.0
    %1147 = vmatpush1.msra.mxu0 0.0
    %1148 = vmatprep.subr.mxu0 0.0
    %1149 = vmatpush1.msra.mxu0 0.0
    %1150 = vmatprep.subr.mxu0 0.0
    %1151 = vmatpush1.msra.mxu0 0.0
    %1152 = vmatprep.subr.mxu0 0.0
    %1153 = vmatpush1.msra.mxu0 0.0
    %1154 = vmatprep.subr.mxu0 0.0
    %1155 = vmatpush1.msra.mxu0 0.0
    %1156 = vmatprep.subr.mxu0 0.0
    %1157 = vmatpush1.msra.mxu0 0.0
    %1158 = vmatprep.subr.mxu0 0.0
    %1159 = vmatpush1.msra.mxu0 0.0
    %1160 = vmatprep.subr.mxu0 0.0
    %1161 = vmatpush1.msra.mxu0 0.0
    %1162 = vmatprep.subr.mxu0 0.0
    %1163 = vmatpush1.msra.mxu0 0.0
    %1164 = vmatprep.subr.mxu0 0.0
    %1165 = vmatpush1.msra.mxu0 0.0
    %1166 = vmatprep.subr.mxu0 0.0
    %1167 = vmatpush1.msra.mxu0 0.0
    %1168 = vmatprep.subr.mxu0 0.0
    %1169 = vmatpush1.msra.mxu0 0.0
    %1170 = vmatprep.subr.mxu0 0.0
    %1171 = vmatpush1.msra.mxu0 0.0
    %1172 = vmatprep.subr.mxu0 0.0
    %1173 = vmatpush1.msra.mxu0 0.0
    %1174 = vmatprep.subr.mxu0 0.0
    %1175 = vmatpush1.msra.mxu0 0.0
    %1176 = vmatprep.subr.mxu0 0.0
    %1177 = vmatpush1.msra.mxu0 0.0
    %1178 = vmatprep.subr.mxu0 0.0
    %1179 = vmatpush1.msra.mxu0 0.0
    %1180 = vmatprep.subr.mxu0 0.0
    %1181 = vmatpush1.msra.mxu0 0.0
    %1182 = vmatprep.subr.mxu0 0.0
    %1183 = vmatpush1.msra.mxu0 0.0
    %1184 = vmatprep.subr.mxu0 0.0
    %1185 = vmatpush1.msra.mxu0 0.0
    %1186 = vmatprep.subr.mxu0 0.0
    %1187 = vmatpush1.msra.mxu0 0.0
    %1188 = vmatprep.subr.mxu0 0.0
    %1189 = vmatpush1.msra.mxu0 0.0
    %1190 = vmatprep.subr.mxu0 0.0
    %1191 = vmatpush1.msra.mxu0 0.0
    %1192 = vmatprep.subr.mxu0 0.0
    %1193 = vmatpush1.msra.mxu0 0.0
    %1194 = vmatprep.subr.mxu0 0.0
    %1195 = vmatpush1.msra.mxu0 0.0
    %1196 = vmatprep.mubr.f32.mxu0 0.0
    %1197 = vmatmul.mubr.f32.gmra.mrb[0].mxu0 %v147
    %v1198 = vpop.f32.mrb[0].mxu0
    %v1199 = vadd.f32 0.0, %v1198
    %v1200 = vpop.f32.mrb[0].mxu0
    %1201 = vdwg.mxu0
    %v1202 = vadd.f32 %v1131, %v1199
    %v1203 = vxor.u32 %v1202, 2147483648
    %v1204 = vmul.f32 %v1203, 1.442695
    %v1205 = vpow.pop %v1204
    %v1206 = vadd.f32 %v1205, 1.0
    %v1207 = vrcp.pop %v1206
    %v1208 = vmul.f32 1.0, %v1207
    %v1209 = vtanh.pop %v1202
    %v1210 = vmul.f32 %v1208, 0.0
    %1212 = vrot.lane.b32.xlu0 %v1209, 32
    %v1213 = vpop.permute.xlu0 %1212
    %v1215 = vmul.f32 %v1208, %v1213
    %1217 = vrot.lane.b32.xlu0 %v1215, 32
    %v1218 = vpop.permute.xlu0 %1217
    %v1220 = vadd.f32 %v1210, %v1218
    %v1221 = vtanh.pop %v1220
    %1223 = vrot.lane.b32.xlu0 %v1221, 32
    %v1224 = vpop.permute.xlu0 %1223
    %v1226 = vmul.f32 %v1208, %v1224
    %v1227 = vsel %vm248, %v1220, 0.0
    %v1228 = vsel %vm248, %v1226, 0.0
    %1230 = vrot.lane.b32.xlu0 %v1228, 64
    %v1231 = vpop.permute.xlu0 %1230
    %1233 = vst.msk [vmem:[#allocation2] sm:$0x3] %vm255, %v1231
    %v1234 = vld [vmem:[#allocation3 + $0x2] sm:$0x3]
    %v1235 = vsel %vm145, %v1231, 0
    %1237 = vmatprep.subr.mxu0 0.0
    %1238 = vmatpush1.msra.mxu0 %v1037
    %1239 = vmatprep.subr.mxu0 0.0
    %1240 = vmatpush1.msra.mxu0 %v1038
    %1241 = vmatprep.subr.mxu0 0.0
    %1242 = vmatpush1.msra.mxu0 %v1039
    %1243 = vmatprep.subr.mxu0 0.0
    %1244 = vmatpush1.msra.mxu0 %v1040
    %1245 = vmatprep.subr.mxu0 0.0
    %1246 = vmatpush1.msra.mxu0 0.0
    %1247 = vmatprep.subr.mxu0 0.0
    %1248 = vmatpush1.msra.mxu0 0.0
    %1249 = vmatprep.subr.mxu0 0.0
    %1250 = vmatpush1.msra.mxu0 0.0
    %1251 = vmatprep.subr.mxu0 0.0
    %1252 = vmatpush1.msra.mxu0 0.0
    %1253 = vmatprep.subr.mxu0 0.0
    %1254 = vmatpush1.msra.mxu0 0.0
    %1255 = vmatprep.subr.mxu0 0.0
    %1256 = vmatpush1.msra.mxu0 0.0
    %1257 = vmatprep.subr.mxu0 0.0
    %1258 = vmatpush1.msra.mxu0 0.0
    %1259 = vmatprep.subr.mxu0 0.0
    %1260 = vmatpush1.msra.mxu0 0.0
    %1261 = vmatprep.subr.mxu0 0.0
    %1262 = vmatpush1.msra.mxu0 0.0
    %1263 = vmatprep.subr.mxu0 0.0
    %1264 = vmatpush1.msra.mxu0 0.0
    %1265 = vmatprep.subr.mxu0 0.0
    %1266 = vmatpush1.msra.mxu0 0.0
    %1267 = vmatprep.subr.mxu0 0.0
    %1268 = vmatpush1.msra.mxu0 0.0
    %1269 = vmatprep.subr.mxu0 0.0
    %1270 = vmatpush1.msra.mxu0 0.0
    %1271 = vmatprep.subr.mxu0 0.0
    %1272 = vmatpush1.msra.mxu0 0.0
    %1273 = vmatprep.subr.mxu0 0.0
    %1274 = vmatpush1.msra.mxu0 0.0
    %1275 = vmatprep.subr.mxu0 0.0
    %1276 = vmatpush1.msra.mxu0 0.0
    %1277 = vmatprep.subr.mxu0 0.0
    %1278 = vmatpush1.msra.mxu0 0.0
    %1279 = vmatprep.subr.mxu0 0.0
    %1280 = vmatpush1.msra.mxu0 0.0
    %1281 = vmatprep.subr.mxu0 0.0
    %1282 = vmatpush1.msra.mxu0 0.0
    %1283 = vmatprep.subr.mxu0 0.0
    %1284 = vmatpush1.msra.mxu0 0.0
    %1285 = vmatprep.subr.mxu0 0.0
    %1286 = vmatpush1.msra.mxu0 0.0
    %1287 = vmatprep.subr.mxu0 0.0
    %1288 = vmatpush1.msra.mxu0 0.0
    %1289 = vmatprep.subr.mxu0 0.0
    %1290 = vmatpush1.msra.mxu0 0.0
    %1291 = vmatprep.subr.mxu0 0.0
    %1292 = vmatpush1.msra.mxu0 0.0
    %1293 = vmatprep.subr.mxu0 0.0
    %1294 = vmatpush1.msra.mxu0 0.0
    %1295 = vmatprep.subr.mxu0 0.0
    %1296 = vmatpush1.msra.mxu0 0.0
    %1297 = vmatprep.subr.mxu0 0.0
    %1298 = vmatpush1.msra.mxu0 0.0
    %1299 = vmatprep.subr.mxu0 0.0
    %1300 = vmatpush1.msra.mxu0 0.0
    %1301 = vmatprep.mubr.f32.mxu0 0.0
    %1302 = vmatmul.mubr.f32.gmra.mrb[0].mxu0 %v1235
    %v1303 = vpop.f32.mrb[0].mxu0
    %v1304 = vadd.f32 0.0, %v1303
    %v1305 = vpop.f32.mrb[0].mxu0
    %1306 = vdwg.mxu0
    %v1307 = vadd.f32 %v1234, %v1304
    %v1308 = vxor.u32 %v1307, 2147483648
    %v1309 = vmul.f32 %v1308, 1.442695
    %v1310 = vpow.pop %v1309
    %v1311 = vadd.f32 %v1310, 1.0
    %v1312 = vrcp.pop %v1311
    %v1313 = vmul.f32 1.0, %v1312
    %v1314 = vtanh.pop %v1307
    %v1315 = vmul.f32 %v1313, %v1227
    %1317 = vrot.lane.b32.xlu0 %v1314, 32
    %v1318 = vpop.permute.xlu0 %1317
    %v1320 = vmul.f32 %v1313, %v1318
    %1322 = vrot.lane.b32.xlu0 %v1320, 32
    %v1323 = vpop.permute.xlu0 %1322
    %v1325 = vadd.f32 %v1315, %v1323
    %v1326 = vtanh.pop %v1325
    %1328 = vrot.lane.b32.xlu0 %v1326, 32
    %v1329 = vpop.permute.xlu0 %1328
    %v1331 = vmul.f32 %v1313, %v1329
    %v1332 = vsel %vm360, %v1325, %v1227
    %v1333 = vsel %vm360, %v1331, %v1228
    %v1334 = vsel %vm360, %v1331, 0.0
    %1336 = vrot.lane.b32.xlu0 %v1334, 64
    %v1337 = vpop.permute.xlu0 %1336
    %1339 = vst.msk [vmem:[#allocation2 + $0x2] sm:$0x3] %vm255, %v1337
    %v1340 = vld [vmem:[#allocation3 + $0x4] sm:$0x3]
    %1342 = vrot.lane.b32.xlu0 %v1333, 64
    %v1343 = vpop.permute.xlu0 %1342
    %v1344 = vsel %vm145, %v1343, 0
    %1346 = vmatprep.subr.mxu0 0.0
    %1347 = vmatpush1.msra.mxu0 %v1037
    %1348 = vmatprep.subr.mxu0 0.0
    %1349 = vmatpush1.msra.mxu0 %v1038
    %1350 = vmatprep.subr.mxu0 0.0
    %1351 = vmatpush1.msra.mxu0 %v1039
    %1352 = vmatprep.subr.mxu0 0.0
    %1353 = vmatpush1.msra.mxu0 %v1040
    %1354 = vmatprep.subr.mxu0 0.0
    %1355 = vmatpush1.msra.mxu0 0.0
    %1356 = vmatprep.subr.mxu0 0.0
    %1357 = vmatpush1.msra.mxu0 0.0
    %1358 = vmatprep.subr.mxu0 0.0
    %1359 = vmatpush1.msra.mxu0 0.0
    %1360 = vmatprep.subr.mxu0 0.0
    %1361 = vmatpush1.msra.mxu0 0.0
    %1362 = vmatprep.subr.mxu0 0.0
    %1363 = vmatpush1.msra.mxu0 0.0
    %1364 = vmatprep.subr.mxu0 0.0
    %1365 = vmatpush1.msra.mxu0 0.0
    %1366 = vmatprep.subr.mxu0 0.0
    %1367 = vmatpush1.msra.mxu0 0.0
    %1368 = vmatprep.subr.mxu0 0.0
    %1369 = vmatpush1.msra.mxu0 0.0
    %1370 = vmatprep.subr.mxu0 0.0
    %1371 = vmatpush1.msra.mxu0 0.0
    %1372 = vmatprep.subr.mxu0 0.0
    %1373 = vmatpush1.msra.mxu0 0.0
    %1374 = vmatprep.subr.mxu0 0.0
    %1375 = vmatpush1.msra.mxu0 0.0
    %1376 = vmatprep.subr.mxu0 0.0
    %1377 = vmatpush1.msra.mxu0 0.0
    %1378 = vmatprep.subr.mxu0 0.0
    %1379 = vmatpush1.msra.mxu0 0.0
    %1380 = vmatprep.subr.mxu0 0.0
    %1381 = vmatpush1.msra.mxu0 0.0
    %1382 = vmatprep.subr.mxu0 0.0
    %1383 = vmatpush1.msra.mxu0 0.0
    %1384 = vmatprep.subr.mxu0 0.0
    %1385 = vmatpush1.msra.mxu0 0.0
    %1386 = vmatprep.subr.mxu0 0.0
    %1387 = vmatpush1.msra.mxu0 0.0
    %1388 = vmatprep.subr.mxu0 0.0
    %1389 = vmatpush1.msra.mxu0 0.0
    %1390 = vmatprep.subr.mxu0 0.0
    %1391 = vmatpush1.msra.mxu0 0.0
    %1392 = vmatprep.subr.mxu0 0.0
    %1393 = vmatpush1.msra.mxu0 0.0
    %1394 = vmatprep.subr.mxu0 0.0
    %1395 = vmatpush1.msra.mxu0 0.0
    %1396 = vmatprep.subr.mxu0 0.0
    %1397 = vmatpush1.msra.mxu0 0.0
    %1398 = vmatprep.subr.mxu0 0.0
    %1399 = vmatpush1.msra.mxu0 0.0
    %1400 = vmatprep.subr.mxu0 0.0
    %1401 = vmatpush1.msra.mxu0 0.0
    %1402 = vmatprep.subr.mxu0 0.0
    %1403 = vmatpush1.msra.mxu0 0.0
    %1404 = vmatprep.subr.mxu0 0.0
    %1405 = vmatpush1.msra.mxu0 0.0
    %1406 = vmatprep.subr.mxu0 0.0
    %1407 = vmatpush1.msra.mxu0 0.0
    %1408 = vmatprep.subr.mxu0 0.0
    %1409 = vmatpush1.msra.mxu0 0.0
    %1410 = vmatprep.mubr.f32.mxu0 0.0
    %1411 = vmatmul.mubr.f32.gmra.mrb[0].mxu0 %v1344
    %v1412 = vpop.f32.mrb[0].mxu0
    %v1413 = vadd.f32 0.0, %v1412
    %v1414 = vpop.f32.mrb[0].mxu0
    %1415 = vdwg.mxu0
    %v1416 = vadd.f32 %v1340, %v1413
    %v1417 = vxor.u32 %v1416, 2147483648
    %v1418 = vmul.f32 %v1417, 1.442695
    %v1419 = vpow.pop %v1418
    %v1420 = vadd.f32 %v1419, 1.0
    %v1421 = vrcp.pop %v1420
    %v1422 = vmul.f32 1.0, %v1421
    %v1423 = vtanh.pop %v1416
    %v1424 = vmul.f32 %v1422, %v1332
    %1426 = vrot.lane.b32.xlu0 %v1423, 32
    %v1427 = vpop.permute.xlu0 %1426
    %v1429 = vmul.f32 %v1422, %v1427
    %1431 = vrot.lane.b32.xlu0 %v1429, 32
    %v1432 = vpop.permute.xlu0 %1431
    %v1434 = vadd.f32 %v1424, %v1432
    %v1435 = vtanh.pop %v1434
    %1437 = vrot.lane.b32.xlu0 %v1435, 32
    %v1438 = vpop.permute.xlu0 %1437
    %v1440 = vmul.f32 %v1422, %v1438
    %v1441 = vsel %vm471, %v1434, %v1332
    %v1442 = vsel %vm471, %v1440, %v1333
    %v1443 = vsel %vm471, %v1440, 0.0
    %1445 = vrot.lane.b32.xlu0 %v1443, 64
    %v1446 = vpop.permute.xlu0 %1445
    %1448 = vst.msk [vmem:[#allocation2 + $0x4] sm:$0x3] %vm255, %v1446
    %v1449 = vld [vmem:[#allocation3 + $0x6] sm:$0x3]
    %1451 = vrot.lane.b32.xlu0 %v1442, 64
    %v1452 = vpop.permute.xlu0 %1451
    %v1453 = vsel %vm145, %v1452, 0
    %1455 = vmatprep.subr.mxu0 0.0
    %1456 = vmatpush1.msra.mxu0 %v1037
    %1457 = vmatprep.subr.mxu0 0.0
    %1458 = vmatpush1.msra.mxu0 %v1038
    %1459 = vmatprep.subr.mxu0 0.0
    %1460 = vmatpush1.msra.mxu0 %v1039
    %1461 = vmatprep.subr.mxu0 0.0
    %1462 = vmatpush1.msra.mxu0 %v1040
    %1463 = vmatprep.subr.mxu0 0.0
    %1464 = vmatpush1.msra.mxu0 0.0
    %1465 = vmatprep.subr.mxu0 0.0
    %1466 = vmatpush1.msra.mxu0 0.0
    %1467 = vmatprep.subr.mxu0 0.0
    %1468 = vmatpush1.msra.mxu0 0.0
    %1469 = vmatprep.subr.mxu0 0.0
    %1470 = vmatpush1.msra.mxu0 0.0
    %1471 = vmatprep.subr.mxu0 0.0
    %1472 = vmatpush1.msra.mxu0 0.0
    %1473 = vmatprep.subr.mxu0 0.0
    %1474 = vmatpush1.msra.mxu0 0.0
    %1475 = vmatprep.subr.mxu0 0.0
    %1476 = vmatpush1.msra.mxu0 0.0
    %1477 = vmatprep.subr.mxu0 0.0
    %1478 = vmatpush1.msra.mxu0 0.0
    %1479 = vmatprep.subr.mxu0 0.0
    %1480 = vmatpush1.msra.mxu0 0.0
    %1481 = vmatprep.subr.mxu0 0.0
    %1482 = vmatpush1.msra.mxu0 0.0
    %1483 = vmatprep.subr.mxu0 0.0
    %1484 = vmatpush1.msra.mxu0 0.0
    %1485 = vmatprep.subr.mxu0 0.0
    %1486 = vmatpush1.msra.mxu0 0.0
    %1487 = vmatprep.subr.mxu0 0.0
    %1488 = vmatpush1.msra.mxu0 0.0
    %1489 = vmatprep.subr.mxu0 0.0
    %1490 = vmatpush1.msra.mxu0 0.0
    %1491 = vmatprep.subr.mxu0 0.0
    %1492 = vmatpush1.msra.mxu0 0.0
    %1493 = vmatprep.subr.mxu0 0.0
    %1494 = vmatpush1.msra.mxu0 0.0
    %1495 = vmatprep.subr.mxu0 0.0
    %1496 = vmatpush1.msra.mxu0 0.0
    %1497 = vmatprep.subr.mxu0 0.0
    %1498 = vmatpush1.msra.mxu0 0.0
    %1499 = vmatprep.subr.mxu0 0.0
    %1500 = vmatpush1.msra.mxu0 0.0
    %1501 = vmatprep.subr.mxu0 0.0
    %1502 = vmatpush1.msra.mxu0 0.0
    %1503 = vmatprep.subr.mxu0 0.0
    %1504 = vmatpush1.msra.mxu0 0.0
    %1505 = vmatprep.subr.mxu0 0.0
    %1506 = vmatpush1.msra.mxu0 0.0
    %1507 = vmatprep.subr.mxu0 0.0
    %1508 = vmatpush1.msra.mxu0 0.0
    %1509 = vmatprep.subr.mxu0 0.0
    %1510 = vmatpush1.msra.mxu0 0.0
    %1511 = vmatprep.subr.mxu0 0.0
    %1512 = vmatpush1.msra.mxu0 0.0
    %1513 = vmatprep.subr.mxu0 0.0
    %1514 = vmatpush1.msra.mxu0 0.0
    %1515 = vmatprep.subr.mxu0 0.0
    %1516 = vmatpush1.msra.mxu0 0.0
    %1517 = vmatprep.subr.mxu0 0.0
    %1518 = vmatpush1.msra.mxu0 0.0
    %1519 = vmatprep.mubr.f32.mxu0 0.0
    %1520 = vmatmul.mubr.f32.gmra.mrb[0].mxu0 %v1453
    %v1521 = vpop.f32.mrb[0].mxu0
    %v1522 = vadd.f32 0.0, %v1521
    %v1523 = vpop.f32.mrb[0].mxu0
    %1524 = vdwg.mxu0
    %v1525 = vadd.f32 %v1449, %v1522
    %v1526 = vxor.u32 %v1525, 2147483648
    %v1527 = vmul.f32 %v1526, 1.442695
    %v1528 = vpow.pop %v1527
    %v1529 = vadd.f32 %v1528, 1.0
    %v1530 = vrcp.pop %v1529
    %v1531 = vmul.f32 1.0, %v1530
    %v1532 = vtanh.pop %v1525
    %v1533 = vmul.f32 %v1531, %v1441
    %1535 = vrot.lane.b32.xlu0 %v1532, 32
    %v1536 = vpop.permute.xlu0 %1535
    %v1538 = vmul.f32 %v1531, %v1536
    %1540 = vrot.lane.b32.xlu0 %v1538, 32
    %v1541 = vpop.permute.xlu0 %1540
    %v1543 = vadd.f32 %v1533, %v1541
    %v1544 = vtanh.pop %v1543
    %1546 = vrot.lane.b32.xlu0 %v1544, 32
    %v1547 = vpop.permute.xlu0 %1546
    %v1549 = vmul.f32 %v1531, %v1547
    %v1550 = vsel %vm582, %v1543, %v1441
    %v1551 = vsel %vm582, %v1549, %v1442
    %v1552 = vsel %vm582, %v1549, 0.0
    %1554 = vrot.lane.b32.xlu0 %v1552, 64
    %v1555 = vpop.permute.xlu0 %1554
    %1557 = vst.msk [vmem:[#allocation2 + $0x6] sm:$0x3] %vm255, %v1555
    %v1558 = vld [vmem:[#allocation3 + $0x8] sm:$0x3]
    %1560 = vrot.lane.b32.xlu0 %v1551, 64
    %v1561 = vpop.permute.xlu0 %1560
    %v1562 = vsel %vm145, %v1561, 0
    %1564 = vmatprep.subr.mxu0 0.0
    %1565 = vmatpush1.msra.mxu0 %v1037
    %1566 = vmatprep.subr.mxu0 0.0
    %1567 = vmatpush1.msra.mxu0 %v1038
    %1568 = vmatprep.subr.mxu0 0.0
    %1569 = vmatpush1.msra.mxu0 %v1039
    %1570 = vmatprep.subr.mxu0 0.0
    %1571 = vmatpush1.msra.mxu0 %v1040
    %1572 = vmatprep.subr.mxu0 0.0
    %1573 = vmatpush1.msra.mxu0 0.0
    %1574 = vmatprep.subr.mxu0 0.0
    %1575 = vmatpush1.msra.mxu0 0.0
    %1576 = vmatprep.subr.mxu0 0.0
    %1577 = vmatpush1.msra.mxu0 0.0
    %1578 = vmatprep.subr.mxu0 0.0
    %1579 = vmatpush1.msra.mxu0 0.0
    %1580 = vmatprep.subr.mxu0 0.0
    %1581 = vmatpush1.msra.mxu0 0.0
    %1582 = vmatprep.subr.mxu0 0.0
    %1583 = vmatpush1.msra.mxu0 0.0
    %1584 = vmatprep.subr.mxu0 0.0
    %1585 = vmatpush1.msra.mxu0 0.0
    %1586 = vmatprep.subr.mxu0 0.0
    %1587 = vmatpush1.msra.mxu0 0.0
    %1588 = vmatprep.subr.mxu0 0.0
    %1589 = vmatpush1.msra.mxu0 0.0
    %1590 = vmatprep.subr.mxu0 0.0
    %1591 = vmatpush1.msra.mxu0 0.0
    %1592 = vmatprep.subr.mxu0 0.0
    %1593 = vmatpush1.msra.mxu0 0.0
    %1594 = vmatprep.subr.mxu0 0.0
    %1595 = vmatpush1.msra.mxu0 0.0
    %1596 = vmatprep.subr.mxu0 0.0
    %1597 = vmatpush1.msra.mxu0 0.0
    %1598 = vmatprep.subr.mxu0 0.0
    %1599 = vmatpush1.msra.mxu0 0.0
    %1600 = vmatprep.subr.mxu0 0.0
    %1601 = vmatpush1.msra.mxu0 0.0
    %1602 = vmatprep.subr.mxu0 0.0
    %1603 = vmatpush1.msra.mxu0 0.0
    %1604 = vmatprep.subr.mxu0 0.0
    %1605 = vmatpush1.msra.mxu0 0.0
    %1606 = vmatprep.subr.mxu0 0.0
    %1607 = vmatpush1.msra.mxu0 0.0
    %1608 = vmatprep.subr.mxu0 0.0
    %1609 = vmatpush1.msra.mxu0 0.0
    %1610 = vmatprep.subr.mxu0 0.0
    %1611 = vmatpush1.msra.mxu0 0.0
    %1612 = vmatprep.subr.mxu0 0.0
    %1613 = vmatpush1.msra.mxu0 0.0
    %1614 = vmatprep.subr.mxu0 0.0
    %1615 = vmatpush1.msra.mxu0 0.0
    %1616 = vmatprep.subr.mxu0 0.0
    %1617 = vmatpush1.msra.mxu0 0.0
    %1618 = vmatprep.subr.mxu0 0.0
    %1619 = vmatpush1.msra.mxu0 0.0
    %1620 = vmatprep.subr.mxu0 0.0
    %1621 = vmatpush1.msra.mxu0 0.0
    %1622 = vmatprep.subr.mxu0 0.0
    %1623 = vmatpush1.msra.mxu0 0.0
    %1624 = vmatprep.subr.mxu0 0.0
    %1625 = vmatpush1.msra.mxu0 0.0
    %1626 = vmatprep.subr.mxu0 0.0
    %1627 = vmatpush1.msra.mxu0 0.0
    %1628 = vmatprep.mubr.f32.mxu0 0.0
    %1629 = vmatmul.mubr.f32.gmra.mrb[0].mxu0 %v1562
    %v1630 = vpop.f32.mrb[0].mxu0
    %v1631 = vadd.f32 0.0, %v1630
    %v1632 = vpop.f32.mrb[0].mxu0
    %1633 = vdwg.mxu0
    %v1634 = vadd.f32 %v1558, %v1631
    %v1635 = vxor.u32 %v1634, 2147483648
    %v1636 = vmul.f32 %v1635, 1.442695
    %v1637 = vpow.pop %v1636
    %v1638 = vadd.f32 %v1637, 1.0
    %v1639 = vrcp.pop %v1638
    %v1640 = vmul.f32 1.0, %v1639
    %v1641 = vtanh.pop %v1634
    %v1642 = vmul.f32 %v1640, %v1550
    %1644 = vrot.lane.b32.xlu0 %v1641, 32
    %v1645 = vpop.permute.xlu0 %1644
    %v1647 = vmul.f32 %v1640, %v1645
    %1649 = vrot.lane.b32.xlu0 %v1647, 32
    %v1650 = vpop.permute.xlu0 %1649
    %v1652 = vadd.f32 %v1642, %v1650
    %v1653 = vtanh.pop %v1652
    %1655 = vrot.lane.b32.xlu0 %v1653, 32
    %v1656 = vpop.permute.xlu0 %1655
    %v1658 = vmul.f32 %v1640, %v1656
    %v1659 = vsel %vm693, %v1652, %v1550
    %v1660 = vsel %vm693, %v1658, %v1551
    %v1661 = vsel %vm693, %v1658, 0.0
    %1663 = vrot.lane.b32.xlu0 %v1661, 64
    %v1664 = vpop.permute.xlu0 %1663
    %1666 = vst.msk [vmem:[#allocation2 + $0x8] sm:$0x3] %vm255, %v1664
    %v1667 = vld [vmem:[#allocation3 + $0xa] sm:$0x3]
    %1669 = vrot.lane.b32.xlu0 %v1660, 64
    %v1670 = vpop.permute.xlu0 %1669
    %v1671 = vsel %vm145, %v1670, 0
    %1673 = vmatprep.subr.mxu0 0.0
    %1674 = vmatpush1.msra.mxu0 %v1037
    %1675 = vmatprep.subr.mxu0 0.0
    %1676 = vmatpush1.msra.mxu0 %v1038
    %1677 = vmatprep.subr.mxu0 0.0
    %1678 = vmatpush1.msra.mxu0 %v1039
    %1679 = vmatprep.subr.mxu0 0.0
    %1680 = vmatpush1.msra.mxu0 %v1040
    %1681 = vmatprep.subr.mxu0 0.0
    %1682 = vmatpush1.msra.mxu0 0.0
    %1683 = vmatprep.subr.mxu0 0.0
    %1684 = vmatpush1.msra.mxu0 0.0
    %1685 = vmatprep.subr.mxu0 0.0
    %1686 = vmatpush1.msra.mxu0 0.0
    %1687 = vmatprep.subr.mxu0 0.0
    %1688 = vmatpush1.msra.mxu0 0.0
    %1689 = vmatprep.subr.mxu0 0.0
    %1690 = vmatpush1.msra.mxu0 0.0
    %1691 = vmatprep.subr.mxu0 0.0
    %1692 = vmatpush1.msra.mxu0 0.0
    %1693 = vmatprep.subr.mxu0 0.0
    %1694 = vmatpush1.msra.mxu0 0.0
    %1695 = vmatprep.subr.mxu0 0.0
    %1696 = vmatpush1.msra.mxu0 0.0
    %1697 = vmatprep.subr.mxu0 0.0
    %1698 = vmatpush1.msra.mxu0 0.0
    %1699 = vmatprep.subr.mxu0 0.0
    %1700 = vmatpush1.msra.mxu0 0.0
    %1701 = vmatprep.subr.mxu0 0.0
    %1702 = vmatpush1.msra.mxu0 0.0
    %1703 = vmatprep.subr.mxu0 0.0
    %1704 = vmatpush1.msra.mxu0 0.0
    %1705 = vmatprep.subr.mxu0 0.0
    %1706 = vmatpush1.msra.mxu0 0.0
    %1707 = vmatprep.subr.mxu0 0.0
    %1708 = vmatpush1.msra.mxu0 0.0
    %1709 = vmatprep.subr.mxu0 0.0
    %1710 = vmatpush1.msra.mxu0 0.0
    %1711 = vmatprep.subr.mxu0 0.0
    %1712 = vmatpush1.msra.mxu0 0.0
    %1713 = vmatprep.subr.mxu0 0.0
    %1714 = vmatpush1.msra.mxu0 0.0
    %1715 = vmatprep.subr.mxu0 0.0
    %1716 = vmatpush1.msra.mxu0 0.0
    %1717 = vmatprep.subr.mxu0 0.0
    %1718 = vmatpush1.msra.mxu0 0.0
    %1719 = vmatprep.subr.mxu0 0.0
    %1720 = vmatpush1.msra.mxu0 0.0
    %1721 = vmatprep.subr.mxu0 0.0
    %1722 = vmatpush1.msra.mxu0 0.0
    %1723 = vmatprep.subr.mxu0 0.0
    %1724 = vmatpush1.msra.mxu0 0.0
    %1725 = vmatprep.subr.mxu0 0.0
    %1726 = vmatpush1.msra.mxu0 0.0
    %1727 = vmatprep.subr.mxu0 0.0
    %1728 = vmatpush1.msra.mxu0 0.0
    %1729 = vmatprep.subr.mxu0 0.0
    %1730 = vmatpush1.msra.mxu0 0.0
    %1731 = vmatprep.subr.mxu0 0.0
    %1732 = vmatpush1.msra.mxu0 0.0
    %1733 = vmatprep.subr.mxu0 0.0
    %1734 = vmatpush1.msra.mxu0 0.0
    %1735 = vmatprep.subr.mxu0 0.0
    %1736 = vmatpush1.msra.mxu0 0.0
    %1737 = vmatprep.mubr.f32.mxu0 0.0
    %1738 = vmatmul.mubr.f32.gmra.mrb[0].mxu0 %v1671
    %v1739 = vpop.f32.mrb[0].mxu0
    %v1740 = vadd.f32 0.0, %v1739
    %v1741 = vpop.f32.mrb[0].mxu0
    %1742 = vdwg.mxu0
    %v1743 = vadd.f32 %v1667, %v1740
    %v1744 = vxor.u32 %v1743, 2147483648
    %v1745 = vmul.f32 %v1744, 1.442695
    %v1746 = vpow.pop %v1745
    %v1747 = vadd.f32 %v1746, 1.0
    %v1748 = vrcp.pop %v1747
    %v1749 = vmul.f32 1.0, %v1748
    %v1750 = vtanh.pop %v1743
    %v1751 = vmul.f32 %v1749, %v1659
    %1753 = vrot.lane.b32.xlu0 %v1750, 32
    %v1754 = vpop.permute.xlu0 %1753
    %v1756 = vmul.f32 %v1749, %v1754
    %1758 = vrot.lane.b32.xlu0 %v1756, 32
    %v1759 = vpop.permute.xlu0 %1758
    %v1761 = vadd.f32 %v1751, %v1759
    %v1762 = vtanh.pop %v1761
    %1764 = vrot.lane.b32.xlu0 %v1762, 32
    %v1765 = vpop.permute.xlu0 %1764
    %v1767 = vmul.f32 %v1749, %v1765
    %v1768 = vsel %vm804, %v1761, %v1659
    %v1769 = vsel %vm804, %v1767, %v1660
    %v1770 = vsel %vm804, %v1767, 0.0
    %1772 = vrot.lane.b32.xlu0 %v1770, 64
    %v1773 = vpop.permute.xlu0 %1772
    %1775 = vst.msk [vmem:[#allocation2 + $0xa] sm:$0x3] %vm255, %v1773
    %v1776 = vld [vmem:[#allocation3 + $0xc] sm:$0x3]
    %1778 = vrot.lane.b32.xlu0 %v1769, 64
    %v1779 = vpop.permute.xlu0 %1778
    %v1780 = vsel %vm145, %v1779, 0
    %1782 = vmatprep.subr.mxu0 0.0
    %1783 = vmatpush1.msra.mxu0 %v1037
    %1784 = vmatprep.subr.mxu0 0.0
    %1785 = vmatpush1.msra.mxu0 %v1038
    %1786 = vmatprep.subr.mxu0 0.0
    %1787 = vmatpush1.msra.mxu0 %v1039
    %1788 = vmatprep.subr.mxu0 0.0
    %1789 = vmatpush1.msra.mxu0 %v1040
    %1790 = vmatprep.subr.mxu0 0.0
    %1791 = vmatpush1.msra.mxu0 0.0
    %1792 = vmatprep.subr.mxu0 0.0
    %1793 = vmatpush1.msra.mxu0 0.0
    %1794 = vmatprep.subr.mxu0 0.0
    %1795 = vmatpush1.msra.mxu0 0.0
    %1796 = vmatprep.subr.mxu0 0.0
    %1797 = vmatpush1.msra.mxu0 0.0
    %1798 = vmatprep.subr.mxu0 0.0
    %1799 = vmatpush1.msra.mxu0 0.0
    %1800 = vmatprep.subr.mxu0 0.0
    %1801 = vmatpush1.msra.mxu0 0.0
    %1802 = vmatprep.subr.mxu0 0.0
    %1803 = vmatpush1.msra.mxu0 0.0
    %1804 = vmatprep.subr.mxu0 0.0
    %1805 = vmatpush1.msra.mxu0 0.0
    %1806 = vmatprep.subr.mxu0 0.0
    %1807 = vmatpush1.msra.mxu0 0.0
    %1808 = vmatprep.subr.mxu0 0.0
    %1809 = vmatpush1.msra.mxu0 0.0
    %1810 = vmatprep.subr.mxu0 0.0
    %1811 = vmatpush1.msra.mxu0 0.0
    %1812 = vmatprep.subr.mxu0 0.0
    %1813 = vmatpush1.msra.mxu0 0.0
    %1814 = vmatprep.subr.mxu0 0.0
    %1815 = vmatpush1.msra.mxu0 0.0
    %1816 = vmatprep.subr.mxu0 0.0
    %1817 = vmatpush1.msra.mxu0 0.0
    %1818 = vmatprep.subr.mxu0 0.0
    %1819 = vmatpush1.msra.mxu0 0.0
    %1820 = vmatprep.subr.mxu0 0.0
    %1821 = vmatpush1.msra.mxu0 0.0
    %1822 = vmatprep.subr.mxu0 0.0
    %1823 = vmatpush1.msra.mxu0 0.0
    %1824 = vmatprep.subr.mxu0 0.0
    %1825 = vmatpush1.msra.mxu0 0.0
    %1826 = vmatprep.subr.mxu0 0.0
    %1827 = vmatpush1.msra.mxu0 0.0
    %1828 = vmatprep.subr.mxu0 0.0
    %1829 = vmatpush1.msra.mxu0 0.0
    %1830 = vmatprep.subr.mxu0 0.0
    %1831 = vmatpush1.msra.mxu0 0.0
    %1832 = vmatprep.subr.mxu0 0.0
    %1833 = vmatpush1.msra.mxu0 0.0
    %1834 = vmatprep.subr.mxu0 0.0
    %1835 = vmatpush1.msra.mxu0 0.0
    %1836 = vmatprep.subr.mxu0 0.0
    %1837 = vmatpush1.msra.mxu0 0.0
    %1838 = vmatprep.subr.mxu0 0.0
    %1839 = vmatpush1.msra.mxu0 0.0
    %1840 = vmatprep.subr.mxu0 0.0
    %1841 = vmatpush1.msra.mxu0 0.0
    %1842 = vmatprep.subr.mxu0 0.0
    %1843 = vmatpush1.msra.mxu0 0.0
    %1844 = vmatprep.subr.mxu0 0.0
    %1845 = vmatpush1.msra.mxu0 0.0
    %1846 = vmatprep.mubr.f32.mxu0 0.0
    %1847 = vmatmul.mubr.f32.gmra.mrb[0].mxu0 %v1780
    %v1848 = vpop.f32.mrb[0].mxu0
    %v1849 = vadd.f32 0.0, %v1848
    %v1850 = vpop.f32.mrb[0].mxu0
    %1851 = vdwg.mxu0
    %v1852 = vadd.f32 %v1776, %v1849
    %v1853 = vxor.u32 %v1852, 2147483648
    %v1854 = vmul.f32 %v1853, 1.442695
    %v1855 = vpow.pop %v1854
    %v1856 = vadd.f32 %v1855, 1.0
    %v1857 = vrcp.pop %v1856
    %v1858 = vmul.f32 1.0, %v1857
    %v1859 = vtanh.pop %v1852
    %v1860 = vmul.f32 %v1858, %v1768
    %1862 = vrot.lane.b32.xlu0 %v1859, 32
    %v1863 = vpop.permute.xlu0 %1862
    %v1865 = vmul.f32 %v1858, %v1863
    %1867 = vrot.lane.b32.xlu0 %v1865, 32
    %v1868 = vpop.permute.xlu0 %1867
    %v1870 = vadd.f32 %v1860, %v1868
    %v1871 = vtanh.pop %v1870
    %1873 = vrot.lane.b32.xlu0 %v1871, 32
    %v1874 = vpop.permute.xlu0 %1873
    %v1876 = vmul.f32 %v1858, %v1874
    %v1877 = vsel %vm915, %v1870, %v1768
    %v1878 = vsel %vm915, %v1876, %v1769
    %v1879 = vsel %vm915, %v1876, 0.0
    %1881 = vrot.lane.b32.xlu0 %v1879, 64
    %v1882 = vpop.permute.xlu0 %1881
    %1884 = vst.msk [vmem:[#allocation2 + $0xc] sm:$0x3] %vm255, %v1882
    %v1885 = vld [vmem:[#allocation3 + $0xe] sm:$0x3]
    %1887 = vrot.lane.b32.xlu0 %v1878, 64
    %v1888 = vpop.permute.xlu0 %1887
    %v1889 = vsel %vm145, %v1888, 0
    %1891 = vmatprep.subr.mxu0 0.0
    %1892 = vmatpush1.msra.mxu0 %v1037
    %1893 = vmatprep.subr.mxu0 0.0
    %1894 = vmatpush1.msra.mxu0 %v1038
    %1895 = vmatprep.subr.mxu0 0.0
    %1896 = vmatpush1.msra.mxu0 %v1039
    %1897 = vmatprep.subr.mxu0 0.0
    %1898 = vmatpush1.msra.mxu0 %v1040
    %1899 = vmatprep.subr.mxu0 0.0
    %1900 = vmatpush1.msra.mxu0 0.0
    %1901 = vmatprep.subr.mxu0 0.0
    %1902 = vmatpush1.msra.mxu0 0.0
    %1903 = vmatprep.subr.mxu0 0.0
    %1904 = vmatpush1.msra.mxu0 0.0
    %1905 = vmatprep.subr.mxu0 0.0
    %1906 = vmatpush1.msra.mxu0 0.0
    %1907 = vmatprep.subr.mxu0 0.0
    %1908 = vmatpush1.msra.mxu0 0.0
    %1909 = vmatprep.subr.mxu0 0.0
    %1910 = vmatpush1.msra.mxu0 0.0
    %1911 = vmatprep.subr.mxu0 0.0
    %1912 = vmatpush1.msra.mxu0 0.0
    %1913 = vmatprep.subr.mxu0 0.0
    %1914 = vmatpush1.msra.mxu0 0.0
    %1915 = vmatprep.subr.mxu0 0.0
    %1916 = vmatpush1.msra.mxu0 0.0
    %1917 = vmatprep.subr.mxu0 0.0
    %1918 = vmatpush1.msra.mxu0 0.0
    %1919 = vmatprep.subr.mxu0 0.0
    %1920 = vmatpush1.msra.mxu0 0.0
    %1921 = vmatprep.subr.mxu0 0.0
    %1922 = vmatpush1.msra.mxu0 0.0
    %1923 = vmatprep.subr.mxu0 0.0
    %1924 = vmatpush1.msra.mxu0 0.0
    %1925 = vmatprep.subr.mxu0 0.0
    %1926 = vmatpush1.msra.mxu0 0.0
    %1927 = vmatprep.subr.mxu0 0.0
    %1928 = vmatpush1.msra.mxu0 0.0
    %1929 = vmatprep.subr.mxu0 0.0
    %1930 = vmatpush1.msra.mxu0 0.0
    %1931 = vmatprep.subr.mxu0 0.0
    %1932 = vmatpush1.msra.mxu0 0.0
    %1933 = vmatprep.subr.mxu0 0.0
    %1934 = vmatpush1.msra.mxu0 0.0
    %1935 = vmatprep.subr.mxu0 0.0
    %1936 = vmatpush1.msra.mxu0 0.0
    %1937 = vmatprep.subr.mxu0 0.0
    %1938 = vmatpush1.msra.mxu0 0.0
    %1939 = vmatprep.subr.mxu0 0.0
    %1940 = vmatpush1.msra.mxu0 0.0
    %1941 = vmatprep.subr.mxu0 0.0
    %1942 = vmatpush1.msra.mxu0 0.0
    %1943 = vmatprep.subr.mxu0 0.0
    %1944 = vmatpush1.msra.mxu0 0.0
    %1945 = vmatprep.subr.mxu0 0.0
    %1946 = vmatpush1.msra.mxu0 0.0
    %1947 = vmatprep.subr.mxu0 0.0
    %1948 = vmatpush1.msra.mxu0 0.0
    %1949 = vmatprep.subr.mxu0 0.0
    %1950 = vmatpush1.msra.mxu0 0.0
    %1951 = vmatprep.subr.mxu0 0.0
    %1952 = vmatpush1.msra.mxu0 0.0
    %1953 = vmatprep.subr.mxu0 0.0
    %1954 = vmatpush1.msra.mxu0 0.0
    %1955 = vmatprep.mubr.f32.mxu0 0.0
    %1956 = vmatmul.mubr.f32.gmra.mrb[0].mxu0 %v1889
    %v1957 = vpop.f32.mrb[0].mxu0
    %v1958 = vadd.f32 0.0, %v1957
    %v1959 = vpop.f32.mrb[0].mxu0
    %1960 = vdwg.mxu0
    %v1961 = vadd.f32 %v1885, %v1958
    %v1962 = vxor.u32 %v1961, 2147483648
    %v1963 = vmul.f32 %v1962, 1.442695
    %v1964 = vpow.pop %v1963
    %v1965 = vadd.f32 %v1964, 1.0
    %v1966 = vrcp.pop %v1965
    %v1967 = vmul.f32 1.0, %v1966
    %v1968 = vtanh.pop %v1961
    %v1969 = vmul.f32 %v1967, %v1877
    %1971 = vrot.lane.b32.xlu0 %v1968, 32
    %v1972 = vpop.permute.xlu0 %1971
    %v1974 = vmul.f32 %v1967, %v1972
    %1976 = vrot.lane.b32.xlu0 %v1974, 32
    %v1977 = vpop.permute.xlu0 %1976
    %v1979 = vadd.f32 %v1969, %v1977
    %v1980 = vtanh.pop %v1979
    %1982 = vrot.lane.b32.xlu0 %v1980, 32
    %v1983 = vpop.permute.xlu0 %1982
    %v1985 = vmul.f32 %v1967, %v1983
    %v1986 = vsel %vm1026, %v1985, 0.0
    %1988 = vrot.lane.b32.xlu0 %v1986, 64
    %v1989 = vpop.permute.xlu0 %1988
    %1991 = vst.msk [vmem:[#allocation2 + $0xe] sm:$0x3] %vm255, %v1989
    %v1992 = vld [vmem:[#allocation2] sm:$0xff]
    %v1993 = vld [vmem:[#allocation2 + $0x8] sm:$0xff]
    %v1994 = vld [vmem:[#allocation4] sm:$0xff]
    %v1995 = vld [vmem:[#allocation4 + $0x8] sm:$0xff]
    %v1996 = vld [vmem:[%s4] sm:$0xff]
    %v1997 = vld [vmem:[%s4 + $0x8] sm:$0xff]
    %v1998 = vld [vmem:[%s4 + $0x10] sm:$0xff]
    %v1999 = vld [vmem:[%s4 + $0x18] sm:$0xff]
    %v2000 = vld [vmem:[%s4 + $0x20] sm:$0xff]
    %v2001 = vld [vmem:[%s4 + $0x28] sm:$0xff]
    %v2002 = vld [vmem:[%s4 + $0x30] sm:$0xff]
    %v2003 = vld [vmem:[%s4 + $0x38] sm:$0xff]
    %v2004 = vld [vmem:[%s4 + $0x40] sm:$0xff]
    %v2005 = vld [vmem:[%s4 + $0x48] sm:$0xf]
    %v2006 = vld [vmem:[%s4 + $0x4c] sm:$0x1]
    %v2007 = vld [vmem:[%s4 + $0x4d] sm:$0x1]
    %v2008 = vld [vmem:[%s4 + $0x4e] sm:$0x1]
    %v2009 = vld [vmem:[%s5] sm:$0xff]
    %v2010 = vld [vmem:[%s5 + $0x8] sm:$0xff]
    %v2011 = vld [vmem:[%s5 + $0x10] sm:$0xf]
    %v2012 = vld [vmem:[%s5 + $0x14] sm:$0x1]
    %v2013 = vld [vmem:[%s5 + $0x15] sm:$0x1]
    %v2014 = vld [vmem:[%s5 + $0x16] sm:$0x1]
    %v2016 = vsel %vm55, %v1994, 0
    %v2019 = vsel %vm55, %v1995, 0
    %v2022 = vsel %vm62, %v2005, 0
    %2024 = vmatprep.subr.mxu0 0.0
    %2025 = vmatpush1.msra.mxu0 %v2000
    %2026 = vmatprep.subr.mxu0 0.0
    %2027 = vmatpush1.msra.mxu0 %v2001
    %2028 = vmatprep.subr.mxu0 0.0
    %2029 = vmatpush1.msra.mxu0 %v2002
    %2030 = vmatprep.subr.mxu0 0.0
    %2031 = vmatpush1.msra.mxu0 %v2003
    %2032 = vmatprep.subr.mxu0 0.0
    %2033 = vmatpush1.msra.mxu0 %v2004
    %2034 = vmatprep.subr.mxu0 0.0
    %2035 = vmatpush1.msra.mxu0 %v2022
    %2036 = vmatprep.subr.mxu0 0.0
    %2037 = vmatpush1.msra.mxu0 0.0
    %2038 = vmatprep.subr.mxu0 0.0
    %2039 = vmatpush1.msra.mxu0 0.0
    %2040 = vmatprep.subr.mxu0 0.0
    %2041 = vmatpush1.msra.mxu0 0.0
    %2042 = vmatprep.subr.mxu0 0.0
    %2043 = vmatpush1.msra.mxu0 0.0
    %2044 = vmatprep.subr.mxu0 0.0
    %2045 = vmatpush1.msra.mxu0 0.0
    %2046 = vmatprep.subr.mxu0 0.0
    %2047 = vmatpush1.msra.mxu0 0.0
    %2048 = vmatprep.subr.mxu0 0.0
    %2049 = vmatpush1.msra.mxu0 0.0
    %2050 = vmatprep.subr.mxu0 0.0
    %2051 = vmatpush1.msra.mxu0 0.0
    %2052 = vmatprep.subr.mxu0 0.0
    %2053 = vmatpush1.msra.mxu0 0.0
    %2054 = vmatprep.subr.mxu0 0.0
    %2055 = vmatpush1.msra.mxu0 0.0
    %2056 = vmatprep.subr.mxu0 0.0
    %2057 = vmatpush1.msra.mxu0 0.0
    %2058 = vmatprep.subr.mxu0 0.0
    %2059 = vmatpush1.msra.mxu0 0.0
    %2060 = vmatprep.subr.mxu0 0.0
    %2061 = vmatpush1.msra.mxu0 0.0
    %2062 = vmatprep.subr.mxu0 0.0
    %2063 = vmatpush1.msra.mxu0 0.0
    %2064 = vmatprep.subr.mxu0 0.0
    %2065 = vmatpush1.msra.mxu0 0.0
    %2066 = vmatprep.subr.mxu0 0.0
    %2067 = vmatpush1.msra.mxu0 0.0
    %2068 = vmatprep.subr.mxu0 0.0
    %2069 = vmatpush1.msra.mxu0 0.0
    %2070 = vmatprep.subr.mxu0 0.0
    %2071 = vmatpush1.msra.mxu0 0.0
    %2072 = vmatprep.subr.mxu0 0.0
    %2073 = vmatpush1.msra.mxu0 0.0
    %2074 = vmatprep.subr.mxu0 0.0
    %2075 = vmatpush1.msra.mxu0 0.0
    %2076 = vmatprep.subr.mxu0 0.0
    %2077 = vmatpush1.msra.mxu0 0.0
    %2078 = vmatprep.subr.mxu0 0.0
    %2079 = vmatpush1.msra.mxu0 0.0
    %2080 = vmatprep.subr.mxu0 0.0
    %2081 = vmatpush1.msra.mxu0 0.0
    %2082 = vmatprep.subr.mxu0 0.0
    %2083 = vmatpush1.msra.mxu0 0.0
    %2084 = vmatprep.subr.mxu0 0.0
    %2085 = vmatpush1.msra.mxu0 0.0
    %2086 = vmatprep.subr.mxu0 0.0
    %2087 = vmatpush1.msra.mxu0 0.0
    %2088 = vmatprep.mubr.f32.mxu0 0.0
    %2089 = vmatmul.mubr.f32.gmra.mrb[0].mxu0 %v2016
    %v2090 = vpop.f32.mrb[0].mxu0
    %v2091 = vadd.f32 0.0, %v2090
    %v2092 = vpop.f32.mrb[0].mxu0
    %2093 = vmatprep.mubr.f32.mxu0 0.0
    %2094 = vmatmul.mubr.f32.gmra.mrb[0].mxu0 %v2019
    %v2095 = vpop.f32.mrb[0].mxu0
    %v2096 = vadd.f32 0.0, %v2095
    %v2097 = vpop.f32.mrb[0].mxu0
    %2098 = vdwg.mxu0
    %v2100 = vsel %vm145, %v1992, 0
    %v2103 = vsel %vm145, %v1993, 0
    %2105 = vmatprep.subr.mxu0 0.0
    %2106 = vmatpush1.msra.mxu0 %v1996
    %2107 = vmatprep.subr.mxu0 0.0
    %2108 = vmatpush1.msra.mxu0 %v1997
    %2109 = vmatprep.subr.mxu0 0.0
    %2110 = vmatpush1.msra.mxu0 %v1998
    %2111 = vmatprep.subr.mxu0 0.0
    %2112 = vmatpush1.msra.mxu0 %v1999
    %2113 = vmatprep.subr.mxu0 0.0
    %2114 = vmatpush1.msra.mxu0 0.0
    %2115 = vmatprep.subr.mxu0 0.0
    %2116 = vmatpush1.msra.mxu0 0.0
    %2117 = vmatprep.subr.mxu0 0.0
    %2118 = vmatpush1.msra.mxu0 0.0
    %2119 = vmatprep.subr.mxu0 0.0
    %2120 = vmatpush1.msra.mxu0 0.0
    %2121 = vmatprep.subr.mxu0 0.0
    %2122 = vmatpush1.msra.mxu0 0.0
    %2123 = vmatprep.subr.mxu0 0.0
    %2124 = vmatpush1.msra.mxu0 0.0
    %2125 = vmatprep.subr.mxu0 0.0
    %2126 = vmatpush1.msra.mxu0 0.0
    %2127 = vmatprep.subr.mxu0 0.0
    %2128 = vmatpush1.msra.mxu0 0.0
    %2129 = vmatprep.subr.mxu0 0.0
    %2130 = vmatpush1.msra.mxu0 0.0
    %2131 = vmatprep.subr.mxu0 0.0
    %2132 = vmatpush1.msra.mxu0 0.0
    %2133 = vmatprep.subr.mxu0 0.0
    %2134 = vmatpush1.msra.mxu0 0.0
    %2135 = vmatprep.subr.mxu0 0.0
    %2136 = vmatpush1.msra.mxu0 0.0
    %2137 = vmatprep.subr.mxu0 0.0
    %2138 = vmatpush1.msra.mxu0 0.0
    %2139 = vmatprep.subr.mxu0 0.0
    %2140 = vmatpush1.msra.mxu0 0.0
    %2141 = vmatprep.subr.mxu0 0.0
    %2142 = vmatpush1.msra.mxu0 0.0
    %2143 = vmatprep.subr.mxu0 0.0
    %2144 = vmatpush1.msra.mxu0 0.0
    %2145 = vmatprep.subr.mxu0 0.0
    %2146 = vmatpush1.msra.mxu0 0.0
    %2147 = vmatprep.subr.mxu0 0.0
    %2148 = vmatpush1.msra.mxu0 0.0
    %2149 = vmatprep.subr.mxu0 0.0
    %2150 = vmatpush1.msra.mxu0 0.0
    %2151 = vmatprep.subr.mxu0 0.0
    %2152 = vmatpush1.msra.mxu0 0.0
    %2153 = vmatprep.subr.mxu0 0.0
    %2154 = vmatpush1.msra.mxu0 0.0
    %2155 = vmatprep.subr.mxu0 0.0
    %2156 = vmatpush1.msra.mxu0 0.0
    %2157 = vmatprep.subr.mxu0 0.0
    %2158 = vmatpush1.msra.mxu0 0.0
    %2159 = vmatprep.subr.mxu0 0.0
    %2160 = vmatpush1.msra.mxu0 0.0
    %2161 = vmatprep.subr.mxu0 0.0
    %2162 = vmatpush1.msra.mxu0 0.0
    %2163 = vmatprep.subr.mxu0 0.0
    %2164 = vmatpush1.msra.mxu0 0.0
    %2165 = vmatprep.subr.mxu0 0.0
    %2166 = vmatpush1.msra.mxu0 0.0
    %2167 = vmatprep.subr.mxu0 0.0
    %2168 = vmatpush1.msra.mxu0 0.0
    %2169 = vmatprep.mubr.f32.mxu0 0.0
    %2170 = vmatmul.mubr.f32.gmra.mrb[0].mxu0 %v2100
    %v2171 = vpop.f32.mrb[0].mxu0
    %v2172 = vadd.f32 %v2091, %v2171
    %v2173 = vpop.f32.mrb[0].mxu0
    %2174 = vmatprep.mubr.f32.mxu0 0.0
    %2175 = vmatmul.mubr.f32.gmra.mrb[0].mxu0 %v2103
    %v2176 = vpop.f32.mrb[0].mxu0
    %v2177 = vadd.f32 %v2096, %v2176
    %v2178 = vpop.f32.mrb[0].mxu0
    %2179 = vdwg.mxu0
    %v2180 = vlaneseq
    %v2181 = vshrl.u32 %v2180, 7
    %v2182 = vsub.s32 0, %v2181
    %v2183 = vrot.slane %v2006, %v2182
    %v2184 = vadd.f32 %v2172, %v2183
    %v2185 = vadd.f32 %v2177, %v2183
    %v2186 = vmax.f32 %v2184, 0.0
    %v2187 = vmax.f32 %v2185, 0.0
    %vm2188 = vcmask 162816
    %v2189 = vsel %vm2188, %v2186, 0.0
    %v2190 = vsel %vm2188, %v2187, 0.0
    %v2191 = vadd.f32 %v2189, %v2190
    %v2192 = vrot.slane %v2191, 4
    %v2193 = vadd.f32 %v2191, %v2192
    %v2194 = vrot.slane %v2193, 2
    %v2195 = vadd.f32 %v2193, %v2194
    %v2196 = vrot.slane %v2195, 1
    %v2197 = vadd.f32 %v2195, %v2196
    %v2198 = vrcp.pop 16.0
    %v2199 = vmul.f32 %v2197, %v2198
    %v2200 = vsub.f32 %v2186, %v2199
    %v2201 = vsub.f32 %v2187, %v2199
    %v2202 = vmul.f32 %v2200, %v2200
    %v2203 = vmul.f32 %v2201, %v2201
    %v2204 = vsel %vm2188, %v2202, 0.0
    %v2205 = vsel %vm2188, %v2203, 0.0
    %v2206 = vadd.f32 %v2204, %v2205
    %v2207 = vrot.slane %v2206, 4
    %v2208 = vadd.f32 %v2206, %v2207
    %v2209 = vrot.slane %v2208, 2
    %v2210 = vadd.f32 %v2208, %v2209
    %v2211 = vrot.slane %v2210, 1
    %v2212 = vadd.f32 %v2210, %v2211
    %v2213 = vmul.f32 %v2212, %v2198
    %v2214 = vadd.f32 %v2213, 1e-05
    %v2215 = vrsqrt.pop %v2214
    %v2216 = vmul.f32 %v2200, %v2215
    %v2217 = vmul.f32 %v2201, %v2215
    %v2218 = vlaneseq
    %v2219 = vshrl.u32 %v2218, 7
    %v2220 = vsub.s32 0, %v2219
    %v2221 = vrot.slane %v2007, %v2220
    %v2222 = vmul.f32 %v2216, %v2221
    %v2223 = vmul.f32 %v2217, %v2221
    %v2224 = vlaneseq
    %v2225 = vshrl.u32 %v2224, 7
    %v2226 = vsub.s32 0, %v2225
    %v2227 = vrot.slane %v2008, %v2226
    %v2228 = vadd.f32 %v2222, %v2227
    %v2229 = vadd.f32 %v2223, %v2227
    %v2230 = vlaneseq
    %v2231 = vshrl.u32 %v2230, 7
    %v2232 = vsub.s32 0, %v2231
    %v2233 = vrot.slane %v2012, %v2232
    %v2235 = vsel %vm2188, %v2228, 0
    %v2238 = vsel %vm2188, %v2229, 0
    %v2241 = vsel %vm62, %v2011, 0
    %2243 = vmatprep.subr.mxu0 0.0
    %2244 = vmatpush1.msra.mxu0 %v2009
    %2245 = vmatprep.subr.mxu0 0.0
    %2246 = vmatpush1.msra.mxu0 %v2010
    %2247 = vmatprep.subr.mxu0 0.0
    %2248 = vmatpush1.msra.mxu0 %v2241
    %2249 = vmatprep.subr.mxu0 0.0
    %2250 = vmatpush1.msra.mxu0 0.0
    %2251 = vmatprep.subr.mxu0 0.0
    %2252 = vmatpush1.msra.mxu0 0.0
    %2253 = vmatprep.subr.mxu0 0.0
    %2254 = vmatpush1.msra.mxu0 0.0
    %2255 = vmatprep.subr.mxu0 0.0
    %2256 = vmatpush1.msra.mxu0 0.0
    %2257 = vmatprep.subr.mxu0 0.0
    %2258 = vmatpush1.msra.mxu0 0.0
    %2259 = vmatprep.subr.mxu0 0.0
    %2260 = vmatpush1.msra.mxu0 0.0
    %2261 = vmatprep.subr.mxu0 0.0
    %2262 = vmatpush1.msra.mxu0 0.0
    %2263 = vmatprep.subr.mxu0 0.0
    %2264 = vmatpush1.msra.mxu0 0.0
    %2265 = vmatprep.subr.mxu0 0.0
    %2266 = vmatpush1.msra.mxu0 0.0
    %2267 = vmatprep.subr.mxu0 0.0
    %2268 = vmatpush1.msra.mxu0 0.0
    %2269 = vmatprep.subr.mxu0 0.0
    %2270 = vmatpush1.msra.mxu0 0.0
    %2271 = vmatprep.subr.mxu0 0.0
    %2272 = vmatpush1.msra.mxu0 0.0
    %2273 = vmatprep.subr.mxu0 0.0
    %2274 = vmatpush1.msra.mxu0 0.0
    %2275 = vmatprep.subr.mxu0 0.0
    %2276 = vmatpush1.msra.mxu0 0.0
    %2277 = vmatprep.subr.mxu0 0.0
    %2278 = vmatpush1.msra.mxu0 0.0
    %2279 = vmatprep.subr.mxu0 0.0
    %2280 = vmatpush1.msra.mxu0 0.0
    %2281 = vmatprep.subr.mxu0 0.0
    %2282 = vmatpush1.msra.mxu0 0.0
    %2283 = vmatprep.subr.mxu0 0.0
    %2284 = vmatpush1.msra.mxu0 0.0
    %2285 = vmatprep.subr.mxu0 0.0
    %2286 = vmatpush1.msra.mxu0 0.0
    %2287 = vmatprep.subr.mxu0 0.0
    %2288 = vmatpush1.msra.mxu0 0.0
    %2289 = vmatprep.subr.mxu0 0.0
    %2290 = vmatpush1.msra.mxu0 0.0
    %2291 = vmatprep.subr.mxu0 0.0
    %2292 = vmatpush1.msra.mxu0 0.0
    %2293 = vmatprep.subr.mxu0 0.0
    %2294 = vmatpush1.msra.mxu0 0.0
    %2295 = vmatprep.subr.mxu0 0.0
    %2296 = vmatpush1.msra.mxu0 0.0
    %2297 = vmatprep.subr.mxu0 0.0
    %2298 = vmatpush1.msra.mxu0 0.0
    %2299 = vmatprep.subr.mxu0 0.0
    %2300 = vmatpush1.msra.mxu0 0.0
    %2301 = vmatprep.subr.mxu0 0.0
    %2302 = vmatpush1.msra.mxu0 0.0
    %2303 = vmatprep.subr.mxu0 0.0
    %2304 = vmatpush1.msra.mxu0 0.0
    %2305 = vmatprep.subr.mxu0 0.0
    %2306 = vmatpush1.msra.mxu0 0.0
    %2307 = vmatprep.mubr.f32.mxu0 0.0
    %2308 = vmatmul.mubr.f32.gmra.mrb[0].mxu0 %v2235
    %v2309 = vpop.f32.mrb[0].mxu0
    %v2310 = vadd.f32 %v2233, %v2309
    %v2311 = vpop.f32.mrb[0].mxu0
    %2312 = vmatprep.mubr.f32.mxu0 0.0
    %2313 = vmatmul.mubr.f32.gmra.mrb[0].mxu0 %v2238
    %v2314 = vpop.f32.mrb[0].mxu0
    %v2315 = vadd.f32 %v2233, %v2314
    %v2316 = vpop.f32.mrb[0].mxu0
    %2317 = vdwg.mxu0
    %v2318 = vmax.f32 %v2310, 0.0
    %v2319 = vmax.f32 %v2315, 0.0
    %vm2320 = vcmask 80896
    %v2321 = vsel %vm2320, %v2318, 0.0
    %v2322 = vsel %vm2320, %v2319, 0.0
    %v2323 = vadd.f32 %v2321, %v2322
    %v2324 = vrot.slane %v2323, 4
    %v2325 = vadd.f32 %v2323, %v2324
    %v2326 = vrot.slane %v2325, 2
    %v2327 = vadd.f32 %v2325, %v2326
    %v2328 = vrot.slane %v2327, 1
    %v2329 = vadd.f32 %v2327, %v2328
    %v2330 = vmul.f32 %v2329, %v2198
    %v2331 = vsub.f32 %v2318, %v2330
    %v2332 = vsub.f32 %v2319, %v2330
    %v2333 = vmul.f32 %v2331, %v2331
    %v2334 = vmul.f32 %v2332, %v2332
    %v2335 = vsel %vm2320, %v2333, 0.0
    %v2336 = vsel %vm2320, %v2334, 0.0
    %v2337 = vadd.f32 %v2335, %v2336
    %v2338 = vrot.slane %v2337, 4
    %v2339 = vadd.f32 %v2337, %v2338
    %v2340 = vrot.slane %v2339, 2
    %v2341 = vadd.f32 %v2339, %v2340
    %v2342 = vrot.slane %v2341, 1
    %v2343 = vadd.f32 %v2341, %v2342
    %v2344 = vmul.f32 %v2343, %v2198
    %v2345 = vadd.f32 %v2344, 1e-05
    %v2346 = vrsqrt.pop %v2345
    %v2347 = vmul.f32 %v2331, %v2346
    %v2348 = vmul.f32 %v2332, %v2346
    %v2349 = vlaneseq
    %v2350 = vshrl.u32 %v2349, 7
    %v2351 = vsub.s32 0, %v2350
    %v2352 = vrot.slane %v2013, %v2351
    %v2353 = vmul.f32 %v2347, %v2352
    %v2354 = vmul.f32 %v2348, %v2352
    %v2355 = vlaneseq
    %v2356 = vshrl.u32 %v2355, 7
    %v2357 = vsub.s32 0, %v2356
    %v2358 = vrot.slane %v2014, %v2357
    %v2359 = vadd.f32 %v2353, %v2358
    %v2360 = vadd.f32 %v2354, %v2358
    %vm2361 = vcmask 39936
    %v2362 = vsel %vm2361, %v2359, inf
    %2363 = vmin.xlane.f32.xlu0 %v2362
    %v2364 = vpop.xlane.xlu0 %2363
    %v2365 = vsel %vm2361, %v2360, inf
    %2366 = vmin.xlane.f32.xlu0 %v2365
    %v2367 = vpop.xlane.xlu0 %2366
    %v2368 = vsub.f32 %v2359, %v2364
    %v2369 = vsub.f32 %v2360, %v2367
    %v2370 = vsel %vm2361, %v2368, -inf
    %2371 = vmax.xlane.f32.xlu0 %v2370
    %v2372 = vpop.xlane.xlu0 %2371
    %v2373 = vsel %vm2361, %v2369, -inf
    %2374 = vmax.xlane.f32.xlu0 %v2373
    %v2375 = vpop.xlane.xlu0 %2374
    %v2376 = vsub.f32 %v2368, %v2372
    %v2377 = vsub.f32 %v2369, %v2375
    %v2378 = vmul.f32 %v2376, 1.442695
    %v2379 = vpow.pop %v2378
    %v2380 = vmul.f32 %v2377, 1.442695
    %v2381 = vpow.pop %v2380
    %v2382 = vsel %vm2361, %v2379, 0.0
    %2383 = vadd.xlane.f32.xlu0 %v2382
    %v2384 = vpop.xlane.xlu0 %2383
    %v2385 = vsel %vm2361, %v2381, 0.0
    %2386 = vadd.xlane.f32.xlu0 %v2385
    %v2387 = vpop.xlane.xlu0 %2386
    %v2388 = vrcp.pop %v2384
    %v2389 = vmul.f32 %v2379, %v2388
    %v2390 = vrcp.pop %v2387
    %v2391 = vmul.f32 %v2381, %v2390
    %v2392 = vxor.u32 %v2359, 2147483648
    %v2393 = vxor.u32 %v2360, 2147483648
    %v2394 = vmul.f32 %v2392, 1.442695
    %v2395 = vpow.pop %v2394
    %v2396 = vmul.f32 %v2393, 1.442695
    %v2397 = vpow.pop %v2396
    %v2398 = vadd.f32 %v2395, 1.0
    %v2399 = vadd.f32 %v2397, 1.0
    %v2400 = vrcp.pop %v2398
    %v2401 = vmul.f32 1.0, %v2400
    %v2402 = vrcp.pop %v2399
    %v2403 = vmul.f32 1.0, %v2402
    %2406 = vrot.lane.b32.xlu0 %v2401, 123
    %v2407 = vpop.permute.xlu0 %2406
    %2408 = vrot.lane.b32.xlu0 %v2403, 123
    %v2409 = vpop.permute.xlu0 %2408
    %v2412 = vmul.f32 %v2389, %v2407
    %v2413 = vmul.f32 %v2391, %v2409
    %v2414 = vsel %vm2361, %v2412, 0.0
    %2415 = vadd.xlane.f32.xlu0 %v2414
    %v2416 = vpop.xlane.xlu0 %2415
    %v2417 = vsel %vm2361, %v2413, 0.0
    %2418 = vadd.xlane.f32.xlu0 %v2417
    %v2419 = vpop.xlane.xlu0 %2418
    %vm2420 = vcmask 7168
    %2421 = vst.msk [vmem:[%s6] sm:$0xff] %vm2420, %v2416
    %2422 = vst.msk [vmem:[%s6 + $0x8] sm:$0xff] %vm2420, %v2419
    // Predicated region
    $region30: #{tpu_custom_call.1} parent=1 // pred_check
      _
    $region31: #{tpu_custom_call.1} parent=1 // pred_check_branch
      %2424 = sbr.rel (0) target = $region33
    $region32: #{tpu_custom_call.1} parent=1 // pred_region
      _
    $region33: #{tpu_custom_call.1} parent=1 // pred_fallthru
      _
    // Predicated region
    $region34: #{tpu_custom_call.1} parent=1 // pred_check
      _
    $region35: #{tpu_custom_call.1} parent=1 // pred_check_branch
      %2426 = sbr.rel (0) target = $region37
    $region36: #{tpu_custom_call.1} parent=1 // pred_region
      _
    $region37: #{tpu_custom_call.1} parent=1 // pred_fallthru
      _
    %2427 = vsyncpa [#allocation5], 1

</llo_original>
